<compile_context>
chip_gen: v6e
topology: v6e:2x2x1
jax: 0.10.0
libtpu: 0.0.40
codegen_flags: <defaults>
</compile_context>

<pallas_src>
import functools
import math

import jax
import jax.numpy as jnp
from jax.experimental import pallas as pl
from jax.experimental.pallas import tpu as pltpu  # noqa: F401  (TPU backend)

F32 = jnp.float32


# ---------------------------------------------------------------------------
# pallas_call helpers (shapes are tiny -> single-program full-array blocks)
# ---------------------------------------------------------------------------
def _full_spec(shape):
    nd = len(shape)
    return pl.BlockSpec(shape, lambda i, _nd=nd: (0,) * _nd)


def _run(kernel, out_shapes, *arrays):
    """Single-program pallas_call over full-array blocks.

    TODO(synk): for large N, switch to a row-tiled grid (BlockSpec (tm, N)) with
    dimension_semantics=("parallel",) and an explicit vmem_limit_bytes so the dense
    [N, N] adjacency is pipelined instead of held as one block (v7x: 64 MiB VMEM, 2 TCs).
    """
    multi = not isinstance(out_shapes[0], int)          # list-of-shapes vs single shape
    shapes = tuple(out_shapes) if multi else (tuple(out_shapes),)
    out_shape = tuple(jax.ShapeDtypeStruct(tuple(s), F32) for s in shapes)
    out_specs = tuple(_full_spec(tuple(s)) for s in shapes)
    return pl.pallas_call(
        kernel,
        out_shape=out_shape if multi else out_shape[0],
        grid=(1,),
        in_specs=[_full_spec(a.shape) for a in arrays],
        out_specs=out_specs if multi else out_specs[0],
    )(*arrays)


# ---------------------------------------------------------------------------
# In-kernel building blocks (pure jnp, traced inside the Pallas kernels)
# ---------------------------------------------------------------------------
def _normalized_adj(adj):
    """(A + I), its row degrees, and D^-1/2 (A+I) D^-1/2 (A is symmetric)."""
    n = adj.shape[0]
    row = jax.lax.broadcasted_iota(jnp.int32, (n, n), 0)
    col = jax.lax.broadcasted_iota(jnp.int32, (n, n), 1)
    a = adj + (row == col).astype(F32)                       # add self loops
    deg_r = jnp.sum(a, axis=1, keepdims=True)                # [N,1]
    deg_c = jnp.sum(a, axis=0, keepdims=True)                # [1,N] (A symmetric)
    a_norm = (a * jax.lax.rsqrt(jnp.maximum(deg_r, 1e-12))
                * jax.lax.rsqrt(jnp.maximum(deg_c, 1e-12)))
    return a, deg_r, a_norm


def _gcn_propagate(a_norm, x, w, b):
    """relu( A_norm @ (X @ W) + b )."""
    h = jnp.dot(x, w, preferred_element_type=F32)
    return jnp.maximum(jnp.dot(a_norm, h, preferred_element_type=F32) + b, 0.0)


def _info_score(a, deg_r, h):
    """HGP-SL node-information score sum_f |h - D^-1 (A+I) h| as a lane-dense [1, N].

    The feature-sum is written as ones[1,F] contracted with |diff| on F (a tiny
    A @ B^T matmul), so the result lands on the lane axis: no [N,1] column store,
    no transpose.
    TODO(synk): score uses (A+I) like the conv; verify against the HGP-SL reference.
    """
    p = a / jnp.maximum(deg_r, 1e-12)                        # row-normalized propagation
    diff = jnp.abs(h - jnp.dot(p, h, preferred_element_type=F32))
    ones = jnp.ones((1, diff.shape[1]), F32)
    return jax.lax.dot_general(ones, diff, (((1,), (1,)), ((), ())),
                               preferred_element_type=F32)   # [1, N]


def _readout(x, onehot, onehot_t):
    """Per-graph max & mean pooling.  gmp = per-graph 2-D masked max (G is static,
    unrolled; no [G,N,F] broadcast); gap = one-hot matmul."""
    cnt = jnp.maximum(jnp.sum(onehot, axis=-1, keepdims=True), 1.0)   # [G,1]
    gap = jnp.dot(onehot, x, preferred_element_type=F32) / cnt        # [G,F]
    neg = jnp.float32(-1e30)
    rows = []
    for g in range(onehot.shape[0]):                 # small static G -> unrolled
        mask_col = onehot_t[:, g:g + 1]              # [N,1]
        rows.append(jnp.max(jnp.where(mask_col > 0.0, x, neg),
                            axis=0, keepdims=True))  # [1,F]
    gmp = jnp.concatenate(rows, axis=0)              # [G,F]
    return gmp, gap


# ---------------------------------------------------------------------------
# Pallas kernels (fused stages)
# ---------------------------------------------------------------------------
def gcn_score_kernel(adj_ref, x_ref, w_ref, b_ref, h_ref, score_ref):
    """Fused: h = relu(GCN(x)) and the following pool's node-information score of h.
    (A+I), degrees and X@W are computed once and shared."""
    a, deg_r, a_norm = _normalized_adj(adj_ref[...])
    h = _gcn_propagate(a_norm, x_ref[...], w_ref[...], b_ref[...])
    h_ref[...] = h
    score_ref[...] = _info_score(a, deg_r, h)


def gcn_score_readout_kernel(adj_ref, x_ref, w_ref, b_ref, oh_ref, oht_ref,
                             h_ref, score_ref, gmp_ref, gap_ref):
    """Fused: readout of the pooled features x (gmp/gap as separate full-width outputs),
    h = relu(GCN(x)), and the next pool's node-information score of h."""
    x = x_ref[...]
    gmp, gap = _readout(x, oh_ref[...], oht_ref[...])
    a, deg_r, a_norm = _normalized_adj(adj_ref[...])
    h = _gcn_propagate(a_norm, x, w_ref[...], b_ref[...])
    h_ref[...] = h
    score_ref[...] = _info_score(a, deg_r, h)
    gmp_ref[...] = gmp
    gap_ref[...] = gap


def structure_learning_kernel(x_ref, adj_ref, att_src_ref, att_dst_ref,
                              mask_ref, out_ref, *, lamb):
    """Dense structure learning: softmax_row( leaky_relu(att scores) + lamb * A ),
    masked to same-graph node pairs -> new weighted adjacency.
    TODO(synk): HGP-SL's sparse attention (sparsemax) and neighbor sampling are
    replaced by a dense masked softmax over same-graph node pairs."""
    x = x_ref[...]                                            # [K,H]
    s_src = jnp.sum(x * att_src_ref[...], axis=-1, keepdims=True)       # [K,1]
    # Destination score directly as a lane-dense [1,K] row via att_dst @ x^T
    # (replaces the old ones((K,K)) @ diag trick: O(K^3) -> O(K*H), no eye/ones(K,K)).
    s_dst = jax.lax.dot_general(att_dst_ref[...], x, (((1,), (1,)), ((), ())),
                                preferred_element_type=F32)             # [1,K]
    e = s_src + s_dst
    e = jnp.where(e >= 0.0, e, 0.2 * e)                       # leaky_relu(0.2)
    e = e + lamb * adj_ref[...]
    mask = mask_ref[...]
    e = jnp.where(mask > 0.0, e, jnp.float32(-1e30))
    m = jnp.max(e, axis=-1, keepdims=True)
    z = jnp.exp(e - m)
    w = z / jnp.maximum(jnp.sum(z, axis=-1, keepdims=True), 1e-12)
    out_ref[...] = w * mask


def tail_kernel(gmp1_ref, gap1_ref, x2_ref, adj2_ref, oh2_ref, oht2_ref,
                w3_ref, b3_ref, w1a_ref, w1b_ref, b1_ref,
                w2l_ref, b2l_ref, w3l_ref, b3l_ref, out_ref):
    """Fused tail: readout2, relu(conv3), readout3, x = relu(x1)+relu(x2)+relu(x3),
    lin1/relu, (dropout=identity), lin2/relu, lin3, log_softmax.
    lin1 is applied as (gmp part) + (gap part) so the gmp/gap readouts never need to
    be concatenated into a [G, 2*nhid] buffer (keeps every store full-width)."""
    x2 = x2_ref[...]
    gmp2, gap2 = _readout(x2, oh2_ref[...], oht2_ref[...])
    _, _, a_norm = _normalized_adj(adj2_ref[...])
    h3 = _gcn_propagate(a_norm, x2, w3_ref[...], b3_ref[...])
    gmp3, gap3 = _readout(h3, oh2_ref[...], oht2_ref[...])

    xg = (jnp.maximum(gmp1_ref[...], 0.0) + jnp.maximum(gmp2, 0.0)
          + jnp.maximum(gmp3, 0.0))
    xa = (jnp.maximum(gap1_ref[...], 0.0) + jnp.maximum(gap2, 0.0)
          + jnp.maximum(gap3, 0.0))
    h = jnp.maximum(jnp.dot(xg, w1a_ref[...], preferred_element_type=F32)
                    + jnp.dot(xa, w1b_ref[...], preferred_element_type=F32)
                    + b1_ref[...], 0.0)
    # F.dropout(training=False) is identity (inference mode)
    h = jnp.maximum(jnp.dot(h, w2l_ref[...], preferred_element_type=F32)
                    + b2l_ref[...], 0.0)
    logits = jnp.dot(h, w3l_ref[...], preferred_element_type=F32) + b3l_ref[...]
    m = jnp.max(logits, axis=-1, keepdims=True)
    z = logits - m
    out_ref[...] = z - jnp.log(jnp.sum(jnp.exp(z), axis=-1, keepdims=True))


# ---------------------------------------------------------------------------
# Plain-JAX glue: top-k node selection, subgraph gather, parameter setup
# ---------------------------------------------------------------------------
def topk_per_graph(score_row, num_graphs, nodes_per_graph, ratio):
    """Vectorized per-graph top-k: one lax.top_k over [G, nodes_per_graph].
    Nodes are contiguous, equal-size blocks per graph (as built below) and pooling
    preserves that layout, so a reshape replaces the old per-graph masking loop."""
    k = int(math.ceil(ratio * nodes_per_graph))
    s = score_row.reshape(num_graphs, nodes_per_graph)
    _, idx = jax.lax.top_k(s, k)                              # [G, k] local indices
    idx = jnp.sort(idx, axis=-1)
    offs = jnp.arange(num_graphs, dtype=idx.dtype)[:, None] * nodes_per_graph
    return (idx + offs).reshape(-1), k


def hgpsl_pool(att, h, score_row, adj, batch, num_graphs, nodes_per_graph,
               ratio, lamb):
    nhid = h.shape[1]
    perm, k = topk_per_graph(score_row, num_graphs, nodes_per_graph, ratio)
    x_new = h[perm]
    adj_ind = adj[perm][:, perm]
    batch_new = batch[perm]
    same_graph = (batch_new[:, None] == batch_new[None, :]).astype(F32)
    adj_new = _run(functools.partial(structure_learning_kernel, lamb=lamb),
                   (x_new.shape[0], x_new.shape[0]),
                   x_new, adj_ind, att[:, :nhid], att[:, nhid:], same_graph)
    return x_new, adj_new, batch_new, k


def _onehot(batch, num_graphs):
    oh = (batch[None, :] == jnp.arange(num_graphs)[:, None]).astype(F32)   # [G,N]
    return oh, jnp.transpose(oh)                                           # [N,G]


def init_params(key, num_features, nhid, num_classes):
    ks = jax.random.split(key, 14)
    w = lambda k, shape: 0.1 * jax.random.normal(k, shape, F32)
    # Linear weights are stored input-major ([in, out]) once at init so the forward
    # never re-transposes them.
    return dict(
        conv1_w=w(ks[0], (num_features, nhid)), conv1_b=w(ks[1], (1, nhid)),
        conv2_w=w(ks[2], (nhid, nhid)),         conv2_b=w(ks[3], (1, nhid)),
        conv3_w=w(ks[4], (nhid, nhid)),         conv3_b=w(ks[5], (1, nhid)),
        pool1_att=w(ks[6], (1, 2 * nhid)),
        pool2_att=w(ks[7], (1, 2 * nhid)),
        lin1_w=w(ks[8], (2 * nhid, nhid)),      lin1_b=w(ks[9], (1, nhid)),
        lin2_w=w(ks[10], (nhid, nhid // 2)),    lin2_b=w(ks[11], (1, nhid // 2)),
        lin3_w=w(ks[12], (nhid // 2, num_classes)), lin3_b=w(ks[13], (1, num_classes)),
    )


@functools.partial(jax.jit, static_argnames=("num_graphs", "nodes_per_graph",
                                              "pooling_ratio", "lamb"))
def hgp_forward(params, x, adj, batch, *, num_graphs, nodes_per_graph,
                pooling_ratio, lamb):
    nhid = params["conv1_w"].shape[1]
    num_classes = params["lin3_w"].shape[1]
    n0 = x.shape[0]

    # x = relu(conv1(x)) + pool1's node-information score   (1 fused pallas_call)
    h1, score1 = _run(gcn_score_kernel, [(n0, nhid), (1, n0)],
                      adj, x, params["conv1_w"], params["conv1_b"])

    # pool1: top-k node selection (XLA glue) + structure learning (1 pallas_call)
    x_p1, adj_p1, batch_p1, npg1 = hgpsl_pool(
        params["pool1_att"], h1, score1[0], adj, batch,
        num_graphs, nodes_per_graph, pooling_ratio, lamb)
    oh1, oh1_t = _onehot(batch_p1, num_graphs)

    # x1 = cat([gmp, gap]) readout + relu(conv2) + pool2 score   (1 fused pallas_call)
    n1 = x_p1.shape[0]
    h2, score2, gmp1, gap1 = _run(
        gcn_score_readout_kernel,
        [(n1, nhid), (1, n1), (num_graphs, nhid), (num_graphs, nhid)],
        adj_p1, x_p1, params["conv2_w"], params["conv2_b"], oh1, oh1_t)

    # pool2
    x_p2, adj_p2, batch_p2, _ = hgpsl_pool(
        params["pool2_att"], h2, score2[0], adj_p1, batch_p1,
        num_graphs, npg1, pooling_ratio, lamb)
    oh2, oh2_t = _onehot(batch_p2, num_graphs)

    # x2 readout + relu(conv3) + x3 readout + MLP head + log_softmax (1 fused call)
    w1 = params["lin1_w"]                                     # [2*nhid, nhid] input-major
    out = _run(tail_kernel, (num_graphs, num_classes),
               gmp1, gap1, x_p2, adj_p2, oh2, oh2_t,
               params["conv3_w"], params["conv3_b"],
               w1[:nhid, :], w1[nhid:, :], params["lin1_b"],
               params["lin2_w"], params["lin2_b"],
               params["lin3_w"], params["lin3_b"])
    return out


# ---------------------------------------------------------------------------
if __name__ == "__main__":
    num_features, nhid, num_classes = 4, 32, 4
    pooling_ratio, lamb = 0.5, 1.0
    num_graphs, nodes_per_graph = 2, 8
    N = num_graphs * nodes_per_graph

    key = jax.random.PRNGKey(0)
    kx, kp = jax.random.split(key)
    x = jax.random.normal(kx, (N, num_features), F32)

    # deterministic block-diagonal ring graphs (edge_index as a dense adjacency)
    adj = jnp.zeros((N, N), F32)
    for g in range(num_graphs):
        base = g * nodes_per_graph
        for i in range(nodes_per_graph):
            a = base + i
            b = base + (i + 1) % nodes_per_graph
            adj = adj.at[a, b].set(1.0).at[b, a].set(1.0)
    batch = jnp.repeat(jnp.arange(num_graphs, dtype=jnp.int32), nodes_per_graph)

    params = init_params(kp, num_features, nhid, num_classes)
    out = hgp_forward(params, x, adj, batch,
                      num_graphs=num_graphs, nodes_per_graph=nodes_per_graph,
                      pooling_ratio=pooling_ratio, lamb=lamb)
    out = jax.block_until_ready(out)
    assert out.shape == (num_graphs, num_classes)
    assert bool(jnp.all(jnp.isfinite(out)))
    print("KERNEL_OK")
</pallas_src>

<mosaic_0001>
module attributes {stable_mosaic.version = 11 : i64} {
  func.func @gcn_score_kernel(%arg0: i32, %arg1: memref<16x16xf32, #tpu.memory_space<vmem>>, %arg2: memref<16x4xf32, #tpu.memory_space<vmem>>, %arg3: memref<4x32xf32, #tpu.memory_space<vmem>>, %arg4: memref<1x32xf32, #tpu.memory_space<vmem>>, %arg5: memref<16x32xf32, #tpu.memory_space<vmem>>, %arg6: memref<1x16xf32, #tpu.memory_space<vmem>>) attributes {dimension_semantics = [#tpu.dimension_semantics<arbitrary>], iteration_bounds = array<i64: 1>, scalar_prefetch = 0 : i64, scratch_operands = 0 : i64, tpu.core_type = #tpu.core_type<tc>, window_params = [{pipeline_mode = #tpu.pipeline_mode<synchronous>, transform_indices = @transform_0, window_bounds = array<i64: 16, 16>}, {pipeline_mode = #tpu.pipeline_mode<synchronous>, transform_indices = @transform_1, window_bounds = array<i64: 16, 4>}, {pipeline_mode = #tpu.pipeline_mode<synchronous>, transform_indices = @transform_2, window_bounds = array<i64: 4, 32>}, {pipeline_mode = #tpu.pipeline_mode<synchronous>, transform_indices = @transform_3, window_bounds = array<i64: 1, 32>}, {pipeline_mode = #tpu.pipeline_mode<synchronous>, transform_indices = @transform_4, window_bounds = array<i64: 16, 32>}, {pipeline_mode = #tpu.pipeline_mode<synchronous>, transform_indices = @transform_5, window_bounds = array<i64: 1, 16>}]} {
    %c0 = arith.constant 0 : index
    %c0_0 = arith.constant 0 : index
    %0 = vector.load %arg1[%c0, %c0_0] : memref<16x16xf32, #tpu.memory_space<vmem>>, vector<16x16xf32>
    %1 = tpu.iota {dimensions = array<i32: 0>} : vector<16x16xi32>
    %2 = tpu.iota {dimensions = array<i32: 1>} : vector<16x16xi32>
    %3 = arith.cmpi eq, %1, %2 : vector<16x16xi32>
    %4 = arith.extui %3 : vector<16x16xi1> to vector<16x16xi32>
    %5 = arith.sitofp %4 : vector<16x16xi32> to vector<16x16xf32>
    %6 = arith.addf %0, %5 : vector<16x16xf32>
    %cst = arith.constant dense<0.000000e+00> : vector<16xf32>
    %7 = vector.multi_reduction <add>, %6, %cst [1] : vector<16x16xf32> to vector<16xf32>
    %8 = vector.shape_cast %7 : vector<16xf32> to vector<16x1xf32>
    %cst_1 = arith.constant dense<0.000000e+00> : vector<16xf32>
    %9 = vector.multi_reduction <add>, %6, %cst_1 [0] : vector<16x16xf32> to vector<16xf32>
    %10 = vector.shape_cast %9 : vector<16xf32> to vector<1x16xf32>
    %cst_2 = arith.constant 9.99999996E-13 : f32
    %11 = vector.broadcast %cst_2 : f32 to vector<16x1xf32>
    %12 = arith.maximumf %8, %11 : vector<16x1xf32>
    %13 = math.rsqrt %12 : vector<16x1xf32>
    %14 = vector.broadcast %13 : vector<16x1xf32> to vector<16x16xf32>
    %15 = arith.mulf %6, %14 : vector<16x16xf32>
    %cst_3 = arith.constant 9.99999996E-13 : f32
    %16 = vector.broadcast %cst_3 : f32 to vector<1x16xf32>
    %17 = arith.maximumf %10, %16 : vector<1x16xf32>
    %18 = math.rsqrt %17 : vector<1x16xf32>
    %19 = vector.broadcast %18 : vector<1x16xf32> to vector<16x16xf32>
    %20 = arith.mulf %15, %19 : vector<16x16xf32>
    %c0_4 = arith.constant 0 : index
    %c0_5 = arith.constant 0 : index
    %21 = vector.load %arg2[%c0_4, %c0_5] : memref<16x4xf32, #tpu.memory_space<vmem>>, vector<16x4xf32>
    %c0_6 = arith.constant 0 : index
    %c0_7 = arith.constant 0 : index
    %22 = vector.load %arg3[%c0_6, %c0_7] : memref<4x32xf32, #tpu.memory_space<vmem>>, vector<4x32xf32>
    %c0_8 = arith.constant 0 : index
    %c0_9 = arith.constant 0 : index
    %23 = vector.load %arg4[%c0_8, %c0_9] : memref<1x32xf32, #tpu.memory_space<vmem>>, vector<1x32xf32>
    %cst_10 = arith.constant dense<0.000000e+00> : vector<16x32xf32>
    %24 = tpu.matmul %21, %22, %cst_10 {dimension_numbers = #tpu.dot_dimension_numbers<[1], [0], [0], [1], [0, 0, 1, 1], [], []>} : vector<16x4xf32>, vector<4x32xf32>, vector<16x32xf32> -> vector<16x32xf32>
    %cst_11 = arith.constant dense<0.000000e+00> : vector<16x32xf32>
    %25 = tpu.matmul %20, %24, %cst_11 {dimension_numbers = #tpu.dot_dimension_numbers<[1], [0], [0], [1], [0, 0, 1, 1], [], []>} : vector<16x16xf32>, vector<16x32xf32>, vector<16x32xf32> -> vector<16x32xf32>
    %26 = vector.broadcast %23 : vector<1x32xf32> to vector<16x32xf32>
    %27 = arith.addf %25, %26 : vector<16x32xf32>
    %cst_12 = arith.constant 0.000000e+00 : f32
    %28 = vector.broadcast %cst_12 : f32 to vector<16x32xf32>
    %29 = arith.maximumf %27, %28 : vector<16x32xf32>
    %c0_13 = arith.constant 0 : index
    %c0_14 = arith.constant 0 : index
    %30 = vector.load %arg5[%c0_13, %c0_14] : memref<16x32xf32, #tpu.memory_space<vmem>>, vector<16x32xf32>
    tpu.vector_store %arg5[%c0_13, %c0_14], %29 {strides = array<i32>} : memref<16x32xf32, #tpu.memory_space<vmem>>, vector<16x32xf32>,
    %cst_15 = arith.constant 9.99999996E-13 : f32
    %31 = vector.broadcast %cst_15 : f32 to vector<16x1xf32>
    %32 = arith.maximumf %8, %31 : vector<16x1xf32>
    %33 = vector.broadcast %32 : vector<16x1xf32> to vector<16x16xf32>
    %34 = arith.divf %6, %33 : vector<16x16xf32>
    %cst_16 = arith.constant dense<0.000000e+00> : vector<16x32xf32>
    %35 = tpu.matmul %34, %29, %cst_16 {dimension_numbers = #tpu.dot_dimension_numbers<[1], [0], [0], [1], [0, 0, 1, 1], [], []>} : vector<16x16xf32>, vector<16x32xf32>, vector<16x32xf32> -> vector<16x32xf32>
    %36 = arith.subf %29, %35 : vector<16x32xf32>
    %37 = math.absf %36 : vector<16x32xf32>
    %cst_17 = arith.constant 1.000000e+00 : f32
    %38 = vector.broadcast %cst_17 : f32 to vector<1x32xf32>
    %cst_18 = arith.constant dense<0.000000e+00> : vector<1x16xf32>
    %39 = tpu.matmul %38, %37, %cst_18 {dimension_numbers = #tpu.dot_dimension_numbers<[1], [1], [0], [0], [0, 0, 1, 0], [], []>} : vector<1x32xf32>, vector<16x32xf32>, vector<1x16xf32> -> vector<1x16xf32>
    %c0_19 = arith.constant 0 : index
    %c0_20 = arith.constant 0 : index
    %40 = vector.load %arg6[%c0_19, %c0_20] : memref<1x16xf32, #tpu.memory_space<vmem>>, vector<1x16xf32>
    tpu.vector_store %arg6[%c0_19, %c0_20], %39 {strides = array<i32>} : memref<1x16xf32, #tpu.memory_space<vmem>>, vector<1x16xf32>,
    return
  }
  func.func @transform_0(%arg0: i32) -> (i32, i32) {
    %c0_i32 = arith.constant 0 : i32
    %c0_i32_0 = arith.constant 0 : i32
    %c0_i32_1 = arith.constant 0 : i32
    return %c0_i32, %c0_i32_0 : i32, i32
  }
  func.func @transform_1(%arg0: i32) -> (i32, i32) {
    %c0_i32 = arith.constant 0 : i32
    %c0_i32_0 = arith.constant 0 : i32
    %c0_i32_1 = arith.constant 0 : i32
    return %c0_i32, %c0_i32_0 : i32, i32
  }
  func.func @transform_2(%arg0: i32) -> (i32, i32) {
    %c0_i32 = arith.constant 0 : i32
    %c0_i32_0 = arith.constant 0 : i32
    %c0_i32_1 = arith.constant 0 : i32
    return %c0_i32, %c0_i32_0 : i32, i32
  }
  func.func @transform_3(%arg0: i32) -> (i32, i32) {
    %c0_i32 = arith.constant 0 : i32
    %c0_i32_0 = arith.constant 0 : i32
    %c0_i32_1 = arith.constant 0 : i32
    return %c0_i32, %c0_i32_0 : i32, i32
  }
  func.func @transform_4(%arg0: i32) -> (i32, i32) {
    %c0_i32 = arith.constant 0 : i32
    %c0_i32_0 = arith.constant 0 : i32
    %c0_i32_1 = arith.constant 0 : i32
    return %c0_i32, %c0_i32_0 : i32, i32
  }
  func.func @transform_5(%arg0: i32) -> (i32, i32) {
    %c0_i32 = arith.constant 0 : i32
    %c0_i32_0 = arith.constant 0 : i32
    %c0_i32_1 = arith.constant 0 : i32
    return %c0_i32, %c0_i32_0 : i32, i32
  }
}

module attributes {stable_mosaic.version = 11 : i64} {
  func.func @structure_learning_kernel(%arg0: i32, %arg1: memref<8x32xf32, #tpu.memory_space<vmem>>, %arg2: memref<8x8xf32, #tpu.memory_space<vmem>>, %arg3: memref<1x32xf32, #tpu.memory_space<vmem>>, %arg4: memref<1x32xf32, #tpu.memory_space<vmem>>, %arg5: memref<8x8xf32, #tpu.memory_space<vmem>>, %arg6: memref<8x8xf32, #tpu.memory_space<vmem>>) attributes {dimension_semantics = [#tpu.dimension_semantics<arbitrary>], iteration_bounds = array<i64: 1>, scalar_prefetch = 0 : i64, scratch_operands = 0 : i64, tpu.core_type = #tpu.core_type<tc>, window_params = [{pipeline_mode = #tpu.pipeline_mode<synchronous>, transform_indices = @transform_0, window_bounds = array<i64: 8, 32>}, {pipeline_mode = #tpu.pipeline_mode<synchronous>, transform_indices = @transform_1, window_bounds = array<i64: 8, 8>}, {pipeline_mode = #tpu.pipeline_mode<synchronous>, transform_indices = @transform_2, window_bounds = array<i64: 1, 32>}, {pipeline_mode = #tpu.pipeline_mode<synchronous>, transform_indices = @transform_3, window_bounds = array<i64: 1, 32>}, {pipeline_mode = #tpu.pipeline_mode<synchronous>, transform_indices = @transform_4, window_bounds = array<i64: 8, 8>}, {pipeline_mode = #tpu.pipeline_mode<synchronous>, transform_indices = @transform_5, window_bounds = array<i64: 8, 8>}]} {
    %c0 = arith.constant 0 : index
    %c0_0 = arith.constant 0 : index
    %0 = vector.load %arg1[%c0, %c0_0] : memref<8x32xf32, #tpu.memory_space<vmem>>, vector<8x32xf32>
    %c0_1 = arith.constant 0 : index
    %c0_2 = arith.constant 0 : index
    %1 = vector.load %arg3[%c0_1, %c0_2] : memref<1x32xf32, #tpu.memory_space<vmem>>, vector<1x32xf32>
    %2 = vector.broadcast %1 : vector<1x32xf32> to vector<8x32xf32>
    %3 = arith.mulf %0, %2 : vector<8x32xf32>
    %cst = arith.constant dense<0.000000e+00> : vector<8xf32>
    %4 = vector.multi_reduction <add>, %3, %cst [1] : vector<8x32xf32> to vector<8xf32>
    %5 = vector.shape_cast %4 : vector<8xf32> to vector<8x1xf32>
    %c0_3 = arith.constant 0 : index
    %c0_4 = arith.constant 0 : index
    %6 = vector.load %arg4[%c0_3, %c0_4] : memref<1x32xf32, #tpu.memory_space<vmem>>, vector<1x32xf32>
    %cst_5 = arith.constant dense<0.000000e+00> : vector<1x8xf32>
    %7 = tpu.matmul %6, %0, %cst_5 {dimension_numbers = #tpu.dot_dimension_numbers<[1], [1], [0], [0], [0, 0, 1, 0], [], []>} : vector<1x32xf32>, vector<8x32xf32>, vector<1x8xf32> -> vector<1x8xf32>
    %8 = vector.broadcast %5 : vector<8x1xf32> to vector<8x8xf32>
    %9 = vector.broadcast %7 : vector<1x8xf32> to vector<8x8xf32>
    %10 = arith.addf %8, %9 : vector<8x8xf32>
    %cst_6 = arith.constant 0.000000e+00 : f32
    %11 = vector.broadcast %cst_6 : f32 to vector<8x8xf32>
    %12 = arith.cmpf oge, %10, %11 : vector<8x8xf32>
    %cst_7 = arith.constant 2.000000e-01 : f32
    %13 = vector.broadcast %cst_7 : f32 to vector<8x8xf32>
    %14 = arith.mulf %13, %10 : vector<8x8xf32>
    %15 = arith.select %12, %10, %14 : vector<8x8xi1>, vector<8x8xf32>
    %c0_8 = arith.constant 0 : index
    %c0_9 = arith.constant 0 : index
    %16 = vector.load %arg2[%c0_8, %c0_9] : memref<8x8xf32, #tpu.memory_space<vmem>>, vector<8x8xf32>
    %cst_10 = arith.constant 1.000000e+00 : f32
    %17 = vector.broadcast %cst_10 : f32 to vector<8x8xf32>
    %18 = arith.mulf %17, %16 : vector<8x8xf32>
    %19 = arith.addf %15, %18 : vector<8x8xf32>
    %c0_11 = arith.constant 0 : index
    %c0_12 = arith.constant 0 : index
    %20 = vector.load %arg5[%c0_11, %c0_12] : memref<8x8xf32, #tpu.memory_space<vmem>>, vector<8x8xf32>
    %cst_13 = arith.constant 0.000000e+00 : f32
    %21 = vector.broadcast %cst_13 : f32 to vector<8x8xf32>
    %22 = arith.cmpf ogt, %20, %21 : vector<8x8xf32>
    %cst_14 = arith.constant -1.000000e+30 : f32
    %23 = vector.broadcast %cst_14 : f32 to vector<8x8xf32>
    %24 = arith.select %22, %19, %23 : vector<8x8xi1>, vector<8x8xf32>
    %cst_15 = arith.constant dense<0xFF800000> : vector<8xf32>
    %25 = vector.multi_reduction <maximumf>, %24, %cst_15 [1] : vector<8x8xf32> to vector<8xf32>
    %26 = vector.shape_cast %25 : vector<8xf32> to vector<8x1xf32>
    %27 = vector.broadcast %26 : vector<8x1xf32> to vector<8x8xf32>
    %28 = arith.subf %24, %27 : vector<8x8xf32>
    %29 = math.exp %28 : vector<8x8xf32>
    %cst_16 = arith.constant dense<0.000000e+00> : vector<8xf32>
    %30 = vector.multi_reduction <add>, %29, %cst_16 [1] : vector<8x8xf32> to vector<8xf32>
    %31 = vector.shape_cast %30 : vector<8xf32> to vector<8x1xf32>
    %cst_17 = arith.constant 9.99999996E-13 : f32
    %32 = vector.broadcast %cst_17 : f32 to vector<8x1xf32>
    %33 = arith.maximumf %31, %32 : vector<8x1xf32>
    %34 = vector.broadcast %33 : vector<8x1xf32> to vector<8x8xf32>
    %35 = arith.divf %29, %34 : vector<8x8xf32>
    %36 = arith.mulf %35, %20 : vector<8x8xf32>
    %c0_18 = arith.constant 0 : index
    %c0_19 = arith.constant 0 : index
    %37 = vector.load %arg6[%c0_18, %c0_19] : memref<8x8xf32, #tpu.memory_space<vmem>>, vector<8x8xf32>
    tpu.vector_store %arg6[%c0_18, %c0_19], %36 {strides = array<i32>} : memref<8x8xf32, #tpu.memory_space<vmem>>, vector<8x8xf32>,
    return
  }
  func.func @transform_0(%arg0: i32) -> (i32, i32) {
    %c0_i32 = arith.constant 0 : i32
    %c0_i32_0 = arith.constant 0 : i32
    %c0_i32_1 = arith.constant 0 : i32
    return %c0_i32, %c0_i32_0 : i32, i32
  }
  func.func @transform_1(%arg0: i32) -> (i32, i32) {
    %c0_i32 = arith.constant 0 : i32
    %c0_i32_0 = arith.constant 0 : i32
    %c0_i32_1 = arith.constant 0 : i32
    return %c0_i32, %c0_i32_0 : i32, i32
  }
  func.func @transform_2(%arg0: i32) -> (i32, i32) {
    %c0_i32 = arith.constant 0 : i32
    %c0_i32_0 = arith.constant 0 : i32
    %c0_i32_1 = arith.constant 0 : i32
    return %c0_i32, %c0_i32_0 : i32, i32
  }
  func.func @transform_3(%arg0: i32) -> (i32, i32) {
    %c0_i32 = arith.constant 0 : i32
    %c0_i32_0 = arith.constant 0 : i32
    %c0_i32_1 = arith.constant 0 : i32
    return %c0_i32, %c0_i32_0 : i32, i32
  }
  func.func @transform_4(%arg0: i32) -> (i32, i32) {
    %c0_i32 = arith.constant 0 : i32
    %c0_i32_0 = arith.constant 0 : i32
    %c0_i32_1 = arith.constant 0 : i32
    return %c0_i32, %c0_i32_0 : i32, i32
  }
  func.func @transform_5(%arg0: i32) -> (i32, i32) {
    %c0_i32 = arith.constant 0 : i32
    %c0_i32_0 = arith.constant 0 : i32
    %c0_i32_1 = arith.constant 0 : i32
    return %c0_i32, %c0_i32_0 : i32, i32
  }
}

module attributes {stable_mosaic.version = 11 : i64} {
  func.func @gcn_score_readout_kernel(%arg0: i32, %arg1: memref<8x8xf32, #tpu.memory_space<vmem>>, %arg2: memref<8x32xf32, #tpu.memory_space<vmem>>, %arg3: memref<32x32xf32, #tpu.memory_space<vmem>>, %arg4: memref<1x32xf32, #tpu.memory_space<vmem>>, %arg5: memref<2x8xf32, #tpu.memory_space<vmem>>, %arg6: memref<8x2xf32, #tpu.memory_space<vmem>>, %arg7: memref<8x32xf32, #tpu.memory_space<vmem>>, %arg8: memref<1x8xf32, #tpu.memory_space<vmem>>, %arg9: memref<2x32xf32, #tpu.memory_space<vmem>>, %arg10: memref<2x32xf32, #tpu.memory_space<vmem>>) attributes {dimension_semantics = [#tpu.dimension_semantics<arbitrary>], iteration_bounds = array<i64: 1>, scalar_prefetch = 0 : i64, scratch_operands = 0 : i64, tpu.core_type = #tpu.core_type<tc>, window_params = [{pipeline_mode = #tpu.pipeline_mode<synchronous>, transform_indices = @transform_0, window_bounds = array<i64: 8, 8>}, {pipeline_mode = #tpu.pipeline_mode<synchronous>, transform_indices = @transform_1, window_bounds = array<i64: 8, 32>}, {pipeline_mode = #tpu.pipeline_mode<synchronous>, transform_indices = @transform_2, window_bounds = array<i64: 32, 32>}, {pipeline_mode = #tpu.pipeline_mode<synchronous>, transform_indices = @transform_3, window_bounds = array<i64: 1, 32>}, {pipeline_mode = #tpu.pipeline_mode<synchronous>, transform_indices = @transform_4, window_bounds = array<i64: 2, 8>}, {pipeline_mode = #tpu.pipeline_mode<synchronous>, transform_indices = @transform_5, window_bounds = array<i64: 8, 2>}, {pipeline_mode = #tpu.pipeline_mode<synchronous>, transform_indices = @transform_6, window_bounds = array<i64: 8, 32>}, {pipeline_mode = #tpu.pipeline_mode<synchronous>, transform_indices = @transform_7, window_bounds = array<i64: 1, 8>}, {pipeline_mode = #tpu.pipeline_mode<synchronous>, transform_indices = @transform_8, window_bounds = array<i64: 2, 32>}, {pipeline_mode = #tpu.pipeline_mode<synchronous>, transform_indices = @transform_9, window_bounds = array<i64: 2, 32>}]} {
    %c0 = arith.constant 0 : index
    %c0_0 = arith.constant 0 : index
    %0 = vector.load %arg2[%c0, %c0_0] : memref<8x32xf32, #tpu.memory_space<vmem>>, vector<8x32xf32>
    %c0_1 = arith.constant 0 : index
    %c0_2 = arith.constant 0 : index
    %1 = vector.load %arg5[%c0_1, %c0_2] : memref<2x8xf32, #tpu.memory_space<vmem>>, vector<2x8xf32>
    %c0_3 = arith.constant 0 : index
    %c0_4 = arith.constant 0 : index
    %2 = vector.load %arg6[%c0_3, %c0_4] : memref<8x2xf32, #tpu.memory_space<vmem>>, vector<8x2xf32>
    %cst = arith.constant dense<0.000000e+00> : vector<2xf32>
    %3 = vector.multi_reduction <add>, %1, %cst [1] : vector<2x8xf32> to vector<2xf32>
    %4 = vector.shape_cast %3 : vector<2xf32> to vector<2x1xf32>
    %cst_5 = arith.constant 1.000000e+00 : f32
    %5 = vector.broadcast %cst_5 : f32 to vector<2x1xf32>
    %6 = arith.maximumf %4, %5 : vector<2x1xf32>
    %cst_6 = arith.constant dense<0.000000e+00> : vector<2x32xf32>
    %7 = tpu.matmul %1, %0, %cst_6 {dimension_numbers = #tpu.dot_dimension_numbers<[1], [0], [0], [1], [0, 0, 1, 1], [], []>} : vector<2x8xf32>, vector<8x32xf32>, vector<2x32xf32> -> vector<2x32xf32>
    %8 = vector.broadcast %6 : vector<2x1xf32> to vector<2x32xf32>
    %9 = arith.divf %7, %8 : vector<2x32xf32>
    %10 = vector.extract_strided_slice %2 {offsets = [0, 0], sizes = [8, 1], strides = [1, 1]} : vector<8x2xf32> to vector<8x1xf32>
    %cst_7 = arith.constant 0.000000e+00 : f32
    %11 = vector.broadcast %cst_7 : f32 to vector<8x1xf32>
    %12 = arith.cmpf ogt, %10, %11 : vector<8x1xf32>
    %cst_8 = arith.constant -1.000000e+30 : f32
    %13 = vector.shape_cast %12 : vector<8x1xi1> to vector<8x1xi1>
    %14 = vector.broadcast %13 : vector<8x1xi1> to vector<8x32xi1>
    %15 = vector.broadcast %cst_8 : f32 to vector<8x32xf32>
    %16 = arith.select %14, %0, %15 : vector<8x32xi1>, vector<8x32xf32>
    %cst_9 = arith.constant dense<0xFF800000> : vector<32xf32>
    %17 = vector.multi_reduction <maximumf>, %16, %cst_9 [0] : vector<8x32xf32> to vector<32xf32>
    %18 = vector.shape_cast %17 : vector<32xf32> to vector<1x32xf32>
    %19 = vector.extract_strided_slice %2 {offsets = [0, 1], sizes = [8, 1], strides = [1, 1]} : vector<8x2xf32> to vector<8x1xf32>
    %cst_10 = arith.constant 0.000000e+00 : f32
    %20 = vector.broadcast %cst_10 : f32 to vector<8x1xf32>
    %21 = arith.cmpf ogt, %19, %20 : vector<8x1xf32>
    %cst_11 = arith.constant -1.000000e+30 : f32
    %22 = vector.shape_cast %21 : vector<8x1xi1> to vector<8x1xi1>
    %23 = vector.broadcast %22 : vector<8x1xi1> to vector<8x32xi1>
    %24 = vector.broadcast %cst_11 : f32 to vector<8x32xf32>
    %25 = arith.select %23, %0, %24 : vector<8x32xi1>, vector<8x32xf32>
    %cst_12 = arith.constant dense<0xFF800000> : vector<32xf32>
    %26 = vector.multi_reduction <maximumf>, %25, %cst_12 [0] : vector<8x32xf32> to vector<32xf32>
    %27 = vector.shape_cast %26 : vector<32xf32> to vector<1x32xf32>
    %28 = tpu.concatenate %18, %27 in 0 : vector<1x32xf32>, vector<1x32xf32> -> vector<2x32xf32>
    %c0_13 = arith.constant 0 : index
    %c0_14 = arith.constant 0 : index
    %29 = vector.load %arg1[%c0_13, %c0_14] : memref<8x8xf32, #tpu.memory_space<vmem>>, vector<8x8xf32>
    %30 = tpu.iota {dimensions = array<i32: 0>} : vector<8x8xi32>
    %31 = tpu.iota {dimensions = array<i32: 1>} : vector<8x8xi32>
    %32 = arith.cmpi eq, %30, %31 : vector<8x8xi32>
    %33 = arith.extui %32 : vector<8x8xi1> to vector<8x8xi32>
    %34 = arith.sitofp %33 : vector<8x8xi32> to vector<8x8xf32>
    %35 = arith.addf %29, %34 : vector<8x8xf32>
    %cst_15 = arith.constant dense<0.000000e+00> : vector<8xf32>
    %36 = vector.multi_reduction <add>, %35, %cst_15 [1] : vector<8x8xf32> to vector<8xf32>
    %37 = vector.shape_cast %36 : vector<8xf32> to vector<8x1xf32>
    %cst_16 = arith.constant dense<0.000000e+00> : vector<8xf32>
    %38 = vector.multi_reduction <add>, %35, %cst_16 [0] : vector<8x8xf32> to vector<8xf32>
    %39 = vector.shape_cast %38 : vector<8xf32> to vector<1x8xf32>
    %cst_17 = arith.constant 9.99999996E-13 : f32
    %40 = vector.broadcast %cst_17 : f32 to vector<8x1xf32>
    %41 = arith.maximumf %37, %40 : vector<8x1xf32>
    %42 = math.rsqrt %41 : vector<8x1xf32>
    %43 = vector.broadcast %42 : vector<8x1xf32> to vector<8x8xf32>
    %44 = arith.mulf %35, %43 : vector<8x8xf32>
    %cst_18 = arith.constant 9.99999996E-13 : f32
    %45 = vector.broadcast %cst_18 : f32 to vector<1x8xf32>
    %46 = arith.maximumf %39, %45 : vector<1x8xf32>
    %47 = math.rsqrt %46 : vector<1x8xf32>
    %48 = vector.broadcast %47 : vector<1x8xf32> to vector<8x8xf32>
    %49 = arith.mulf %44, %48 : vector<8x8xf32>
    %c0_19 = arith.constant 0 : index
    %c0_20 = arith.constant 0 : index
    %50 = vector.load %arg3[%c0_19, %c0_20] : memref<32x32xf32, #tpu.memory_space<vmem>>, vector<32x32xf32>
    %c0_21 = arith.constant 0 : index
    %c0_22 = arith.constant 0 : index
    %51 = vector.load %arg4[%c0_21, %c0_22] : memref<1x32xf32, #tpu.memory_space<vmem>>, vector<1x32xf32>
    %cst_23 = arith.constant dense<0.000000e+00> : vector<8x32xf32>
    %52 = tpu.matmul %0, %50, %cst_23 {dimension_numbers = #tpu.dot_dimension_numbers<[1], [0], [0], [1], [0, 0, 1, 1], [], []>} : vector<8x32xf32>, vector<32x32xf32>, vector<8x32xf32> -> vector<8x32xf32>
    %cst_24 = arith.constant dense<0.000000e+00> : vector<8x32xf32>
    %53 = tpu.matmul %49, %52, %cst_24 {dimension_numbers = #tpu.dot_dimension_numbers<[1], [0], [0], [1], [0, 0, 1, 1], [], []>} : vector<8x8xf32>, vector<8x32xf32>, vector<8x32xf32> -> vector<8x32xf32>
    %54 = vector.broadcast %51 : vector<1x32xf32> to vector<8x32xf32>
    %55 = arith.addf %53, %54 : vector<8x32xf32>
    %cst_25 = arith.constant 0.000000e+00 : f32
    %56 = vector.broadcast %cst_25 : f32 to vector<8x32xf32>
    %57 = arith.maximumf %55, %56 : vector<8x32xf32>
    %c0_26 = arith.constant 0 : index
    %c0_27 = arith.constant 0 : index
    %58 = vector.load %arg7[%c0_26, %c0_27] : memref<8x32xf32, #tpu.memory_space<vmem>>, vector<8x32xf32>
    tpu.vector_store %arg7[%c0_26, %c0_27], %57 {strides = array<i32>} : memref<8x32xf32, #tpu.memory_space<vmem>>, vector<8x32xf32>,
    %cst_28 = arith.constant 9.99999996E-13 : f32
    %59 = vector.broadcast %cst_28 : f32 to vector<8x1xf32>
    %60 = arith.maximumf %37, %59 : vector<8x1xf32>
    %61 = vector.broadcast %60 : vector<8x1xf32> to vector<8x8xf32>
    %62 = arith.divf %35, %61 : vector<8x8xf32>
    %cst_29 = arith.constant dense<0.000000e+00> : vector<8x32xf32>
    %63 = tpu.matmul %62, %57, %cst_29 {dimension_numbers = #tpu.dot_dimension_numbers<[1], [0], [0], [1], [0, 0, 1, 1], [], []>} : vector<8x8xf32>, vector<8x32xf32>, vector<8x32xf32> -> vector<8x32xf32>
    %64 = arith.subf %57, %63 : vector<8x32xf32>
    %65 = math.absf %64 : vector<8x32xf32>
    %cst_30 = arith.constant 1.000000e+00 : f32
    %66 = vector.broadcast %cst_30 : f32 to vector<1x32xf32>
    %cst_31 = arith.constant dense<0.000000e+00> : vector<1x8xf32>
    %67 = tpu.matmul %66, %65, %cst_31 {dimension_numbers = #tpu.dot_dimension_numbers<[1], [1], [0], [0], [0, 0, 1, 0], [], []>} : vector<1x32xf32>, vector<8x32xf32>, vector<1x8xf32> -> vector<1x8xf32>
    %c0_32 = arith.constant 0 : index
    %c0_33 = arith.constant 0 : index
    %68 = vector.load %arg8[%c0_32, %c0_33] : memref<1x8xf32, #tpu.memory_space<vmem>>, vector<1x8xf32>
    tpu.vector_store %arg8[%c0_32, %c0_33], %67 {strides = array<i32>} : memref<1x8xf32, #tpu.memory_space<vmem>>, vector<1x8xf32>,
    %c0_34 = arith.constant 0 : index
    %c0_35 = arith.constant 0 : index
    %69 = vector.load %arg9[%c0_34, %c0_35] : memref<2x32xf32, #tpu.memory_space<vmem>>, vector<2x32xf32>
    tpu.vector_store %arg9[%c0_34, %c0_35], %28 {strides = array<i32>} : memref<2x32xf32, #tpu.memory_space<vmem>>, vector<2x32xf32>,
    %c0_36 = arith.constant 0 : index
    %c0_37 = arith.constant 0 : index
    %70 = vector.load %arg10[%c0_36, %c0_37] : memref<2x32xf32, #tpu.memory_space<vmem>>, vector<2x32xf32>
    tpu.vector_store %arg10[%c0_36, %c0_37], %9 {strides = array<i32>} : memref<2x32xf32, #tpu.memory_space<vmem>>, vector<2x32xf32>,
    return
  }
  func.func @transform_0(%arg0: i32) -> (i32, i32) {
    %c0_i32 = arith.constant 0 : i32
    %c0_i32_0 = arith.constant 0 : i32
    %c0_i32_1 = arith.constant 0 : i32
    return %c0_i32, %c0_i32_0 : i32, i32
  }
  func.func @transform_1(%arg0: i32) -> (i32, i32) {
    %c0_i32 = arith.constant 0 : i32
    %c0_i32_0 = arith.constant 0 : i32
    %c0_i32_1 = arith.constant 0 : i32
    return %c0_i32, %c0_i32_0 : i32, i32
  }
  func.func @transform_2(%arg0: i32) -> (i32, i32) {
    %c0_i32 = arith.constant 0 : i32
    %c0_i32_0 = arith.constant 0 : i32
    %c0_i32_1 = arith.constant 0 : i32
    return %c0_i32, %c0_i32_0 : i32, i32
  }
  func.func @transform_3(%arg0: i32) -> (i32, i32) {
    %c0_i32 = arith.constant 0 : i32
    %c0_i32_0 = arith.constant 0 : i32
    %c0_i32_1 = arith.constant 0 : i32
    return %c0_i32, %c0_i32_0 : i32, i32
  }
  func.func @transform_4(%arg0: i32) -> (i32, i32) {
    %c0_i32 = arith.constant 0 : i32
    %c0_i32_0 = arith.constant 0 : i32
    %c0_i32_1 = arith.constant 0 : i32
    return %c0_i32, %c0_i32_0 : i32, i32
  }
  func.func @transform_5(%arg0: i32) -> (i32, i32) {
    %c0_i32 = arith.constant 0 : i32
    %c0_i32_0 = arith.constant 0 : i32
    %c0_i32_1 = arith.constant 0 : i32
    return %c0_i32, %c0_i32_0 : i32, i32
  }
  func.func @transform_6(%arg0: i32) -> (i32, i32) {
    %c0_i32 = arith.constant 0 : i32
    %c0_i32_0 = arith.constant 0 : i32
    %c0_i32_1 = arith.constant 0 : i32
    return %c0_i32, %c0_i32_0 : i32, i32
  }
  func.func @transform_7(%arg0: i32) -> (i32, i32) {
    %c0_i32 = arith.constant 0 : i32
    %c0_i32_0 = arith.constant 0 : i32
    %c0_i32_1 = arith.constant 0 : i32
    return %c0_i32, %c0_i32_0 : i32, i32
  }
  func.func @transform_8(%arg0: i32) -> (i32, i32) {
    %c0_i32 = arith.constant 0 : i32
    %c0_i32_0 = arith.constant 0 : i32
    %c0_i32_1 = arith.constant 0 : i32
    return %c0_i32, %c0_i32_0 : i32, i32
  }
  func.func @transform_9(%arg0: i32) -> (i32, i32) {
    %c0_i32 = arith.constant 0 : i32
    %c0_i32_0 = arith.constant 0 : i32
    %c0_i32_1 = arith.constant 0 : i32
    return %c0_i32, %c0_i32_0 : i32, i32
  }
}

module attributes {stable_mosaic.version = 11 : i64} {
  func.func @structure_learning_kernel(%arg0: i32, %arg1: memref<4x32xf32, #tpu.memory_space<vmem>>, %arg2: memref<4x4xf32, #tpu.memory_space<vmem>>, %arg3: memref<1x32xf32, #tpu.memory_space<vmem>>, %arg4: memref<1x32xf32, #tpu.memory_space<vmem>>, %arg5: memref<4x4xf32, #tpu.memory_space<vmem>>, %arg6: memref<4x4xf32, #tpu.memory_space<vmem>>) attributes {dimension_semantics = [#tpu.dimension_semantics<arbitrary>], iteration_bounds = array<i64: 1>, scalar_prefetch = 0 : i64, scratch_operands = 0 : i64, tpu.core_type = #tpu.core_type<tc>, window_params = [{pipeline_mode = #tpu.pipeline_mode<synchronous>, transform_indices = @transform_0, window_bounds = array<i64: 4, 32>}, {pipeline_mode = #tpu.pipeline_mode<synchronous>, transform_indices = @transform_1, window_bounds = array<i64: 4, 4>}, {pipeline_mode = #tpu.pipeline_mode<synchronous>, transform_indices = @transform_2, window_bounds = array<i64: 1, 32>}, {pipeline_mode = #tpu.pipeline_mode<synchronous>, transform_indices = @transform_3, window_bounds = array<i64: 1, 32>}, {pipeline_mode = #tpu.pipeline_mode<synchronous>, transform_indices = @transform_4, window_bounds = array<i64: 4, 4>}, {pipeline_mode = #tpu.pipeline_mode<synchronous>, transform_indices = @transform_5, window_bounds = array<i64: 4, 4>}]} {
    %c0 = arith.constant 0 : index
    %c0_0 = arith.constant 0 : index
    %0 = vector.load %arg1[%c0, %c0_0] : memref<4x32xf32, #tpu.memory_space<vmem>>, vector<4x32xf32>
    %c0_1 = arith.constant 0 : index
    %c0_2 = arith.constant 0 : index
    %1 = vector.load %arg3[%c0_1, %c0_2] : memref<1x32xf32, #tpu.memory_space<vmem>>, vector<1x32xf32>
    %2 = vector.broadcast %1 : vector<1x32xf32> to vector<4x32xf32>
    %3 = arith.mulf %0, %2 : vector<4x32xf32>
    %cst = arith.constant dense<0.000000e+00> : vector<4xf32>
    %4 = vector.multi_reduction <add>, %3, %cst [1] : vector<4x32xf32> to vector<4xf32>
    %5 = vector.shape_cast %4 : vector<4xf32> to vector<4x1xf32>
    %c0_3 = arith.constant 0 : index
    %c0_4 = arith.constant 0 : index
    %6 = vector.load %arg4[%c0_3, %c0_4] : memref<1x32xf32, #tpu.memory_space<vmem>>, vector<1x32xf32>
    %cst_5 = arith.constant dense<0.000000e+00> : vector<1x4xf32>
    %7 = tpu.matmul %6, %0, %cst_5 {dimension_numbers = #tpu.dot_dimension_numbers<[1], [1], [0], [0], [0, 0, 1, 0], [], []>} : vector<1x32xf32>, vector<4x32xf32>, vector<1x4xf32> -> vector<1x4xf32>
    %8 = vector.broadcast %5 : vector<4x1xf32> to vector<4x4xf32>
    %9 = vector.broadcast %7 : vector<1x4xf32> to vector<4x4xf32>
    %10 = arith.addf %8, %9 : vector<4x4xf32>
    %cst_6 = arith.constant 0.000000e+00 : f32
    %11 = vector.broadcast %cst_6 : f32 to vector<4x4xf32>
    %12 = arith.cmpf oge, %10, %11 : vector<4x4xf32>
    %cst_7 = arith.constant 2.000000e-01 : f32
    %13 = vector.broadcast %cst_7 : f32 to vector<4x4xf32>
    %14 = arith.mulf %13, %10 : vector<4x4xf32>
    %15 = arith.select %12, %10, %14 : vector<4x4xi1>, vector<4x4xf32>
    %c0_8 = arith.constant 0 : index
    %c0_9 = arith.constant 0 : index
    %16 = vector.load %arg2[%c0_8, %c0_9] : memref<4x4xf32, #tpu.memory_space<vmem>>, vector<4x4xf32>
    %cst_10 = arith.constant 1.000000e+00 : f32
    %17 = vector.broadcast %cst_10 : f32 to vector<4x4xf32>
    %18 = arith.mulf %17, %16 : vector<4x4xf32>
    %19 = arith.addf %15, %18 : vector<4x4xf32>
    %c0_11 = arith.constant 0 : index
    %c0_12 = arith.constant 0 : index
    %20 = vector.load %arg5[%c0_11, %c0_12] : memref<4x4xf32, #tpu.memory_space<vmem>>, vector<4x4xf32>
    %cst_13 = arith.constant 0.000000e+00 : f32
    %21 = vector.broadcast %cst_13 : f32 to vector<4x4xf32>
    %22 = arith.cmpf ogt, %20, %21 : vector<4x4xf32>
    %cst_14 = arith.constant -1.000000e+30 : f32
    %23 = vector.broadcast %cst_14 : f32 to vector<4x4xf32>
    %24 = arith.select %22, %19, %23 : vector<4x4xi1>, vector<4x4xf32>
    %cst_15 = arith.constant dense<0xFF800000> : vector<4xf32>
    %25 = vector.multi_reduction <maximumf>, %24, %cst_15 [1] : vector<4x4xf32> to vector<4xf32>
    %26 = vector.shape_cast %25 : vector<4xf32> to vector<4x1xf32>
    %27 = vector.broadcast %26 : vector<4x1xf32> to vector<4x4xf32>
    %28 = arith.subf %24, %27 : vector<4x4xf32>
    %29 = math.exp %28 : vector<4x4xf32>
    %cst_16 = arith.constant dense<0.000000e+00> : vector<4xf32>
    %30 = vector.multi_reduction <add>, %29, %cst_16 [1] : vector<4x4xf32> to vector<4xf32>
    %31 = vector.shape_cast %30 : vector<4xf32> to vector<4x1xf32>
    %cst_17 = arith.constant 9.99999996E-13 : f32
    %32 = vector.broadcast %cst_17 : f32 to vector<4x1xf32>
    %33 = arith.maximumf %31, %32 : vector<4x1xf32>
    %34 = vector.broadcast %33 : vector<4x1xf32> to vector<4x4xf32>
    %35 = arith.divf %29, %34 : vector<4x4xf32>
    %36 = arith.mulf %35, %20 : vector<4x4xf32>
    %c0_18 = arith.constant 0 : index
    %c0_19 = arith.constant 0 : index
    %37 = vector.load %arg6[%c0_18, %c0_19] : memref<4x4xf32, #tpu.memory_space<vmem>>, vector<4x4xf32>
    tpu.vector_store %arg6[%c0_18, %c0_19], %36 {strides = array<i32>} : memref<4x4xf32, #tpu.memory_space<vmem>>, vector<4x4xf32>,
    return
  }
  func.func @transform_0(%arg0: i32) -> (i32, i32) {
    %c0_i32 = arith.constant 0 : i32
    %c0_i32_0 = arith.constant 0 : i32
    %c0_i32_1 = arith.constant 0 : i32
    return %c0_i32, %c0_i32_0 : i32, i32
  }
  func.func @transform_1(%arg0: i32) -> (i32, i32) {
    %c0_i32 = arith.constant 0 : i32
    %c0_i32_0 = arith.constant 0 : i32
    %c0_i32_1 = arith.constant 0 : i32
    return %c0_i32, %c0_i32_0 : i32, i32
  }
  func.func @transform_2(%arg0: i32) -> (i32, i32) {
    %c0_i32 = arith.constant 0 : i32
    %c0_i32_0 = arith.constant 0 : i32
    %c0_i32_1 = arith.constant 0 : i32
    return %c0_i32, %c0_i32_0 : i32, i32
  }
  func.func @transform_3(%arg0: i32) -> (i32, i32) {
    %c0_i32 = arith.constant 0 : i32
    %c0_i32_0 = arith.constant 0 : i32
    %c0_i32_1 = arith.constant 0 : i32
    return %c0_i32, %c0_i32_0 : i32, i32
  }
  func.func @transform_4(%arg0: i32) -> (i32, i32) {
    %c0_i32 = arith.constant 0 : i32
    %c0_i32_0 = arith.constant 0 : i32
    %c0_i32_1 = arith.constant 0 : i32
    return %c0_i32, %c0_i32_0 : i32, i32
  }
  func.func @transform_5(%arg0: i32) -> (i32, i32) {
    %c0_i32 = arith.constant 0 : i32
    %c0_i32_0 = arith.constant 0 : i32
    %c0_i32_1 = arith.constant 0 : i32
    return %c0_i32, %c0_i32_0 : i32, i32
  }
}

module attributes {stable_mosaic.version = 11 : i64} {
  func.func @tail_kernel(%arg0: i32, %arg1: memref<2x32xf32, #tpu.memory_space<vmem>>, %arg2: memref<2x32xf32, #tpu.memory_space<vmem>>, %arg3: memref<4x32xf32, #tpu.memory_space<vmem>>, %arg4: memref<4x4xf32, #tpu.memory_space<vmem>>, %arg5: memref<2x4xf32, #tpu.memory_space<vmem>>, %arg6: memref<4x2xf32, #tpu.memory_space<vmem>>, %arg7: memref<32x32xf32, #tpu.memory_space<vmem>>, %arg8: memref<1x32xf32, #tpu.memory_space<vmem>>, %arg9: memref<32x32xf32, #tpu.memory_space<vmem>>, %arg10: memref<32x32xf32, #tpu.memory_space<vmem>>, %arg11: memref<1x32xf32, #tpu.memory_space<vmem>>, %arg12: memref<32x16xf32, #tpu.memory_space<vmem>>, %arg13: memref<1x16xf32, #tpu.memory_space<vmem>>, %arg14: memref<16x4xf32, #tpu.memory_space<vmem>>, %arg15: memref<1x4xf32, #tpu.memory_space<vmem>>, %arg16: memref<2x4xf32, #tpu.memory_space<vmem>>) attributes {dimension_semantics = [#tpu.dimension_semantics<arbitrary>], iteration_bounds = array<i64: 1>, scalar_prefetch = 0 : i64, scratch_operands = 0 : i64, tpu.core_type = #tpu.core_type<tc>, window_params = [{pipeline_mode = #tpu.pipeline_mode<synchronous>, transform_indices = @transform_0, window_bounds = array<i64: 2, 32>}, {pipeline_mode = #tpu.pipeline_mode<synchronous>, transform_indices = @transform_1, window_bounds = array<i64: 2, 32>}, {pipeline_mode = #tpu.pipeline_mode<synchronous>, transform_indices = @transform_2, window_bounds = array<i64: 4, 32>}, {pipeline_mode = #tpu.pipeline_mode<synchronous>, transform_indices = @transform_3, window_bounds = array<i64: 4, 4>}, {pipeline_mode = #tpu.pipeline_mode<synchronous>, transform_indices = @transform_4, window_bounds = array<i64: 2, 4>}, {pipeline_mode = #tpu.pipeline_mode<synchronous>, transform_indices = @transform_5, window_bounds = array<i64: 4, 2>}, {pipeline_mode = #tpu.pipeline_mode<synchronous>, transform_indices = @transform_6, window_bounds = array<i64: 32, 32>}, {pipeline_mode = #tpu.pipeline_mode<synchronous>, transform_indices = @transform_7, window_bounds = array<i64: 1, 32>}, {pipeline_mode = #tpu.pipeline_mode<synchronous>, transform_indices = @transform_8, window_bounds = array<i64: 32, 32>}, {pipeline_mode = #tpu.pipeline_mode<synchronous>, transform_indices = @transform_9, window_bounds = array<i64: 32, 32>}, {pipeline_mode = #tpu.pipeline_mode<synchronous>, transform_indices = @transform_10, window_bounds = array<i64: 1, 32>}, {pipeline_mode = #tpu.pipeline_mode<synchronous>, transform_indices = @transform_11, window_bounds = array<i64: 32, 16>}, {pipeline_mode = #tpu.pipeline_mode<synchronous>, transform_indices = @transform_12, window_bounds = array<i64: 1, 16>}, {pipeline_mode = #tpu.pipeline_mode<synchronous>, transform_indices = @transform_13, window_bounds = array<i64: 16, 4>}, {pipeline_mode = #tpu.pipeline_mode<synchronous>, transform_indices = @transform_14, window_bounds = array<i64: 1, 4>}, {pipeline_mode = #tpu.pipeline_mode<synchronous>, transform_indices = @transform_15, window_bounds = array<i64: 2, 4>}]} {
    %c0 = arith.constant 0 : index
    %c0_0 = arith.constant 0 : index
    %0 = vector.load %arg3[%c0, %c0_0] : memref<4x32xf32, #tpu.memory_space<vmem>>, vector<4x32xf32>
    %c0_1 = arith.constant 0 : index
    %c0_2 = arith.constant 0 : index
    %1 = vector.load %arg5[%c0_1, %c0_2] : memref<2x4xf32, #tpu.memory_space<vmem>>, vector<2x4xf32>
    %c0_3 = arith.constant 0 : index
    %c0_4 = arith.constant 0 : index
    %2 = vector.load %arg6[%c0_3, %c0_4] : memref<4x2xf32, #tpu.memory_space<vmem>>, vector<4x2xf32>
    %cst = arith.constant dense<0.000000e+00> : vector<2xf32>
    %3 = vector.multi_reduction <add>, %1, %cst [1] : vector<2x4xf32> to vector<2xf32>
    %4 = vector.shape_cast %3 : vector<2xf32> to vector<2x1xf32>
    %cst_5 = arith.constant 1.000000e+00 : f32
    %5 = vector.broadcast %cst_5 : f32 to vector<2x1xf32>
    %6 = arith.maximumf %4, %5 : vector<2x1xf32>
    %cst_6 = arith.constant dense<0.000000e+00> : vector<2x32xf32>
    %7 = tpu.matmul %1, %0, %cst_6 {dimension_numbers = #tpu.dot_dimension_numbers<[1], [0], [0], [1], [0, 0, 1, 1], [], []>} : vector<2x4xf32>, vector<4x32xf32>, vector<2x32xf32> -> vector<2x32xf32>
    %8 = vector.broadcast %6 : vector<2x1xf32> to vector<2x32xf32>
    %9 = arith.divf %7, %8 : vector<2x32xf32>
    %10 = vector.extract_strided_slice %2 {offsets = [0, 0], sizes = [4, 1], strides = [1, 1]} : vector<4x2xf32> to vector<4x1xf32>
    %cst_7 = arith.constant 0.000000e+00 : f32
    %11 = vector.broadcast %cst_7 : f32 to vector<4x1xf32>
    %12 = arith.cmpf ogt, %10, %11 : vector<4x1xf32>
    %cst_8 = arith.constant -1.000000e+30 : f32
    %13 = vector.shape_cast %12 : vector<4x1xi1> to vector<4x1xi1>
    %14 = vector.broadcast %13 : vector<4x1xi1> to vector<4x32xi1>
    %15 = vector.broadcast %cst_8 : f32 to vector<4x32xf32>
    %16 = arith.select %14, %0, %15 : vector<4x32xi1>, vector<4x32xf32>
    %cst_9 = arith.constant dense<0xFF800000> : vector<32xf32>
    %17 = vector.multi_reduction <maximumf>, %16, %cst_9 [0] : vector<4x32xf32> to vector<32xf32>
    %18 = vector.shape_cast %17 : vector<32xf32> to vector<1x32xf32>
    %19 = vector.extract_strided_slice %2 {offsets = [0, 1], sizes = [4, 1], strides = [1, 1]} : vector<4x2xf32> to vector<4x1xf32>
    %cst_10 = arith.constant 0.000000e+00 : f32
    %20 = vector.broadcast %cst_10 : f32 to vector<4x1xf32>
    %21 = arith.cmpf ogt, %19, %20 : vector<4x1xf32>
    %cst_11 = arith.constant -1.000000e+30 : f32
    %22 = vector.shape_cast %21 : vector<4x1xi1> to vector<4x1xi1>
    %23 = vector.broadcast %22 : vector<4x1xi1> to vector<4x32xi1>
    %24 = vector.broadcast %cst_11 : f32 to vector<4x32xf32>
    %25 = arith.select %23, %0, %24 : vector<4x32xi1>, vector<4x32xf32>
    %cst_12 = arith.constant dense<0xFF800000> : vector<32xf32>
    %26 = vector.multi_reduction <maximumf>, %25, %cst_12 [0] : vector<4x32xf32> to vector<32xf32>
    %27 = vector.shape_cast %26 : vector<32xf32> to vector<1x32xf32>
    %28 = tpu.concatenate %18, %27 in 0 : vector<1x32xf32>, vector<1x32xf32> -> vector<2x32xf32>
    %c0_13 = arith.constant 0 : index
    %c0_14 = arith.constant 0 : index
    %29 = vector.load %arg4[%c0_13, %c0_14] : memref<4x4xf32, #tpu.memory_space<vmem>>, vector<4x4xf32>
    %30 = tpu.iota {dimensions = array<i32: 0>} : vector<4x4xi32>
    %31 = tpu.iota {dimensions = array<i32: 1>} : vector<4x4xi32>
    %32 = arith.cmpi eq, %30, %31 : vector<4x4xi32>
    %33 = arith.extui %32 : vector<4x4xi1> to vector<4x4xi32>
    %34 = arith.sitofp %33 : vector<4x4xi32> to vector<4x4xf32>
    %35 = arith.addf %29, %34 : vector<4x4xf32>
    %cst_15 = arith.constant dense<0.000000e+00> : vector<4xf32>
    %36 = vector.multi_reduction <add>, %35, %cst_15 [1] : vector<4x4xf32> to vector<4xf32>
    %37 = vector.shape_cast %36 : vector<4xf32> to vector<4x1xf32>
    %cst_16 = arith.constant dense<0.000000e+00> : vector<4xf32>
    %38 = vector.multi_reduction <add>, %35, %cst_16 [0] : vector<4x4xf32> to vector<4xf32>
    %39 = vector.shape_cast %38 : vector<4xf32> to vector<1x4xf32>
    %cst_17 = arith.constant 9.99999996E-13 : f32
    %40 = vector.broadcast %cst_17 : f32 to vector<4x1xf32>
    %41 = arith.maximumf %37, %40 : vector<4x1xf32>
    %42 = math.rsqrt %41 : vector<4x1xf32>
    %43 = vector.broadcast %42 : vector<4x1xf32> to vector<4x4xf32>
    %44 = arith.mulf %35, %43 : vector<4x4xf32>
    %cst_18 = arith.constant 9.99999996E-13 : f32
    %45 = vector.broadcast %cst_18 : f32 to vector<1x4xf32>
    %46 = arith.maximumf %39, %45 : vector<1x4xf32>
    %47 = math.rsqrt %46 : vector<1x4xf32>
    %48 = vector.broadcast %47 : vector<1x4xf32> to vector<4x4xf32>
    %49 = arith.mulf %44, %48 : vector<4x4xf32>
    %c0_19 = arith.constant 0 : index
    %c0_20 = arith.constant 0 : index
    %50 = vector.load %arg7[%c0_19, %c0_20] : memref<32x32xf32, #tpu.memory_space<vmem>>, vector<32x32xf32>
    %c0_21 = arith.constant 0 : index
    %c0_22 = arith.constant 0 : index
    %51 = vector.load %arg8[%c0_21, %c0_22] : memref<1x32xf32, #tpu.memory_space<vmem>>, vector<1x32xf32>
    %cst_23 = arith.constant dense<0.000000e+00> : vector<4x32xf32>
    %52 = tpu.matmul %0, %50, %cst_23 {dimension_numbers = #tpu.dot_dimension_numbers<[1], [0], [0], [1], [0, 0, 1, 1], [], []>} : vector<4x32xf32>, vector<32x32xf32>, vector<4x32xf32> -> vector<4x32xf32>
    %cst_24 = arith.constant dense<0.000000e+00> : vector<4x32xf32>
    %53 = tpu.matmul %49, %52, %cst_24 {dimension_numbers = #tpu.dot_dimension_numbers<[1], [0], [0], [1], [0, 0, 1, 1], [], []>} : vector<4x4xf32>, vector<4x32xf32>, vector<4x32xf32> -> vector<4x32xf32>
    %54 = vector.broadcast %51 : vector<1x32xf32> to vector<4x32xf32>
    %55 = arith.addf %53, %54 : vector<4x32xf32>
    %cst_25 = arith.constant 0.000000e+00 : f32
    %56 = vector.broadcast %cst_25 : f32 to vector<4x32xf32>
    %57 = arith.maximumf %55, %56 : vector<4x32xf32>
    %c0_26 = arith.constant 0 : index
    %c0_27 = arith.constant 0 : index
    %58 = vector.load %arg5[%c0_26, %c0_27] : memref<2x4xf32, #tpu.memory_space<vmem>>, vector<2x4xf32>
    %c0_28 = arith.constant 0 : index
    %c0_29 = arith.constant 0 : index
    %59 = vector.load %arg6[%c0_28, %c0_29] : memref<4x2xf32, #tpu.memory_space<vmem>>, vector<4x2xf32>
    %cst_30 = arith.constant dense<0.000000e+00> : vector<2xf32>
    %60 = vector.multi_reduction <add>, %58, %cst_30 [1] : vector<2x4xf32> to vector<2xf32>
    %61 = vector.shape_cast %60 : vector<2xf32> to vector<2x1xf32>
    %cst_31 = arith.constant 1.000000e+00 : f32
    %62 = vector.broadcast %cst_31 : f32 to vector<2x1xf32>
    %63 = arith.maximumf %61, %62 : vector<2x1xf32>
    %cst_32 = arith.constant dense<0.000000e+00> : vector<2x32xf32>
    %64 = tpu.matmul %58, %57, %cst_32 {dimension_numbers = #tpu.dot_dimension_numbers<[1], [0], [0], [1], [0, 0, 1, 1], [], []>} : vector<2x4xf32>, vector<4x32xf32>, vector<2x32xf32> -> vector<2x32xf32>
    %65 = vector.broadcast %63 : vector<2x1xf32> to vector<2x32xf32>
    %66 = arith.divf %64, %65 : vector<2x32xf32>
    %67 = vector.extract_strided_slice %59 {offsets = [0, 0], sizes = [4, 1], strides = [1, 1]} : vector<4x2xf32> to vector<4x1xf32>
    %cst_33 = arith.constant 0.000000e+00 : f32
    %68 = vector.broadcast %cst_33 : f32 to vector<4x1xf32>
    %69 = arith.cmpf ogt, %67, %68 : vector<4x1xf32>
    %cst_34 = arith.constant -1.000000e+30 : f32
    %70 = vector.shape_cast %69 : vector<4x1xi1> to vector<4x1xi1>
    %71 = vector.broadcast %70 : vector<4x1xi1> to vector<4x32xi1>
    %72 = vector.broadcast %cst_34 : f32 to vector<4x32xf32>
    %73 = arith.select %71, %57, %72 : vector<4x32xi1>, vector<4x32xf32>
    %cst_35 = arith.constant dense<0xFF800000> : vector<32xf32>
    %74 = vector.multi_reduction <maximumf>, %73, %cst_35 [0] : vector<4x32xf32> to vector<32xf32>
    %75 = vector.shape_cast %74 : vector<32xf32> to vector<1x32xf32>
    %76 = vector.extract_strided_slice %59 {offsets = [0, 1], sizes = [4, 1], strides = [1, 1]} : vector<4x2xf32> to vector<4x1xf32>
    %cst_36 = arith.constant 0.000000e+00 : f32
    %77 = vector.broadcast %cst_36 : f32 to vector<4x1xf32>
    %78 = arith.cmpf ogt, %76, %77 : vector<4x1xf32>
    %cst_37 = arith.constant -1.000000e+30 : f32
    %79 = vector.shape_cast %78 : vector<4x1xi1> to vector<4x1xi1>
    %80 = vector.broadcast %79 : vector<4x1xi1> to vector<4x32xi1>
    %81 = vector.broadcast %cst_37 : f32 to vector<4x32xf32>
    %82 = arith.select %80, %57, %81 : vector<4x32xi1>, vector<4x32xf32>
    %cst_38 = arith.constant dense<0xFF800000> : vector<32xf32>
    %83 = vector.multi_reduction <maximumf>, %82, %cst_38 [0] : vector<4x32xf32> to vector<32xf32>
    %84 = vector.shape_cast %83 : vector<32xf32> to vector<1x32xf32>
    %85 = tpu.concatenate %75, %84 in 0 : vector<1x32xf32>, vector<1x32xf32> -> vector<2x32xf32>
    %c0_39 = arith.constant 0 : index
    %c0_40 = arith.constant 0 : index
    %86 = vector.load %arg1[%c0_39, %c0_40] : memref<2x32xf32, #tpu.memory_space<vmem>>, vector<2x32xf32>
    %cst_41 = arith.constant 0.000000e+00 : f32
    %87 = vector.broadcast %cst_41 : f32 to vector<2x32xf32>
    %88 = arith.maximumf %86, %87 : vector<2x32xf32>
    %cst_42 = arith.constant 0.000000e+00 : f32
    %89 = vector.broadcast %cst_42 : f32 to vector<2x32xf32>
    %90 = arith.maximumf %28, %89 : vector<2x32xf32>
    %91 = arith.addf %88, %90 : vector<2x32xf32>
    %cst_43 = arith.constant 0.000000e+00 : f32
    %92 = vector.broadcast %cst_43 : f32 to vector<2x32xf32>
    %93 = arith.maximumf %85, %92 : vector<2x32xf32>
    %94 = arith.addf %91, %93 : vector<2x32xf32>
    %c0_44 = arith.constant 0 : index
    %c0_45 = arith.constant 0 : index
    %95 = vector.load %arg2[%c0_44, %c0_45] : memref<2x32xf32, #tpu.memory_space<vmem>>, vector<2x32xf32>
    %cst_46 = arith.constant 0.000000e+00 : f32
    %96 = vector.broadcast %cst_46 : f32 to vector<2x32xf32>
    %97 = arith.maximumf %95, %96 : vector<2x32xf32>
    %cst_47 = arith.constant 0.000000e+00 : f32
    %98 = vector.broadcast %cst_47 : f32 to vector<2x32xf32>
    %99 = arith.maximumf %9, %98 : vector<2x32xf32>
    %100 = arith.addf %97, %99 : vector<2x32xf32>
    %cst_48 = arith.constant 0.000000e+00 : f32
    %101 = vector.broadcast %cst_48 : f32 to vector<2x32xf32>
    %102 = arith.maximumf %66, %101 : vector<2x32xf32>
    %103 = arith.addf %100, %102 : vector<2x32xf32>
    %c0_49 = arith.constant 0 : index
    %c0_50 = arith.constant 0 : index
    %104 = vector.load %arg9[%c0_49, %c0_50] : memref<32x32xf32, #tpu.memory_space<vmem>>, vector<32x32xf32>
    %cst_51 = arith.constant dense<0.000000e+00> : vector<2x32xf32>
    %105 = tpu.matmul %94, %104, %cst_51 {dimension_numbers = #tpu.dot_dimension_numbers<[1], [0], [0], [1], [0, 0, 1, 1], [], []>} : vector<2x32xf32>, vector<32x32xf32>, vector<2x32xf32> -> vector<2x32xf32>
    %c0_52 = arith.constant 0 : index
    %c0_53 = arith.constant 0 : index
    %106 = vector.load %arg10[%c0_52, %c0_53] : memref<32x32xf32, #tpu.memory_space<vmem>>, vector<32x32xf32>
    %cst_54 = arith.constant dense<0.000000e+00> : vector<2x32xf32>
    %107 = tpu.matmul %103, %106, %cst_54 {dimension_numbers = #tpu.dot_dimension_numbers<[1], [0], [0], [1], [0, 0, 1, 1], [], []>} : vector<2x32xf32>, vector<32x32xf32>, vector<2x32xf32> -> vector<2x32xf32>
    %108 = arith.addf %105, %107 : vector<2x32xf32>
    %c0_55 = arith.constant 0 : index
    %c0_56 = arith.constant 0 : index
    %109 = vector.load %arg11[%c0_55, %c0_56] : memref<1x32xf32, #tpu.memory_space<vmem>>, vector<1x32xf32>
    %110 = vector.broadcast %109 : vector<1x32xf32> to vector<2x32xf32>
    %111 = arith.addf %108, %110 : vector<2x32xf32>
    %cst_57 = arith.constant 0.000000e+00 : f32
    %112 = vector.broadcast %cst_57 : f32 to vector<2x32xf32>
    %113 = arith.maximumf %111, %112 : vector<2x32xf32>
    %c0_58 = arith.constant 0 : index
    %c0_59 = arith.constant 0 : index
    %114 = vector.load %arg12[%c0_58, %c0_59] : memref<32x16xf32, #tpu.memory_space<vmem>>, vector<32x16xf32>
    %cst_60 = arith.constant dense<0.000000e+00> : vector<2x16xf32>
    %115 = tpu.matmul %113, %114, %cst_60 {dimension_numbers = #tpu.dot_dimension_numbers<[1], [0], [0], [1], [0, 0, 1, 1], [], []>} : vector<2x32xf32>, vector<32x16xf32>, vector<2x16xf32> -> vector<2x16xf32>
    %c0_61 = arith.constant 0 : index
    %c0_62 = arith.constant 0 : index
    %116 = vector.load %arg13[%c0_61, %c0_62] : memref<1x16xf32, #tpu.memory_space<vmem>>, vector<1x16xf32>
    %117 = vector.broadcast %116 : vector<1x16xf32> to vector<2x16xf32>
    %118 = arith.addf %115, %117 : vector<2x16xf32>
    %cst_63 = arith.constant 0.000000e+00 : f32
    %119 = vector.broadcast %cst_63 : f32 to vector<2x16xf32>
    %120 = arith.maximumf %118, %119 : vector<2x16xf32>
    %c0_64 = arith.constant 0 : index
    %c0_65 = arith.constant 0 : index
    %121 = vector.load %arg14[%c0_64, %c0_65] : memref<16x4xf32, #tpu.memory_space<vmem>>, vector<16x4xf32>
    %cst_66 = arith.constant dense<0.000000e+00> : vector<2x4xf32>
    %122 = tpu.matmul %120, %121, %cst_66 {dimension_numbers = #tpu.dot_dimension_numbers<[1], [0], [0], [1], [0, 0, 1, 1], [], []>} : vector<2x16xf32>, vector<16x4xf32>, vector<2x4xf32> -> vector<2x4xf32>
    %c0_67 = arith.constant 0 : index
    %c0_68 = arith.constant 0 : index
    %123 = vector.load %arg15[%c0_67, %c0_68] : memref<1x4xf32, #tpu.memory_space<vmem>>, vector<1x4xf32>
    %124 = vector.broadcast %123 : vector<1x4xf32> to vector<2x4xf32>
    %125 = arith.addf %122, %124 : vector<2x4xf32>
    %cst_69 = arith.constant dense<0xFF800000> : vector<2xf32>
    %126 = vector.multi_reduction <maximumf>, %125, %cst_69 [1] : vector<2x4xf32> to vector<2xf32>
    %127 = vector.shape_cast %126 : vector<2xf32> to vector<2x1xf32>
    %128 = vector.broadcast %127 : vector<2x1xf32> to vector<2x4xf32>
    %129 = arith.subf %125, %128 : vector<2x4xf32>
    %130 = math.exp %129 : vector<2x4xf32>
    %cst_70 = arith.constant dense<0.000000e+00> : vector<2xf32>
    %131 = vector.multi_reduction <add>, %130, %cst_70 [1] : vector<2x4xf32> to vector<2xf32>
    %132 = vector.shape_cast %131 : vector<2xf32> to vector<2x1xf32>
    %133 = math.log %132 : vector<2x1xf32>
    %134 = vector.broadcast %133 : vector<2x1xf32> to vector<2x4xf32>
    %135 = arith.subf %129, %134 : vector<2x4xf32>
    %c0_71 = arith.constant 0 : index
    %c0_72 = arith.constant 0 : index
    %136 = vector.load %arg16[%c0_71, %c0_72] : memref<2x4xf32, #tpu.memory_space<vmem>>, vector<2x4xf32>
    tpu.vector_store %arg16[%c0_71, %c0_72], %135 {strides = array<i32>} : memref<2x4xf32, #tpu.memory_space<vmem>>, vector<2x4xf32>,
    return
  }
  func.func @transform_0(%arg0: i32) -> (i32, i32) {
    %c0_i32 = arith.constant 0 : i32
    %c0_i32_0 = arith.constant 0 : i32
    %c0_i32_1 = arith.constant 0 : i32
    return %c0_i32, %c0_i32_0 : i32, i32
  }
  func.func @transform_1(%arg0: i32) -> (i32, i32) {
    %c0_i32 = arith.constant 0 : i32
    %c0_i32_0 = arith.constant 0 : i32
    %c0_i32_1 = arith.constant 0 : i32
    return %c0_i32, %c0_i32_0 : i32, i32
  }
  func.func @transform_2(%arg0: i32) -> (i32, i32) {
    %c0_i32 = arith.constant 0 : i32
    %c0_i32_0 = arith.constant 0 : i32
    %c0_i32_1 = arith.constant 0 : i32
    return %c0_i32, %c0_i32_0 : i32, i32
  }
  func.func @transform_3(%arg0: i32) -> (i32, i32) {
    %c0_i32 = arith.constant 0 : i32
    %c0_i32_0 = arith.constant 0 : i32
    %c0_i32_1 = arith.constant 0 : i32
    return %c0_i32, %c0_i32_0 : i32, i32
  }
  func.func @transform_4(%arg0: i32) -> (i32, i32) {
    %c0_i32 = arith.constant 0 : i32
    %c0_i32_0 = arith.constant 0 : i32
    %c0_i32_1 = arith.constant 0 : i32
    return %c0_i32, %c0_i32_0 : i32, i32
  }
  func.func @transform_5(%arg0: i32) -> (i32, i32) {
    %c0_i32 = arith.constant 0 : i32
    %c0_i32_0 = arith.constant 0 : i32
    %c0_i32_1 = arith.constant 0 : i32
    return %c0_i32, %c0_i32_0 : i32, i32
  }
  func.func @transform_6(%arg0: i32) -> (i32, i32) {
    %c0_i32 = arith.constant 0 : i32
    %c0_i32_0 = arith.constant 0 : i32
    %c0_i32_1 = arith.constant 0 : i32
    return %c0_i32, %c0_i32_0 : i32, i32
  }
  func.func @transform_7(%arg0: i32) -> (i32, i32) {
    %c0_i32 = arith.constant 0 : i32
    %c0_i32_0 = arith.constant 0 : i32
    %c0_i32_1 = arith.constant 0 : i32
    return %c0_i32, %c0_i32_0 : i32, i32
  }
  func.func @transform_8(%arg0: i32) -> (i32, i32) {
    %c0_i32 = arith.constant 0 : i32
    %c0_i32_0 = arith.constant 0 : i32
    %c0_i32_1 = arith.constant 0 : i32
    return %c0_i32, %c0_i32_0 : i32, i32
  }
  func.func @transform_9(%arg0: i32) -> (i32, i32) {
    %c0_i32 = arith.constant 0 : i32
    %c0_i32_0 = arith.constant 0 : i32
    %c0_i32_1 = arith.constant 0 : i32
    return %c0_i32, %c0_i32_0 : i32, i32
  }
  func.func @transform_10(%arg0: i32) -> (i32, i32) {
    %c0_i32 = arith.constant 0 : i32
    %c0_i32_0 = arith.constant 0 : i32
    %c0_i32_1 = arith.constant 0 : i32
    return %c0_i32, %c0_i32_0 : i32, i32
  }
  func.func @transform_11(%arg0: i32) -> (i32, i32) {
    %c0_i32 = arith.constant 0 : i32
    %c0_i32_0 = arith.constant 0 : i32
    %c0_i32_1 = arith.constant 0 : i32
    return %c0_i32, %c0_i32_0 : i32, i32
  }
  func.func @transform_12(%arg0: i32) -> (i32, i32) {
    %c0_i32 = arith.constant 0 : i32
    %c0_i32_0 = arith.constant 0 : i32
    %c0_i32_1 = arith.constant 0 : i32
    return %c0_i32, %c0_i32_0 : i32, i32
  }
  func.func @transform_13(%arg0: i32) -> (i32, i32) {
    %c0_i32 = arith.constant 0 : i32
    %c0_i32_0 = arith.constant 0 : i32
    %c0_i32_1 = arith.constant 0 : i32
    return %c0_i32, %c0_i32_0 : i32, i32
  }
  func.func @transform_14(%arg0: i32) -> (i32, i32) {
    %c0_i32 = arith.constant 0 : i32
    %c0_i32_0 = arith.constant 0 : i32
    %c0_i32_1 = arith.constant 0 : i32
    return %c0_i32, %c0_i32_0 : i32, i32
  }
  func.func @transform_15(%arg0: i32) -> (i32, i32) {
    %c0_i32 = arith.constant 0 : i32
    %c0_i32_0 = arith.constant 0 : i32
    %c0_i32_1 = arith.constant 0 : i32
    return %c0_i32, %c0_i32_0 : i32, i32
  }
}

</mosaic_0001>

<llo_original>
// kernel: squeeze.2
$region0: #{squeeze.2}
  %s0 = inlined_call_operand.vmem [shape: f32[16], index: 0, kind: input, shape index: {}]
  %s1 = inlined_call_operand.vmem [shape: f32[2,8], index: 1, kind: output, shape index: {}]
  $region1: #{squeeze.2} parent=0
    #allocation0 [shape = 'u8[4096]{0}', space=vmem, size = 0x1000, scoped, tag = 'scoped mem for output reshape']
    #allocation1 [shape = 'u8[4096]{0}', space=vmem, size = 0x1000, scoped, tag = 'scoped mem for input reshape']
    %s3 = sshll.u32 1, 1
    %s4 = ssub.s32 %s3, 1
    %v5 = vld [vmem:[%s0] sm:%s4]
    %6 = vst [vmem:[#allocation1] sm:%s4] %v5
    %v7 = vld [vmem:[#allocation1] sm:$0x1]
    %vm8 = vcmask 64512
    %9 = vst.msk [vmem:[#allocation0] sm:$0x1] %vm8, %v7
    %v10 = vld [vmem:[#allocation1] sm:$0x1]
    %11 = vrot.lane.b32.xlu0 %v10, 120
    %v12 = vpop.permute.xlu0 %11
    %vm13 = vcmask 64512
    %s14 = scalar_lea.vmem [#allocation0], 1
    %15 = vst.msk [vmem:[%s14] sm:$0x1] %vm13, %v12
    %s17 = sshll.u32 1, 2
    %s18 = ssub.s32 %s17, 1
    %v20 = vld [vmem:[#allocation0] sm:%s18]
    %s21 = sshll.u32 1, 2
    %s22 = ssub.s32 %s21, 1
    %23 = vst [vmem:[%s1] sm:%s22] %v20

// kernel: squeeze.3
$region0: #{squeeze.3}
  %s0 = inlined_call_operand.vmem [shape: f32[8], index: 0, kind: input, shape index: {}]
  %s1 = inlined_call_operand.vmem [shape: f32[2,4], index: 1, kind: output, shape index: {}]
  $region1: #{squeeze.3} parent=0
    #allocation0 [shape = 'u8[4096]{0}', space=vmem, size = 0x1000, scoped, tag = 'scoped mem for output reshape']
    #allocation1 [shape = 'u8[4096]{0}', space=vmem, size = 0x1000, scoped, tag = 'scoped mem for input reshape']
    %s3 = sshll.u32 1, 1
    %s4 = ssub.s32 %s3, 1
    %v5 = vld [vmem:[%s0] sm:%s4]
    %6 = vst [vmem:[#allocation1] sm:%s4] %v5
    %v7 = vld [vmem:[#allocation1] sm:$0x1]
    %vm8 = vcmask 31744
    %9 = vst.msk [vmem:[#allocation0] sm:$0x1] %vm8, %v7
    %v10 = vld [vmem:[#allocation1] sm:$0x1]
    %11 = vrot.lane.b32.xlu0 %v10, 124
    %v12 = vpop.permute.xlu0 %11
    %vm13 = vcmask 31744
    %s14 = scalar_lea.vmem [#allocation0], 1
    %15 = vst.msk [vmem:[%s14] sm:$0x1] %vm13, %v12
    %s17 = sshll.u32 1, 2
    %s18 = ssub.s32 %s17, 1
    %v20 = vld [vmem:[#allocation0] sm:%s18]
    %s21 = sshll.u32 1, 2
    %s22 = ssub.s32 %s21, 1
    %23 = vst [vmem:[%s1] sm:%s22] %v20

// kernel: hgp_forward.5
$region0: #{hgp_forward.5}
  #allocation0 [shape = 'u32[]', space=smem, size = 0x4, offset = 0x4, fixed_abs, tag = 'smem constant byte address 0x4 - core index']
  #allocation1 [shape = 'u32[144,128]{1,0:T(1,128)}', space=vmem, size = 0x12000, scoped, tag = 'internal scratch']
  %s0 = inlined_call_operand.vmem [shape: f32[16,16], index: 0, kind: input, shape index: {}]
  %s1 = inlined_call_operand.vmem [shape: f32[16,4], index: 1, kind: input, shape index: {}]
  %s2 = inlined_call_operand.vmem [shape: f32[4,32], index: 2, kind: input, shape index: {}]
  %s3 = inlined_call_operand.vmem [shape: f32[1,32], index: 3, kind: input, shape index: {}]
  %s4 = inlined_call_operand.vmem [shape: f32[16,32], index: 4, kind: output, shape index: {0}]
  %s5 = inlined_call_operand.vmem [shape: f32[1,16], index: 5, kind: output, shape index: {1}]
  %6 = xla_tuple %s4, %s5
  %s7 = sld [smem:[#allocation0]]
  $region34: #{hgp_forward.5} parent=0
    _
  %s9 = ssub.s32 1, %s7
  %s10 = scalar_select 0, %s9, %s7
  // Predicated region
  $region2: #{hgp_forward.5} parent=0 // pred_check
    _
  $region3: #{hgp_forward.5} parent=0 // pred_check_branch
    %12 = sbr.rel (0) target = $region5
  $region4: #{hgp_forward.5} parent=0 // pred_region
    _
  $region5: #{hgp_forward.5} parent=0 // pred_fallthru
    _
  // Predicated region
  $region6: #{hgp_forward.5} parent=0 // pred_check
    _
  $region7: #{hgp_forward.5} parent=0 // pred_check_branch
    %14 = sbr.rel (0) target = $region9
  $region8: #{hgp_forward.5} parent=0 // pred_region
    _
  $region9: #{hgp_forward.5} parent=0 // pred_fallthru
    _
  // Predicated region
  $region10: #{hgp_forward.5} parent=0 // pred_check
    _
  $region11: #{hgp_forward.5} parent=0 // pred_check_branch
    %16 = sbr.rel (0) target = $region13
  $region12: #{hgp_forward.5} parent=0 // pred_region
    _
  $region13: #{hgp_forward.5} parent=0 // pred_fallthru
    _
  // Predicated region
  $region14: #{hgp_forward.5} parent=0 // pred_check
    _
  $region15: #{hgp_forward.5} parent=0 // pred_check_branch
    %18 = sbr.rel (0) target = $region17
  $region16: #{hgp_forward.5} parent=0 // pred_region
    _
  $region17: #{hgp_forward.5} parent=0 // pred_fallthru
    _
  %v19 = vld [vmem:[%s0] sm:$0xff]
  %v20 = vld [vmem:[%s0 + $0x8] sm:$0xff]
  %v21 = vlaneseq
  %v22 = vshrl.u32 %v21, 7
  %v23 = vadd.s32 %v22, 8
  %v24 = vlaneseq
  %v25 = vand.u32 %v24, 127
  %vm26 = vcmp.eq.s32.totalorder %v22, %v25
  %vm27 = vcmp.eq.s32.totalorder %v23, %v25
  %v28 = vsel %vm26, 1, 0
  %v29 = vsel %vm27, 1, 0
  %v30 = vcvt.s32.f32 %v28
  %v31 = vcvt.s32.f32 %v29
  %v32 = vadd.f32 %v19, %v30
  %v33 = vadd.f32 %v20, %v31
  %vm34 = vcmask 130048
  %v35 = vsel %vm34, %v32, 0.0
  %36 = vadd.xlane.f32.xlu0 %v35
  %v37 = vpop.xlane.xlu0 %36
  %v38 = vsel %vm34, %v33, 0.0
  %39 = vadd.xlane.f32.xlu0 %v38
  %v40 = vpop.xlane.xlu0 %39
  %v41 = vadd.f32 %v35, %v38
  %v42 = vrot.slane %v41, 4
  %v43 = vadd.f32 %v41, %v42
  %v44 = vrot.slane %v43, 2
  %v45 = vadd.f32 %v43, %v44
  %v46 = vrot.slane %v45, 1
  %v47 = vadd.f32 %v45, %v46
  %v48 = vmax.f32 %v37, 1e-12
  %v49 = vmax.f32 %v40, 1e-12
  %v50 = vrsqrt.pop %v48
  %v51 = vrsqrt.pop %v49
  %v52 = vmul.f32 %v32, %v50
  %v53 = vmul.f32 %v33, %v51
  %v54 = vmax.f32 %v47, 1e-12
  %v55 = vrsqrt.pop %v54
  %v56 = vmul.f32 %v52, %v55
  %v57 = vmul.f32 %v53, %v55
  %v58 = vld [vmem:[%s1] sm:$0xff]
  %v59 = vld [vmem:[%s1 + $0x8] sm:$0xff]
  %v60 = vld [vmem:[%s2] sm:$0xf]
  %v61 = vld [vmem:[%s3] sm:$0x1]
  %vm62 = vcmask 31744
  %v64 = vsel %vm62, %v58, 0
  %v67 = vsel %vm62, %v59, 0
  %vm69 = vcmask 1043456
  %v71 = vsel %vm69, %v60, 0
  %73 = vmatprep.subr.mxu0 0.0
  %74 = vmatpush1.msra.mxu0 0.0
  %75 = vmatprep.subr.mxu0 0.0
  %76 = vmatpush1.msra.mxu0 0.0
  %77 = vmatprep.subr.mxu0 0.0
  %78 = vmatpush1.msra.mxu0 0.0
  %79 = vmatprep.subr.mxu0 0.0
  %80 = vmatpush1.msra.mxu0 0.0
  %81 = vmatprep.subr.mxu0 0.0
  %82 = vmatpush1.msra.mxu0 0.0
  %83 = vmatprep.subr.mxu0 0.0
  %84 = vmatpush1.msra.mxu0 0.0
  %85 = vmatprep.subr.mxu0 0.0
  %86 = vmatpush1.msra.mxu0 0.0
  %87 = vmatprep.subr.mxu0 0.0
  %88 = vmatpush1.msra.mxu0 0.0
  %89 = vmatprep.subr.mxu0 0.0
  %90 = vmatpush1.msra.mxu0 0.0
  %91 = vmatprep.subr.mxu0 0.0
  %92 = vmatpush1.msra.mxu0 0.0
  %93 = vmatprep.subr.mxu0 0.0
  %94 = vmatpush1.msra.mxu0 0.0
  %95 = vmatprep.subr.mxu0 0.0
  %96 = vmatpush1.msra.mxu0 0.0
  %97 = vmatprep.subr.mxu0 0.0
  %98 = vmatpush1.msra.mxu0 0.0
  %99 = vmatprep.subr.mxu0 0.0
  %100 = vmatpush1.msra.mxu0 0.0
  %101 = vmatprep.subr.mxu0 0.0
  %102 = vmatpush1.msra.mxu0 0.0
  %103 = vmatprep.subr.mxu0 0.0
  %104 = vmatpush1.msra.mxu0 %v71
  %105 = vmatprep.subr.mxu0 0.0
  %106 = vmatpush2.msra.mxu0 0.0
  %107 = vmatprep.subr.mxu0 0.0
  %108 = vmatpush2.msra.mxu0 0.0
  %109 = vmatprep.subr.mxu0 0.0
  %110 = vmatpush2.msra.mxu0 0.0
  %111 = vmatprep.subr.mxu0 0.0
  %112 = vmatpush2.msra.mxu0 0.0
  %113 = vmatprep.subr.mxu0 0.0
  %114 = vmatpush2.msra.mxu0 0.0
  %115 = vmatprep.subr.mxu0 0.0
  %116 = vmatpush2.msra.mxu0 0.0
  %117 = vmatprep.subr.mxu0 0.0
  %118 = vmatpush2.msra.mxu0 0.0
  %119 = vmatprep.subr.mxu0 0.0
  %120 = vmatpush2.msra.mxu0 0.0
  %121 = vmatprep.subr.mxu0 0.0
  %122 = vmatpush2.msra.mxu0 0.0
  %123 = vmatprep.subr.mxu0 0.0
  %124 = vmatpush2.msra.mxu0 0.0
  %125 = vmatprep.subr.mxu0 0.0
  %126 = vmatpush2.msra.mxu0 0.0
  %127 = vmatprep.subr.mxu0 0.0
  %128 = vmatpush2.msra.mxu0 0.0
  %129 = vmatprep.subr.mxu0 0.0
  %130 = vmatpush2.msra.mxu0 0.0
  %131 = vmatprep.subr.mxu0 0.0
  %132 = vmatpush2.msra.mxu0 0.0
  %133 = vmatprep.subr.mxu0 0.0
  %134 = vmatpush2.msra.mxu0 0.0
  %135 = vmatprep.subr.mxu0 0.0
  %136 = vmatpush2.msra.mxu0 0.0
  %137 = vmatprep.mubr.f32.mxu0 0.0
  %138 = vmatmul.mubr.f32.gmra.mxu0 %v64
  %v139 = vpop.f32.mrf.mxu0
  %v140 = vadd.f32 0.0, %v139
  %v141 = vpop.f32.mrf.mxu0
  %142 = vmatprep.mubr.f32.mxu0 0.0
  %143 = vmatmul.mubr.f32.gmra.mxu0 %v67
  %v144 = vpop.f32.mrf.mxu0
  %v145 = vadd.f32 0.0, %v144
  %v146 = vpop.f32.mrf.mxu0
  %147 = vdwg.mxu0
  %v149 = vlaneseq
  %v150 = vshrl.u32 %v149, 7
  %v151 = vsub.s32 0, %v150
  %v152 = vrot.slane %v61, %v151
  %v155 = vsel %vm34, %v56, 0
  %v158 = vsel %vm34, %v57, 0
  %160 = vmatprep.subr.mxu0 0.0
  %161 = vmatpush1.msra.mxu0 0.0
  %162 = vmatprep.subr.mxu0 0.0
  %163 = vmatpush1.msra.mxu0 0.0
  %164 = vmatprep.subr.mxu0 0.0
  %165 = vmatpush1.msra.mxu0 0.0
  %166 = vmatprep.subr.mxu0 0.0
  %167 = vmatpush1.msra.mxu0 0.0
  %168 = vmatprep.subr.mxu0 0.0
  %169 = vmatpush1.msra.mxu0 0.0
  %170 = vmatprep.subr.mxu0 0.0
  %171 = vmatpush1.msra.mxu0 0.0
  %172 = vmatprep.subr.mxu0 0.0
  %173 = vmatpush1.msra.mxu0 0.0
  %174 = vmatprep.subr.mxu0 0.0
  %175 = vmatpush1.msra.mxu0 0.0
  %176 = vmatprep.subr.mxu0 0.0
  %177 = vmatpush1.msra.mxu0 0.0
  %178 = vmatprep.subr.mxu0 0.0
  %179 = vmatpush1.msra.mxu0 0.0
  %180 = vmatprep.subr.mxu0 0.0
  %181 = vmatpush1.msra.mxu0 0.0
  %182 = vmatprep.subr.mxu0 0.0
  %183 = vmatpush1.msra.mxu0 0.0
  %184 = vmatprep.subr.mxu0 0.0
  %185 = vmatpush1.msra.mxu0 0.0
  %186 = vmatprep.subr.mxu0 0.0
  %187 = vmatpush1.msra.mxu0 0.0
  %188 = vmatprep.subr.mxu0 0.0
  %189 = vmatpush1.msra.mxu0 %v145
  %190 = vmatprep.subr.mxu0 0.0
  %191 = vmatpush1.msra.mxu0 %v140
  %192 = vmatprep.subr.mxu0 0.0
  %193 = vmatpush2.msra.mxu0 0.0
  %194 = vmatprep.subr.mxu0 0.0
  %195 = vmatpush2.msra.mxu0 0.0
  %196 = vmatprep.subr.mxu0 0.0
  %197 = vmatpush2.msra.mxu0 0.0
  %198 = vmatprep.subr.mxu0 0.0
  %199 = vmatpush2.msra.mxu0 0.0
  %200 = vmatprep.subr.mxu0 0.0
  %201 = vmatpush2.msra.mxu0 0.0
  %202 = vmatprep.subr.mxu0 0.0
  %203 = vmatpush2.msra.mxu0 0.0
  %204 = vmatprep.subr.mxu0 0.0
  %205 = vmatpush2.msra.mxu0 0.0
  %206 = vmatprep.subr.mxu0 0.0
  %207 = vmatpush2.msra.mxu0 0.0
  %208 = vmatprep.subr.mxu0 0.0
  %209 = vmatpush2.msra.mxu0 0.0
  %210 = vmatprep.subr.mxu0 0.0
  %211 = vmatpush2.msra.mxu0 0.0
  %212 = vmatprep.subr.mxu0 0.0
  %213 = vmatpush2.msra.mxu0 0.0
  %214 = vmatprep.subr.mxu0 0.0
  %215 = vmatpush2.msra.mxu0 0.0
  %216 = vmatprep.subr.mxu0 0.0
  %217 = vmatpush2.msra.mxu0 0.0
  %218 = vmatprep.subr.mxu0 0.0
  %219 = vmatpush2.msra.mxu0 0.0
  %220 = vmatprep.subr.mxu0 0.0
  %221 = vmatpush2.msra.mxu0 0.0
  %222 = vmatprep.subr.mxu0 0.0
  %223 = vmatpush2.msra.mxu0 0.0
  %224 = vmatprep.mubr.f32.mxu0 0.0
  %225 = vmatmul.mubr.f32.gmra.mxu0 %v155
  %v226 = vpop.f32.mrf.mxu0
  %v227 = vadd.f32 %v152, %v226
  %v228 = vpop.f32.mrf.mxu0
  %229 = vmatprep.mubr.f32.mxu0 0.0
  %230 = vmatmul.mubr.f32.gmra.mxu0 %v158
  %v231 = vpop.f32.mrf.mxu0
  %v232 = vadd.f32 %v152, %v231
  %v233 = vpop.f32.mrf.mxu0
  %234 = vdwg.mxu0
  %v235 = vmax.f32 %v227, 0.0
  %v236 = vmax.f32 %v232, 0.0
  %vm237 = vcmask 261120
  %238 = vst.msk [vmem:[%s4] sm:$0xff] %vm237, %v235
  %239 = vst.msk [vmem:[%s4 + $0x8] sm:$0xff] %vm237, %v236
  %v240 = vrcp.pop %v48
  %v241 = vmul.f32 %v32, %v240
  %v242 = vrcp.pop %v49
  %v243 = vmul.f32 %v33, %v242
  %v245 = vsel %vm34, %v241, 0
  %v248 = vsel %vm34, %v243, 0
  %250 = vmatprep.subr.mxu0 0.0
  %251 = vmatpush1.msra.mxu0 0.0
  %252 = vmatprep.subr.mxu0 0.0
  %253 = vmatpush1.msra.mxu0 0.0
  %254 = vmatprep.subr.mxu0 0.0
  %255 = vmatpush1.msra.mxu0 0.0
  %256 = vmatprep.subr.mxu0 0.0
  %257 = vmatpush1.msra.mxu0 0.0
  %258 = vmatprep.subr.mxu0 0.0
  %259 = vmatpush1.msra.mxu0 0.0
  %260 = vmatprep.subr.mxu0 0.0
  %261 = vmatpush1.msra.mxu0 0.0
  %262 = vmatprep.subr.mxu0 0.0
  %263 = vmatpush1.msra.mxu0 0.0
  %264 = vmatprep.subr.mxu0 0.0
  %265 = vmatpush1.msra.mxu0 0.0
  %266 = vmatprep.subr.mxu0 0.0
  %267 = vmatpush1.msra.mxu0 0.0
  %268 = vmatprep.subr.mxu0 0.0
  %269 = vmatpush1.msra.mxu0 0.0
  %270 = vmatprep.subr.mxu0 0.0
  %271 = vmatpush1.msra.mxu0 0.0
  %272 = vmatprep.subr.mxu0 0.0
  %273 = vmatpush1.msra.mxu0 0.0
  %274 = vmatprep.subr.mxu0 0.0
  %275 = vmatpush1.msra.mxu0 0.0
  %276 = vmatprep.subr.mxu0 0.0
  %277 = vmatpush1.msra.mxu0 0.0
  %278 = vmatprep.subr.mxu0 0.0
  %279 = vmatpush1.msra.mxu0 %v236
  %280 = vmatprep.subr.mxu0 0.0
  %281 = vmatpush1.msra.mxu0 %v235
  %282 = vmatprep.subr.mxu0 0.0
  %283 = vmatpush2.msra.mxu0 0.0
  %284 = vmatprep.subr.mxu0 0.0
  %285 = vmatpush2.msra.mxu0 0.0
  %286 = vmatprep.subr.mxu0 0.0
  %287 = vmatpush2.msra.mxu0 0.0
  %288 = vmatprep.subr.mxu0 0.0
  %289 = vmatpush2.msra.mxu0 0.0
  %290 = vmatprep.subr.mxu0 0.0
  %291 = vmatpush2.msra.mxu0 0.0
  %292 = vmatprep.subr.mxu0 0.0
  %293 = vmatpush2.msra.mxu0 0.0
  %294 = vmatprep.subr.mxu0 0.0
  %295 = vmatpush2.msra.mxu0 0.0
  %296 = vmatprep.subr.mxu0 0.0
  %297 = vmatpush2.msra.mxu0 0.0
  %298 = vmatprep.subr.mxu0 0.0
  %299 = vmatpush2.msra.mxu0 0.0
  %300 = vmatprep.subr.mxu0 0.0
  %301 = vmatpush2.msra.mxu0 0.0
  %302 = vmatprep.subr.mxu0 0.0
  %303 = vmatpush2.msra.mxu0 0.0
  %304 = vmatprep.subr.mxu0 0.0
  %305 = vmatpush2.msra.mxu0 0.0
  %306 = vmatprep.subr.mxu0 0.0
  %307 = vmatpush2.msra.mxu0 0.0
  %308 = vmatprep.subr.mxu0 0.0
  %309 = vmatpush2.msra.mxu0 0.0
  %310 = vmatprep.subr.mxu0 0.0
  %311 = vmatpush2.msra.mxu0 0.0
  %312 = vmatprep.subr.mxu0 0.0
  %313 = vmatpush2.msra.mxu0 0.0
  %314 = vmatprep.mubr.f32.mxu0 0.0
  %315 = vmatmul.mubr.f32.gmra.mxu0 %v245
  %v316 = vpop.f32.mrf.mxu0
  %v317 = vadd.f32 0.0, %v316
  %v318 = vpop.f32.mrf.mxu0
  %319 = vmatprep.mubr.f32.mxu0 0.0
  %320 = vmatmul.mubr.f32.gmra.mxu0 %v248
  %v321 = vpop.f32.mrf.mxu0
  %v322 = vadd.f32 0.0, %v321
  %v323 = vpop.f32.mrf.mxu0
  %324 = vdwg.mxu0
  %v325 = vsub.f32 %v235, %v317
  %v326 = vsub.f32 %v236, %v322
  %v327 = vand.u32 2147483647, %v325
  %v328 = vand.u32 2147483647, %v326
  %v330 = vsel %vm237, 1.0, 0
  %v333 = vsel %vm237, %v327, 0
  %v336 = vsel %vm237, %v328, 0
  %338 = vmatprep.subr.mxu0 0.0
  %339 = vmatpush1.xpose.msra.mxu0 0.0
  %340 = vmatprep.subr.mxu0 0.0
  %341 = vmatpush1.xpose.msra.mxu0 0.0
  %342 = vmatprep.subr.mxu0 0.0
  %343 = vmatpush1.xpose.msra.mxu0 0.0
  %344 = vmatprep.subr.mxu0 0.0
  %345 = vmatpush1.xpose.msra.mxu0 0.0
  %346 = vmatprep.subr.mxu0 0.0
  %347 = vmatpush1.xpose.msra.mxu0 0.0
  %348 = vmatprep.subr.mxu0 0.0
  %349 = vmatpush1.xpose.msra.mxu0 0.0
  %350 = vmatprep.subr.mxu0 0.0
  %351 = vmatpush1.xpose.msra.mxu0 0.0
  %352 = vmatprep.subr.mxu0 0.0
  %353 = vmatpush1.xpose.msra.mxu0 0.0
  %354 = vmatprep.subr.mxu0 0.0
  %355 = vmatpush1.xpose.msra.mxu0 0.0
  %356 = vmatprep.subr.mxu0 0.0
  %357 = vmatpush1.xpose.msra.mxu0 0.0
  %358 = vmatprep.subr.mxu0 0.0
  %359 = vmatpush1.xpose.msra.mxu0 0.0
  %360 = vmatprep.subr.mxu0 0.0
  %361 = vmatpush1.xpose.msra.mxu0 0.0
  %362 = vmatprep.subr.mxu0 0.0
  %363 = vmatpush1.xpose.msra.mxu0 0.0
  %364 = vmatprep.subr.mxu0 0.0
  %365 = vmatpush1.xpose.msra.mxu0 0.0
  %366 = vmatprep.subr.mxu0 0.0
  %367 = vmatpush1.xpose.msra.mxu0 %v336
  %368 = vmatprep.subr.mxu0 0.0
  %369 = vmatpush1.xpose.msra.mxu0 %v333
  %370 = vmatprep.subr.mxu0 0.0
  %371 = vmatpush2.xpose.msra.mxu0 0.0
  %372 = vmatprep.subr.mxu0 0.0
  %373 = vmatpush2.xpose.msra.mxu0 0.0
  %374 = vmatprep.subr.mxu0 0.0
  %375 = vmatpush2.xpose.msra.mxu0 0.0
  %376 = vmatprep.subr.mxu0 0.0
  %377 = vmatpush2.xpose.msra.mxu0 0.0
  %378 = vmatprep.subr.mxu0 0.0
  %379 = vmatpush2.xpose.msra.mxu0 0.0
  %380 = vmatprep.subr.mxu0 0.0
  %381 = vmatpush2.xpose.msra.mxu0 0.0
  %382 = vmatprep.subr.mxu0 0.0
  %383 = vmatpush2.xpose.msra.mxu0 0.0
  %384 = vmatprep.subr.mxu0 0.0
  %385 = vmatpush2.xpose.msra.mxu0 0.0
  %386 = vmatprep.subr.mxu0 0.0
  %387 = vmatpush2.xpose.msra.mxu0 0.0
  %388 = vmatprep.subr.mxu0 0.0
  %389 = vmatpush2.xpose.msra.mxu0 0.0
  %390 = vmatprep.subr.mxu0 0.0
  %391 = vmatpush2.xpose.msra.mxu0 0.0
  %392 = vmatprep.subr.mxu0 0.0
  %393 = vmatpush2.xpose.msra.mxu0 0.0
  %394 = vmatprep.subr.mxu0 0.0
  %395 = vmatpush2.xpose.msra.mxu0 0.0
  %396 = vmatprep.subr.mxu0 0.0
  %397 = vmatpush2.xpose.msra.mxu0 0.0
  %398 = vmatprep.subr.mxu0 0.0
  %399 = vmatpush2.xpose.msra.mxu0 0.0
  %400 = vmatprep.subr.mxu0 0.0
  %401 = vmatpush2.xpose.msra.mxu0 0.0
  %402 = vmatprep.mubr.f32.mxu0 0.0
  %403 = vmatmul.mubr.f32.gmra.mxu0 %v330
  %v404 = vpop.f32.mrf.mxu0
  %v405 = vadd.f32 0.0, %v404
  %v406 = vpop.f32.mrf.mxu0
  %407 = vdwg.mxu0
  %vm408 = vcmask 122880
  %409 = vst.msk [vmem:[%s5] sm:$0x1] %vm408, %v405
  // Predicated region
  $region18: #{hgp_forward.5} parent=0 // pred_check
    _
  $region19: #{hgp_forward.5} parent=0 // pred_check_branch
    %411 = sbr.rel (0) target = $region21
  $region20: #{hgp_forward.5} parent=0 // pred_region
    _
  $region21: #{hgp_forward.5} parent=0 // pred_fallthru
    _
  // Predicated region
  $region22: #{hgp_forward.5} parent=0 // pred_check
    _
  $region23: #{hgp_forward.5} parent=0 // pred_check_branch
    %413 = sbr.rel (0) target = $region25
  $region24: #{hgp_forward.5} parent=0 // pred_region
    _
  $region25: #{hgp_forward.5} parent=0 // pred_fallthru
    _
  // Predicated region
  $region26: #{hgp_forward.5} parent=0 // pred_check
    _
  $region27: #{hgp_forward.5} parent=0 // pred_check_branch
    %415 = sbr.rel (0) target = $region29
  $region28: #{hgp_forward.5} parent=0 // pred_region
    _
  $region29: #{hgp_forward.5} parent=0 // pred_fallthru
    _
  // Predicated region
  $region30: #{hgp_forward.5} parent=0 // pred_check
    _
  $region31: #{hgp_forward.5} parent=0 // pred_check_branch
    %417 = sbr.rel (0) target = $region33
  $region32: #{hgp_forward.5} parent=0 // pred_region
    _
  $region33: #{hgp_forward.5} parent=0 // pred_fallthru
    _

// kernel: hgp_forward.6
$region0: #{hgp_forward.6}
  #allocation0 [shape = 'u32[]', space=smem, size = 0x4, offset = 0x4, fixed_abs, tag = 'smem constant byte address 0x4 - core index']
  #allocation1 [shape = 'u32[144,128]{1,0:T(1,128)}', space=vmem, size = 0x12000, scoped, tag = 'internal scratch']
  %s0 = inlined_call_operand.vmem [shape: f32[8,32], index: 0, kind: input, shape index: {}]
  %s1 = inlined_call_operand.vmem [shape: f32[8,8], index: 1, kind: input, shape index: {}]
  %s2 = inlined_call_operand.vmem [shape: f32[1,32], index: 2, kind: input, shape index: {}]
  %s3 = inlined_call_operand.vmem [shape: f32[1,32], index: 3, kind: input, shape index: {}]
  %s4 = inlined_call_operand.vmem [shape: f32[8,8], index: 4, kind: input, shape index: {}]
  %s5 = inlined_call_operand.vmem [shape: f32[8,8], index: 5, kind: output, shape index: {}]
  %s6 = sld [smem:[#allocation0]]
  $region30: #{hgp_forward.6} parent=0
    _
  %s8 = ssub.s32 1, %s6
  %s9 = scalar_select 0, %s8, %s6
  // Predicated region
  $region2: #{hgp_forward.6} parent=0 // pred_check
    _
  $region3: #{hgp_forward.6} parent=0 // pred_check_branch
    %11 = sbr.rel (0) target = $region5
  $region4: #{hgp_forward.6} parent=0 // pred_region
    _
  $region5: #{hgp_forward.6} parent=0 // pred_fallthru
    _
  // Predicated region
  $region6: #{hgp_forward.6} parent=0 // pred_check
    _
  $region7: #{hgp_forward.6} parent=0 // pred_check_branch
    %13 = sbr.rel (0) target = $region9
  $region8: #{hgp_forward.6} parent=0 // pred_region
    _
  $region9: #{hgp_forward.6} parent=0 // pred_fallthru
    _
  // Predicated region
  $region10: #{hgp_forward.6} parent=0 // pred_check
    _
  $region11: #{hgp_forward.6} parent=0 // pred_check_branch
    %15 = sbr.rel (0) target = $region13
  $region12: #{hgp_forward.6} parent=0 // pred_region
    _
  $region13: #{hgp_forward.6} parent=0 // pred_fallthru
    _
  // Predicated region
  $region14: #{hgp_forward.6} parent=0 // pred_check
    _
  $region15: #{hgp_forward.6} parent=0 // pred_check_branch
    %17 = sbr.rel (0) target = $region17
  $region16: #{hgp_forward.6} parent=0 // pred_region
    _
  $region17: #{hgp_forward.6} parent=0 // pred_fallthru
    _
  // Predicated region
  $region18: #{hgp_forward.6} parent=0 // pred_check
    _
  $region19: #{hgp_forward.6} parent=0 // pred_check_branch
    %19 = sbr.rel (0) target = $region21
  $region20: #{hgp_forward.6} parent=0 // pred_region
    _
  $region21: #{hgp_forward.6} parent=0 // pred_fallthru
    _
  %v20 = vld [vmem:[%s0] sm:$0xff]
  %v21 = vld [vmem:[%s2] sm:$0x1]
  %v23 = vlaneseq
  %v24 = vshrl.u32 %v23, 7
  %v25 = vsub.s32 0, %v24
  %v26 = vrot.slane %v21, %v25
  %v28 = vmul.f32 %v20, %v26
  %vm29 = vcmask 261120
  %v30 = vsel %vm29, %v28, 0.0
  %31 = vadd.xlane.f32.xlu0 %v30
  %v32 = vpop.xlane.xlu0 %31
  %v33 = vld [vmem:[%s3] sm:$0x1]
  %v35 = vsel %vm29, %v33, 0
  %v38 = vsel %vm29, %v20, 0
  %40 = vmatprep.subr.mxu0 0.0
  %41 = vmatpush1.xpose.msra.mxu0 0.0
  %42 = vmatprep.subr.mxu0 0.0
  %43 = vmatpush1.xpose.msra.mxu0 0.0
  %44 = vmatprep.subr.mxu0 0.0
  %45 = vmatpush1.xpose.msra.mxu0 0.0
  %46 = vmatprep.subr.mxu0 0.0
  %47 = vmatpush1.xpose.msra.mxu0 0.0
  %48 = vmatprep.subr.mxu0 0.0
  %49 = vmatpush1.xpose.msra.mxu0 0.0
  %50 = vmatprep.subr.mxu0 0.0
  %51 = vmatpush1.xpose.msra.mxu0 0.0
  %52 = vmatprep.subr.mxu0 0.0
  %53 = vmatpush1.xpose.msra.mxu0 0.0
  %54 = vmatprep.subr.mxu0 0.0
  %55 = vmatpush1.xpose.msra.mxu0 0.0
  %56 = vmatprep.subr.mxu0 0.0
  %57 = vmatpush1.xpose.msra.mxu0 0.0
  %58 = vmatprep.subr.mxu0 0.0
  %59 = vmatpush1.xpose.msra.mxu0 0.0
  %60 = vmatprep.subr.mxu0 0.0
  %61 = vmatpush1.xpose.msra.mxu0 0.0
  %62 = vmatprep.subr.mxu0 0.0
  %63 = vmatpush1.xpose.msra.mxu0 0.0
  %64 = vmatprep.subr.mxu0 0.0
  %65 = vmatpush1.xpose.msra.mxu0 0.0
  %66 = vmatprep.subr.mxu0 0.0
  %67 = vmatpush1.xpose.msra.mxu0 0.0
  %68 = vmatprep.subr.mxu0 0.0
  %69 = vmatpush1.xpose.msra.mxu0 0.0
  %70 = vmatprep.subr.mxu0 0.0
  %71 = vmatpush1.xpose.msra.mxu0 %v38
  %72 = vmatprep.subr.mxu0 0.0
  %73 = vmatpush2.xpose.msra.mxu0 0.0
  %74 = vmatprep.subr.mxu0 0.0
  %75 = vmatpush2.xpose.msra.mxu0 0.0
  %76 = vmatprep.subr.mxu0 0.0
  %77 = vmatpush2.xpose.msra.mxu0 0.0
  %78 = vmatprep.subr.mxu0 0.0
  %79 = vmatpush2.xpose.msra.mxu0 0.0
  %80 = vmatprep.subr.mxu0 0.0
  %81 = vmatpush2.xpose.msra.mxu0 0.0
  %82 = vmatprep.subr.mxu0 0.0
  %83 = vmatpush2.xpose.msra.mxu0 0.0
  %84 = vmatprep.subr.mxu0 0.0
  %85 = vmatpush2.xpose.msra.mxu0 0.0
  %86 = vmatprep.subr.mxu0 0.0
  %87 = vmatpush2.xpose.msra.mxu0 0.0
  %88 = vmatprep.subr.mxu0 0.0
  %89 = vmatpush2.xpose.msra.mxu0 0.0
  %90 = vmatprep.subr.mxu0 0.0
  %91 = vmatpush2.xpose.msra.mxu0 0.0
  %92 = vmatprep.subr.mxu0 0.0
  %93 = vmatpush2.xpose.msra.mxu0 0.0
  %94 = vmatprep.subr.mxu0 0.0
  %95 = vmatpush2.xpose.msra.mxu0 0.0
  %96 = vmatprep.subr.mxu0 0.0
  %97 = vmatpush2.xpose.msra.mxu0 0.0
  %98 = vmatprep.subr.mxu0 0.0
  %99 = vmatpush2.xpose.msra.mxu0 0.0
  %100 = vmatprep.subr.mxu0 0.0
  %101 = vmatpush2.xpose.msra.mxu0 0.0
  %102 = vmatprep.subr.mxu0 0.0
  %103 = vmatpush2.xpose.msra.mxu0 0.0
  %104 = vmatprep.mubr.f32.mxu0 0.0
  %105 = vmatmul.mubr.f32.gmra.mxu0 %v35
  %v106 = vpop.f32.mrf.mxu0
  %v107 = vadd.f32 0.0, %v106
  %v108 = vpop.f32.mrf.mxu0
  %109 = vdwg.mxu0
  %v110 = vlaneseq
  %v111 = vshrl.u32 %v110, 7
  %v112 = vsub.s32 0, %v111
  %v113 = vrot.slane %v107, %v112
  %v114 = vadd.f32 %v32, %v113
  %vm115 = vcmp.ge.f32.partialorder %v114, 0.0
  %v116 = vmul.f32 %v114, 0.2
  %v117 = vsel %vm115, %v114, %v116
  %v118 = vld [vmem:[%s1] sm:$0xff]
  %v119 = vadd.f32 %v117, %v118
  %v120 = vld [vmem:[%s4] sm:$0xff]
  %vm121 = vcmp.gt.f32.partialorder %v120, 0.0
  %v122 = vsel %vm121, %v119, -1e+30
  %vm123 = vcmask 64512
  %v124 = vsel %vm123, %v122, -inf
  %125 = vmax.xlane.f32.xlu0 %v124
  %v126 = vpop.xlane.xlu0 %125
  %v127 = vsub.f32 %v122, %v126
  %v128 = vmul.f32 %v127, 1.442695
  %v129 = vpow.pop %v128
  %v130 = vsel %vm123, %v129, 0.0
  %131 = vadd.xlane.f32.xlu0 %v130
  %v132 = vpop.xlane.xlu0 %131
  %v133 = vmax.f32 %v132, 1e-12
  %v134 = vrcp.pop %v133
  %v135 = vmul.f32 %v129, %v134
  %v136 = vmul.f32 %v135, %v120
  %137 = vst.msk [vmem:[%s5] sm:$0xff] %vm123, %v136
  // Predicated region
  $region22: #{hgp_forward.6} parent=0 // pred_check
    _
  $region23: #{hgp_forward.6} parent=0 // pred_check_branch
    %139 = sbr.rel (0) target = $region25
  $region24: #{hgp_forward.6} parent=0 // pred_region
    _
  $region25: #{hgp_forward.6} parent=0 // pred_fallthru
    _
  // Predicated region
  $region26: #{hgp_forward.6} parent=0 // pred_check
    _
  $region27: #{hgp_forward.6} parent=0 // pred_check_branch
    %141 = sbr.rel (0) target = $region29
  $region28: #{hgp_forward.6} parent=0 // pred_region
    _
  $region29: #{hgp_forward.6} parent=0 // pred_fallthru
    _

// kernel: hgp_forward.7
$region0: #{hgp_forward.7}
  #allocation0 [shape = 'u32[]', space=smem, size = 0x4, offset = 0x4, fixed_abs, tag = 'smem constant byte address 0x4 - core index']
  #allocation1 [shape = 'u32[144,128]{1,0:T(1,128)}', space=vmem, size = 0x12000, scoped, tag = 'internal scratch']
  %s0 = inlined_call_operand.vmem [shape: f32[8,8], index: 0, kind: input, shape index: {}]
  %s1 = inlined_call_operand.vmem [shape: f32[8,32], index: 1, kind: input, shape index: {}]
  %s2 = inlined_call_operand.vmem [shape: f32[32,32], index: 2, kind: input, shape index: {}]
  %s3 = inlined_call_operand.vmem [shape: f32[1,32], index: 3, kind: input, shape index: {}]
  %s4 = inlined_call_operand.vmem [shape: f32[2,8], index: 4, kind: input, shape index: {}]
  %s5 = inlined_call_operand.vmem [shape: f32[8,2], index: 5, kind: input, shape index: {}]
  %s6 = inlined_call_operand.vmem [shape: f32[8,32], index: 6, kind: output, shape index: {0}]
  %s7 = inlined_call_operand.vmem [shape: f32[1,8], index: 7, kind: output, shape index: {1}]
  %s8 = inlined_call_operand.vmem [shape: f32[2,32], index: 8, kind: output, shape index: {2}]
  %s9 = inlined_call_operand.vmem [shape: f32[2,32], index: 9, kind: output, shape index: {3}]
  %10 = xla_tuple %s6, %s7, %s8, %s9
  %s11 = sld [smem:[#allocation0]]
  $region58: #{hgp_forward.7} parent=0
    _
  %s13 = ssub.s32 1, %s11
  %s14 = scalar_select 0, %s13, %s11
  // Predicated region
  $region2: #{hgp_forward.7} parent=0 // pred_check
    _
  $region3: #{hgp_forward.7} parent=0 // pred_check_branch
    %16 = sbr.rel (0) target = $region5
  $region4: #{hgp_forward.7} parent=0 // pred_region
    _
  $region5: #{hgp_forward.7} parent=0 // pred_fallthru
    _
  // Predicated region
  $region6: #{hgp_forward.7} parent=0 // pred_check
    _
  $region7: #{hgp_forward.7} parent=0 // pred_check_branch
    %18 = sbr.rel (0) target = $region9
  $region8: #{hgp_forward.7} parent=0 // pred_region
    _
  $region9: #{hgp_forward.7} parent=0 // pred_fallthru
    _
  // Predicated region
  $region10: #{hgp_forward.7} parent=0 // pred_check
    _
  $region11: #{hgp_forward.7} parent=0 // pred_check_branch
    %20 = sbr.rel (0) target = $region13
  $region12: #{hgp_forward.7} parent=0 // pred_region
    _
  $region13: #{hgp_forward.7} parent=0 // pred_fallthru
    _
  // Predicated region
  $region14: #{hgp_forward.7} parent=0 // pred_check
    _
  $region15: #{hgp_forward.7} parent=0 // pred_check_branch
    %22 = sbr.rel (0) target = $region17
  $region16: #{hgp_forward.7} parent=0 // pred_region
    _
  $region17: #{hgp_forward.7} parent=0 // pred_fallthru
    _
  // Predicated region
  $region18: #{hgp_forward.7} parent=0 // pred_check
    _
  $region19: #{hgp_forward.7} parent=0 // pred_check_branch
    %24 = sbr.rel (0) target = $region21
  $region20: #{hgp_forward.7} parent=0 // pred_region
    _
  $region21: #{hgp_forward.7} parent=0 // pred_fallthru
    _
  // Predicated region
  $region22: #{hgp_forward.7} parent=0 // pred_check
    _
  $region23: #{hgp_forward.7} parent=0 // pred_check_branch
    %26 = sbr.rel (0) target = $region25
  $region24: #{hgp_forward.7} parent=0 // pred_region
    _
  $region25: #{hgp_forward.7} parent=0 // pred_fallthru
    _
  %v27 = vld [vmem:[%s1] sm:$0xff]
  %v28 = vld [vmem:[%s4] sm:$0x3]
  %v29 = vld [vmem:[%s5] sm:$0xff]
  %vm30 = vcmask 58368
  %v31 = vsel %vm30, %v28, 0.0
  %32 = vadd.xlane.f32.xlu0 %v31
  %v33 = vpop.xlane.xlu0 %32
  %v34 = vmax.f32 %v33, 1.0
  %vm35 = vcmask 64512
  %v37 = vsel %vm35, %v28, 0
  %39 = vmatprep.subr.mxu0 0.0
  %40 = vmatpush1.msra.mxu0 0.0
  %41 = vmatprep.subr.mxu0 0.0
  %42 = vmatpush1.msra.mxu0 0.0
  %43 = vmatprep.subr.mxu0 0.0
  %44 = vmatpush1.msra.mxu0 0.0
  %45 = vmatprep.subr.mxu0 0.0
  %46 = vmatpush1.msra.mxu0 0.0
  %47 = vmatprep.subr.mxu0 0.0
  %48 = vmatpush1.msra.mxu0 0.0
  %49 = vmatprep.subr.mxu0 0.0
  %50 = vmatpush1.msra.mxu0 0.0
  %51 = vmatprep.subr.mxu0 0.0
  %52 = vmatpush1.msra.mxu0 0.0
  %53 = vmatprep.subr.mxu0 0.0
  %54 = vmatpush1.msra.mxu0 0.0
  %55 = vmatprep.subr.mxu0 0.0
  %56 = vmatpush1.msra.mxu0 0.0
  %57 = vmatprep.subr.mxu0 0.0
  %58 = vmatpush1.msra.mxu0 0.0
  %59 = vmatprep.subr.mxu0 0.0
  %60 = vmatpush1.msra.mxu0 0.0
  %61 = vmatprep.subr.mxu0 0.0
  %62 = vmatpush1.msra.mxu0 0.0
  %63 = vmatprep.subr.mxu0 0.0
  %64 = vmatpush1.msra.mxu0 0.0
  %65 = vmatprep.subr.mxu0 0.0
  %66 = vmatpush1.msra.mxu0 0.0
  %67 = vmatprep.subr.mxu0 0.0
  %68 = vmatpush1.msra.mxu0 0.0
  %69 = vmatprep.subr.mxu0 0.0
  %70 = vmatpush1.msra.mxu0 %v27
  %71 = vmatprep.subr.mxu0 0.0
  %72 = vmatpush2.msra.mxu0 0.0
  %73 = vmatprep.subr.mxu0 0.0
  %74 = vmatpush2.msra.mxu0 0.0
  %75 = vmatprep.subr.mxu0 0.0
  %76 = vmatpush2.msra.mxu0 0.0
  %77 = vmatprep.subr.mxu0 0.0
  %78 = vmatpush2.msra.mxu0 0.0
  %79 = vmatprep.subr.mxu0 0.0
  %80 = vmatpush2.msra.mxu0 0.0
  %81 = vmatprep.subr.mxu0 0.0
  %82 = vmatpush2.msra.mxu0 0.0
  %83 = vmatprep.subr.mxu0 0.0
  %84 = vmatpush2.msra.mxu0 0.0
  %85 = vmatprep.subr.mxu0 0.0
  %86 = vmatpush2.msra.mxu0 0.0
  %87 = vmatprep.subr.mxu0 0.0
  %88 = vmatpush2.msra.mxu0 0.0
  %89 = vmatprep.subr.mxu0 0.0
  %90 = vmatpush2.msra.mxu0 0.0
  %91 = vmatprep.subr.mxu0 0.0
  %92 = vmatpush2.msra.mxu0 0.0
  %93 = vmatprep.subr.mxu0 0.0
  %94 = vmatpush2.msra.mxu0 0.0
  %95 = vmatprep.subr.mxu0 0.0
  %96 = vmatpush2.msra.mxu0 0.0
  %97 = vmatprep.subr.mxu0 0.0
  %98 = vmatpush2.msra.mxu0 0.0
  %99 = vmatprep.subr.mxu0 0.0
  %100 = vmatpush2.msra.mxu0 0.0
  %101 = vmatprep.subr.mxu0 0.0
  %102 = vmatpush2.msra.mxu0 0.0
  %103 = vmatprep.mubr.f32.mxu0 0.0
  %104 = vmatmul.mubr.f32.gmra.mxu0 %v37
  %v105 = vpop.f32.mrf.mxu0
  %v106 = vadd.f32 0.0, %v105
  %v107 = vpop.f32.mrf.mxu0
  %108 = vdwg.mxu0
  %v109 = vrcp.pop %v34
  %v110 = vmul.f32 %v106, %v109
  %vm111 = vcmp.gt.f32.partialorder %v29, 0.0
  %v112 = vsel %vm111, 1, 0
  %113 = vset.pattern.permute.xlu0 0
  %114 = vperm.xlu0 %113, %v112
  %v115 = vpop.permute.xlu0 %114
  %vm116 = vcmp.eq.s32.totalorder %v115, 1
  %v117 = vsel %vm116, %v27, -1e+30
  %vm118 = vcmask 261120
  %v119 = vsel %vm118, %v117, -inf
  %v120 = vrot.slane %v119, 4
  %v121 = vmax.f32 %v119, %v120
  %v122 = vrot.slane %v121, 2
  %v123 = vmax.f32 %v121, %v122
  %v124 = vrot.slane %v123, 1
  %v125 = vmax.f32 %v123, %v124
  %126 = vset.pattern.permute.xlu0 1
  %127 = vperm.xlu0 %126, %v112
  %v128 = vpop.permute.xlu0 %127
  %vm129 = vcmp.eq.s32.totalorder %v128, 1
  %v130 = vsel %vm129, %v27, -1e+30
  %v131 = vsel %vm118, %v130, -inf
  %v132 = vrot.slane %v131, 4
  %v133 = vmax.f32 %v131, %v132
  %v134 = vrot.slane %v133, 2
  %v135 = vmax.f32 %v133, %v134
  %v136 = vrot.slane %v135, 1
  %v137 = vmax.f32 %v135, %v136
  %vm138 = vcmask 1040384
  %v139 = vsel %vm138, %v125, %v137
  %v140 = vld [vmem:[%s0] sm:$0xff]
  %v141 = vlaneseq
  %v142 = vshrl.u32 %v141, 7
  %v143 = vlaneseq
  %v144 = vand.u32 %v143, 127
  %vm145 = vcmp.eq.s32.totalorder %v142, %v144
  %v146 = vsel %vm145, 1, 0
  %v147 = vcvt.s32.f32 %v146
  %v148 = vadd.f32 %v140, %v147
  %v149 = vsel %vm35, %v148, 0.0
  %150 = vadd.xlane.f32.xlu0 %v149
  %v151 = vpop.xlane.xlu0 %150
  %v152 = vrot.slane %v149, 4
  %v153 = vadd.f32 %v149, %v152
  %v154 = vrot.slane %v153, 2
  %v155 = vadd.f32 %v153, %v154
  %v156 = vrot.slane %v155, 1
  %v157 = vadd.f32 %v155, %v156
  %v158 = vmax.f32 %v151, 1e-12
  %v159 = vrsqrt.pop %v158
  %v160 = vmul.f32 %v148, %v159
  %v161 = vmax.f32 %v157, 1e-12
  %v162 = vrsqrt.pop %v161
  %v163 = vmul.f32 %v160, %v162
  %v164 = vld [vmem:[%s2] sm:$0xff]
  %v165 = vld [vmem:[%s2 + $0x8] sm:$0xff]
  %v166 = vld [vmem:[%s2 + $0x10] sm:$0xff]
  %v167 = vld [vmem:[%s2 + $0x18] sm:$0xff]
  %v168 = vld [vmem:[%s3] sm:$0x1]
  %v170 = vsel %vm118, %v27, 0
  %172 = vmatprep.subr.mxu0 0.0
  %173 = vmatpush1.msra.mxu0 0.0
  %174 = vmatprep.subr.mxu0 0.0
  %175 = vmatpush1.msra.mxu0 0.0
  %176 = vmatprep.subr.mxu0 0.0
  %177 = vmatpush1.msra.mxu0 0.0
  %178 = vmatprep.subr.mxu0 0.0
  %179 = vmatpush1.msra.mxu0 0.0
  %180 = vmatprep.subr.mxu0 0.0
  %181 = vmatpush1.msra.mxu0 0.0
  %182 = vmatprep.subr.mxu0 0.0
  %183 = vmatpush1.msra.mxu0 0.0
  %184 = vmatprep.subr.mxu0 0.0
  %185 = vmatpush1.msra.mxu0 0.0
  %186 = vmatprep.subr.mxu0 0.0
  %187 = vmatpush1.msra.mxu0 0.0
  %188 = vmatprep.subr.mxu0 0.0
  %189 = vmatpush1.msra.mxu0 0.0
  %190 = vmatprep.subr.mxu0 0.0
  %191 = vmatpush1.msra.mxu0 0.0
  %192 = vmatprep.subr.mxu0 0.0
  %193 = vmatpush1.msra.mxu0 0.0
  %194 = vmatprep.subr.mxu0 0.0
  %195 = vmatpush1.msra.mxu0 0.0
  %196 = vmatprep.subr.mxu0 0.0
  %197 = vmatpush1.msra.mxu0 %v167
  %198 = vmatprep.subr.mxu0 0.0
  %199 = vmatpush1.msra.mxu0 %v166
  %200 = vmatprep.subr.mxu0 0.0
  %201 = vmatpush1.msra.mxu0 %v165
  %202 = vmatprep.subr.mxu0 0.0
  %203 = vmatpush1.msra.mxu0 %v164
  %204 = vmatprep.subr.mxu0 0.0
  %205 = vmatpush2.msra.mxu0 0.0
  %206 = vmatprep.subr.mxu0 0.0
  %207 = vmatpush2.msra.mxu0 0.0
  %208 = vmatprep.subr.mxu0 0.0
  %209 = vmatpush2.msra.mxu0 0.0
  %210 = vmatprep.subr.mxu0 0.0
  %211 = vmatpush2.msra.mxu0 0.0
  %212 = vmatprep.subr.mxu0 0.0
  %213 = vmatpush2.msra.mxu0 0.0
  %214 = vmatprep.subr.mxu0 0.0
  %215 = vmatpush2.msra.mxu0 0.0
  %216 = vmatprep.subr.mxu0 0.0
  %217 = vmatpush2.msra.mxu0 0.0
  %218 = vmatprep.subr.mxu0 0.0
  %219 = vmatpush2.msra.mxu0 0.0
  %220 = vmatprep.subr.mxu0 0.0
  %221 = vmatpush2.msra.mxu0 0.0
  %222 = vmatprep.subr.mxu0 0.0
  %223 = vmatpush2.msra.mxu0 0.0
  %224 = vmatprep.subr.mxu0 0.0
  %225 = vmatpush2.msra.mxu0 0.0
  %226 = vmatprep.subr.mxu0 0.0
  %227 = vmatpush2.msra.mxu0 0.0
  %228 = vmatprep.subr.mxu0 0.0
  %229 = vmatpush2.msra.mxu0 0.0
  %230 = vmatprep.subr.mxu0 0.0
  %231 = vmatpush2.msra.mxu0 0.0
  %232 = vmatprep.subr.mxu0 0.0
  %233 = vmatpush2.msra.mxu0 0.0
  %234 = vmatprep.subr.mxu0 0.0
  %235 = vmatpush2.msra.mxu0 0.0
  %236 = vmatprep.mubr.f32.mxu0 0.0
  %237 = vmatmul.mubr.f32.gmra.mxu0 %v170
  %v238 = vpop.f32.mrf.mxu0
  %v239 = vadd.f32 0.0, %v238
  %v240 = vpop.f32.mrf.mxu0
  %241 = vdwg.mxu0
  %v243 = vlaneseq
  %v244 = vshrl.u32 %v243, 7
  %v245 = vsub.s32 0, %v244
  %v246 = vrot.slane %v168, %v245
  %v249 = vsel %vm35, %v163, 0
  %251 = vmatprep.subr.mxu0 0.0
  %252 = vmatpush1.msra.mxu0 0.0
  %253 = vmatprep.subr.mxu0 0.0
  %254 = vmatpush1.msra.mxu0 0.0
  %255 = vmatprep.subr.mxu0 0.0
  %256 = vmatpush1.msra.mxu0 0.0
  %257 = vmatprep.subr.mxu0 0.0
  %258 = vmatpush1.msra.mxu0 0.0
  %259 = vmatprep.subr.mxu0 0.0
  %260 = vmatpush1.msra.mxu0 0.0
  %261 = vmatprep.subr.mxu0 0.0
  %262 = vmatpush1.msra.mxu0 0.0
  %263 = vmatprep.subr.mxu0 0.0
  %264 = vmatpush1.msra.mxu0 0.0
  %265 = vmatprep.subr.mxu0 0.0
  %266 = vmatpush1.msra.mxu0 0.0
  %267 = vmatprep.subr.mxu0 0.0
  %268 = vmatpush1.msra.mxu0 0.0
  %269 = vmatprep.subr.mxu0 0.0
  %270 = vmatpush1.msra.mxu0 0.0
  %271 = vmatprep.subr.mxu0 0.0
  %272 = vmatpush1.msra.mxu0 0.0
  %273 = vmatprep.subr.mxu0 0.0
  %274 = vmatpush1.msra.mxu0 0.0
  %275 = vmatprep.subr.mxu0 0.0
  %276 = vmatpush1.msra.mxu0 0.0
  %277 = vmatprep.subr.mxu0 0.0
  %278 = vmatpush1.msra.mxu0 0.0
  %279 = vmatprep.subr.mxu0 0.0
  %280 = vmatpush1.msra.mxu0 0.0
  %281 = vmatprep.subr.mxu0 0.0
  %282 = vmatpush1.msra.mxu0 %v239
  %283 = vmatprep.subr.mxu0 0.0
  %284 = vmatpush2.msra.mxu0 0.0
  %285 = vmatprep.subr.mxu0 0.0
  %286 = vmatpush2.msra.mxu0 0.0
  %287 = vmatprep.subr.mxu0 0.0
  %288 = vmatpush2.msra.mxu0 0.0
  %289 = vmatprep.subr.mxu0 0.0
  %290 = vmatpush2.msra.mxu0 0.0
  %291 = vmatprep.subr.mxu0 0.0
  %292 = vmatpush2.msra.mxu0 0.0
  %293 = vmatprep.subr.mxu0 0.0
  %294 = vmatpush2.msra.mxu0 0.0
  %295 = vmatprep.subr.mxu0 0.0
  %296 = vmatpush2.msra.mxu0 0.0
  %297 = vmatprep.subr.mxu0 0.0
  %298 = vmatpush2.msra.mxu0 0.0
  %299 = vmatprep.subr.mxu0 0.0
  %300 = vmatpush2.msra.mxu0 0.0
  %301 = vmatprep.subr.mxu0 0.0
  %302 = vmatpush2.msra.mxu0 0.0
  %303 = vmatprep.subr.mxu0 0.0
  %304 = vmatpush2.msra.mxu0 0.0
  %305 = vmatprep.subr.mxu0 0.0
  %306 = vmatpush2.msra.mxu0 0.0
  %307 = vmatprep.subr.mxu0 0.0
  %308 = vmatpush2.msra.mxu0 0.0
  %309 = vmatprep.subr.mxu0 0.0
  %310 = vmatpush2.msra.mxu0 0.0
  %311 = vmatprep.subr.mxu0 0.0
  %312 = vmatpush2.msra.mxu0 0.0
  %313 = vmatprep.subr.mxu0 0.0
  %314 = vmatpush2.msra.mxu0 0.0
  %315 = vmatprep.mubr.f32.mxu0 0.0
  %316 = vmatmul.mubr.f32.gmra.mxu0 %v249
  %v317 = vpop.f32.mrf.mxu0
  %v318 = vadd.f32 %v246, %v317
  %v319 = vpop.f32.mrf.mxu0
  %320 = vdwg.mxu0
  %v321 = vmax.f32 %v318, 0.0
  %322 = vst.msk [vmem:[%s6] sm:$0xff] %vm118, %v321
  %v323 = vrcp.pop %v158
  %v324 = vmul.f32 %v148, %v323
  %v326 = vsel %vm35, %v324, 0
  %328 = vmatprep.subr.mxu0 0.0
  %329 = vmatpush1.msra.mxu0 0.0
  %330 = vmatprep.subr.mxu0 0.0
  %331 = vmatpush1.msra.mxu0 0.0
  %332 = vmatprep.subr.mxu0 0.0
  %333 = vmatpush1.msra.mxu0 0.0
  %334 = vmatprep.subr.mxu0 0.0
  %335 = vmatpush1.msra.mxu0 0.0
  %336 = vmatprep.subr.mxu0 0.0
  %337 = vmatpush1.msra.mxu0 0.0
  %338 = vmatprep.subr.mxu0 0.0
  %339 = vmatpush1.msra.mxu0 0.0
  %340 = vmatprep.subr.mxu0 0.0
  %341 = vmatpush1.msra.mxu0 0.0
  %342 = vmatprep.subr.mxu0 0.0
  %343 = vmatpush1.msra.mxu0 0.0
  %344 = vmatprep.subr.mxu0 0.0
  %345 = vmatpush1.msra.mxu0 0.0
  %346 = vmatprep.subr.mxu0 0.0
  %347 = vmatpush1.msra.mxu0 0.0
  %348 = vmatprep.subr.mxu0 0.0
  %349 = vmatpush1.msra.mxu0 0.0
  %350 = vmatprep.subr.mxu0 0.0
  %351 = vmatpush1.msra.mxu0 0.0
  %352 = vmatprep.subr.mxu0 0.0
  %353 = vmatpush1.msra.mxu0 0.0
  %354 = vmatprep.subr.mxu0 0.0
  %355 = vmatpush1.msra.mxu0 0.0
  %356 = vmatprep.subr.mxu0 0.0
  %357 = vmatpush1.msra.mxu0 0.0
  %358 = vmatprep.subr.mxu0 0.0
  %359 = vmatpush1.msra.mxu0 %v321
  %360 = vmatprep.subr.mxu0 0.0
  %361 = vmatpush2.msra.mxu0 0.0
  %362 = vmatprep.subr.mxu0 0.0
  %363 = vmatpush2.msra.mxu0 0.0
  %364 = vmatprep.subr.mxu0 0.0
  %365 = vmatpush2.msra.mxu0 0.0
  %366 = vmatprep.subr.mxu0 0.0
  %367 = vmatpush2.msra.mxu0 0.0
  %368 = vmatprep.subr.mxu0 0.0
  %369 = vmatpush2.msra.mxu0 0.0
  %370 = vmatprep.subr.mxu0 0.0
  %371 = vmatpush2.msra.mxu0 0.0
  %372 = vmatprep.subr.mxu0 0.0
  %373 = vmatpush2.msra.mxu0 0.0
  %374 = vmatprep.subr.mxu0 0.0
  %375 = vmatpush2.msra.mxu0 0.0
  %376 = vmatprep.subr.mxu0 0.0
  %377 = vmatpush2.msra.mxu0 0.0
  %378 = vmatprep.subr.mxu0 0.0
  %379 = vmatpush2.msra.mxu0 0.0
  %380 = vmatprep.subr.mxu0 0.0
  %381 = vmatpush2.msra.mxu0 0.0
  %382 = vmatprep.subr.mxu0 0.0
  %383 = vmatpush2.msra.mxu0 0.0
  %384 = vmatprep.subr.mxu0 0.0
  %385 = vmatpush2.msra.mxu0 0.0
  %386 = vmatprep.subr.mxu0 0.0
  %387 = vmatpush2.msra.mxu0 0.0
  %388 = vmatprep.subr.mxu0 0.0
  %389 = vmatpush2.msra.mxu0 0.0
  %390 = vmatprep.subr.mxu0 0.0
  %391 = vmatpush2.msra.mxu0 0.0
  %392 = vmatprep.mubr.f32.mxu0 0.0
  %393 = vmatmul.mubr.f32.gmra.mxu0 %v326
  %v394 = vpop.f32.mrf.mxu0
  %v395 = vadd.f32 0.0, %v394
  %v396 = vpop.f32.mrf.mxu0
  %397 = vdwg.mxu0
  %v398 = vsub.f32 %v321, %v395
  %v399 = vand.u32 2147483647, %v398
  %v401 = vsel %vm118, 1.0, 0
  %v404 = vsel %vm118, %v399, 0
  %406 = vmatprep.subr.mxu0 0.0
  %407 = vmatpush1.xpose.msra.mxu0 0.0
  %408 = vmatprep.subr.mxu0 0.0
  %409 = vmatpush1.xpose.msra.mxu0 0.0
  %410 = vmatprep.subr.mxu0 0.0
  %411 = vmatpush1.xpose.msra.mxu0 0.0
  %412 = vmatprep.subr.mxu0 0.0
  %413 = vmatpush1.xpose.msra.mxu0 0.0
  %414 = vmatprep.subr.mxu0 0.0
  %415 = vmatpush1.xpose.msra.mxu0 0.0
  %416 = vmatprep.subr.mxu0 0.0
  %417 = vmatpush1.xpose.msra.mxu0 0.0
  %418 = vmatprep.subr.mxu0 0.0
  %419 = vmatpush1.xpose.msra.mxu0 0.0
  %420 = vmatprep.subr.mxu0 0.0
  %421 = vmatpush1.xpose.msra.mxu0 0.0
  %422 = vmatprep.subr.mxu0 0.0
  %423 = vmatpush1.xpose.msra.mxu0 0.0
  %424 = vmatprep.subr.mxu0 0.0
  %425 = vmatpush1.xpose.msra.mxu0 0.0
  %426 = vmatprep.subr.mxu0 0.0
  %427 = vmatpush1.xpose.msra.mxu0 0.0
  %428 = vmatprep.subr.mxu0 0.0
  %429 = vmatpush1.xpose.msra.mxu0 0.0
  %430 = vmatprep.subr.mxu0 0.0
  %431 = vmatpush1.xpose.msra.mxu0 0.0
  %432 = vmatprep.subr.mxu0 0.0
  %433 = vmatpush1.xpose.msra.mxu0 0.0
  %434 = vmatprep.subr.mxu0 0.0
  %435 = vmatpush1.xpose.msra.mxu0 0.0
  %436 = vmatprep.subr.mxu0 0.0
  %437 = vmatpush1.xpose.msra.mxu0 %v404
  %438 = vmatprep.subr.mxu0 0.0
  %439 = vmatpush2.xpose.msra.mxu0 0.0
  %440 = vmatprep.subr.mxu0 0.0
  %441 = vmatpush2.xpose.msra.mxu0 0.0
  %442 = vmatprep.subr.mxu0 0.0
  %443 = vmatpush2.xpose.msra.mxu0 0.0
  %444 = vmatprep.subr.mxu0 0.0
  %445 = vmatpush2.xpose.msra.mxu0 0.0
  %446 = vmatprep.subr.mxu0 0.0
  %447 = vmatpush2.xpose.msra.mxu0 0.0
  %448 = vmatprep.subr.mxu0 0.0
  %449 = vmatpush2.xpose.msra.mxu0 0.0
  %450 = vmatprep.subr.mxu0 0.0
  %451 = vmatpush2.xpose.msra.mxu0 0.0
  %452 = vmatprep.subr.mxu0 0.0
  %453 = vmatpush2.xpose.msra.mxu0 0.0
  %454 = vmatprep.subr.mxu0 0.0
  %455 = vmatpush2.xpose.msra.mxu0 0.0
  %456 = vmatprep.subr.mxu0 0.0
  %457 = vmatpush2.xpose.msra.mxu0 0.0
  %458 = vmatprep.subr.mxu0 0.0
  %459 = vmatpush2.xpose.msra.mxu0 0.0
  %460 = vmatprep.subr.mxu0 0.0
  %461 = vmatpush2.xpose.msra.mxu0 0.0
  %462 = vmatprep.subr.mxu0 0.0
  %463 = vmatpush2.xpose.msra.mxu0 0.0
  %464 = vmatprep.subr.mxu0 0.0
  %465 = vmatpush2.xpose.msra.mxu0 0.0
  %466 = vmatprep.subr.mxu0 0.0
  %467 = vmatpush2.xpose.msra.mxu0 0.0
  %468 = vmatprep.subr.mxu0 0.0
  %469 = vmatpush2.xpose.msra.mxu0 0.0
  %470 = vmatprep.mubr.f32.mxu0 0.0
  %471 = vmatmul.mubr.f32.gmra.mxu0 %v401
  %v472 = vpop.f32.mrf.mxu0
  %v473 = vadd.f32 0.0, %v472
  %v474 = vpop.f32.mrf.mxu0
  %475 = vdwg.mxu0
  %vm476 = vcmask 57344
  %477 = vst.msk [vmem:[%s7] sm:$0x1] %vm476, %v473
  %vm478 = vcmask 254976
  %479 = vst.msk [vmem:[%s8] sm:$0x3] %vm478, %v139
  %480 = vst.msk [vmem:[%s9] sm:$0x3] %vm478, %v110
  // Predicated region
  $region26: #{hgp_forward.7} parent=0 // pred_check
    _
  $region27: #{hgp_forward.7} parent=0 // pred_check_branch
    %482 = sbr.rel (0) target = $region29
  $region28: #{hgp_forward.7} parent=0 // pred_region
    _
  $region29: #{hgp_forward.7} parent=0 // pred_fallthru
    _
  // Predicated region
  $region30: #{hgp_forward.7} parent=0 // pred_check
    _
  $region31: #{hgp_forward.7} parent=0 // pred_check_branch
    %484 = sbr.rel (0) target = $region33
  $region32: #{hgp_forward.7} parent=0 // pred_region
    _
  $region33: #{hgp_forward.7} parent=0 // pred_fallthru
    _
  // Predicated region
  $region34: #{hgp_forward.7} parent=0 // pred_check
    _
  $region35: #{hgp_forward.7} parent=0 // pred_check_branch
    %486 = sbr.rel (0) target = $region37
  $region36: #{hgp_forward.7} parent=0 // pred_region
    _
  $region37: #{hgp_forward.7} parent=0 // pred_fallthru
    _
  // Predicated region
  $region38: #{hgp_forward.7} parent=0 // pred_check
    _
  $region39: #{hgp_forward.7} parent=0 // pred_check_branch
    %488 = sbr.rel (0) target = $region41
  $region40: #{hgp_forward.7} parent=0 // pred_region
    _
  $region41: #{hgp_forward.7} parent=0 // pred_fallthru
    _
  // Predicated region
  $region42: #{hgp_forward.7} parent=0 // pred_check
    _
  $region43: #{hgp_forward.7} parent=0 // pred_check_branch
    %490 = sbr.rel (0) target = $region45
  $region44: #{hgp_forward.7} parent=0 // pred_region
    _
  $region45: #{hgp_forward.7} parent=0 // pred_fallthru
    _
  // Predicated region
  $region46: #{hgp_forward.7} parent=0 // pred_check
    _
  $region47: #{hgp_forward.7} parent=0 // pred_check_branch
    %492 = sbr.rel (0) target = $region49
  $region48: #{hgp_forward.7} parent=0 // pred_region
    _
  $region49: #{hgp_forward.7} parent=0 // pred_fallthru
    _
  // Predicated region
  $region50: #{hgp_forward.7} parent=0 // pred_check
    _
  $region51: #{hgp_forward.7} parent=0 // pred_check_branch
    %494 = sbr.rel (0) target = $region53
  $region52: #{hgp_forward.7} parent=0 // pred_region
    _
  $region53: #{hgp_forward.7} parent=0 // pred_fallthru
    _
  // Predicated region
  $region54: #{hgp_forward.7} parent=0 // pred_check
    _
  $region55: #{hgp_forward.7} parent=0 // pred_check_branch
    %496 = sbr.rel (0) target = $region57
  $region56: #{hgp_forward.7} parent=0 // pred_region
    _
  $region57: #{hgp_forward.7} parent=0 // pred_fallthru
    _

// kernel: hgp_forward.8
$region0: #{hgp_forward.8}
  #allocation0 [shape = 'u32[]', space=smem, size = 0x4, offset = 0x4, fixed_abs, tag = 'smem constant byte address 0x4 - core index']
  #allocation1 [shape = 'u32[144,128]{1,0:T(1,128)}', space=vmem, size = 0x12000, scoped, tag = 'internal scratch']
  %s0 = inlined_call_operand.vmem [shape: f32[4,32], index: 0, kind: input, shape index: {}]
  %s1 = inlined_call_operand.vmem [shape: f32[4,4], index: 1, kind: input, shape index: {}]
  %s2 = inlined_call_operand.vmem [shape: f32[1,32], index: 2, kind: input, shape index: {}]
  %s3 = inlined_call_operand.vmem [shape: f32[1,32], index: 3, kind: input, shape index: {}]
  %s4 = inlined_call_operand.vmem [shape: f32[4,4], index: 4, kind: input, shape index: {}]
  %s5 = inlined_call_operand.vmem [shape: f32[4,4], index: 5, kind: output, shape index: {}]
  %s6 = sld [smem:[#allocation0]]
  $region30: #{hgp_forward.8} parent=0
    _
  %s8 = ssub.s32 1, %s6
  %s9 = scalar_select 0, %s8, %s6
  // Predicated region
  $region2: #{hgp_forward.8} parent=0 // pred_check
    _
  $region3: #{hgp_forward.8} parent=0 // pred_check_branch
    %11 = sbr.rel (0) target = $region5
  $region4: #{hgp_forward.8} parent=0 // pred_region
    _
  $region5: #{hgp_forward.8} parent=0 // pred_fallthru
    _
  // Predicated region
  $region6: #{hgp_forward.8} parent=0 // pred_check
    _
  $region7: #{hgp_forward.8} parent=0 // pred_check_branch
    %13 = sbr.rel (0) target = $region9
  $region8: #{hgp_forward.8} parent=0 // pred_region
    _
  $region9: #{hgp_forward.8} parent=0 // pred_fallthru
    _
  // Predicated region
  $region10: #{hgp_forward.8} parent=0 // pred_check
    _
  $region11: #{hgp_forward.8} parent=0 // pred_check_branch
    %15 = sbr.rel (0) target = $region13
  $region12: #{hgp_forward.8} parent=0 // pred_region
    _
  $region13: #{hgp_forward.8} parent=0 // pred_fallthru
    _
  // Predicated region
  $region14: #{hgp_forward.8} parent=0 // pred_check
    _
  $region15: #{hgp_forward.8} parent=0 // pred_check_branch
    %17 = sbr.rel (0) target = $region17
  $region16: #{hgp_forward.8} parent=0 // pred_region
    _
  $region17: #{hgp_forward.8} parent=0 // pred_fallthru
    _
  // Predicated region
  $region18: #{hgp_forward.8} parent=0 // pred_check
    _
  $region19: #{hgp_forward.8} parent=0 // pred_check_branch
    %19 = sbr.rel (0) target = $region21
  $region20: #{hgp_forward.8} parent=0 // pred_region
    _
  $region21: #{hgp_forward.8} parent=0 // pred_fallthru
    _
  %v20 = vld [vmem:[%s0] sm:$0xf]
  %v21 = vld [vmem:[%s2] sm:$0x1]
  %v23 = vlaneseq
  %v24 = vshrl.u32 %v23, 7
  %v25 = vsub.s32 0, %v24
  %v26 = vrot.slane %v21, %v25
  %v28 = vmul.f32 %v20, %v26
  %vm29 = vcmask 257024
  %v30 = vsel %vm29, %v28, 0.0
  %31 = vadd.xlane.f32.xlu0 %v30
  %v32 = vpop.xlane.xlu0 %31
  %v33 = vld [vmem:[%s3] sm:$0x1]
  %vm34 = vcmask 261120
  %v36 = vsel %vm34, %v33, 0
  %v39 = vsel %vm34, %v20, 0
  %41 = vmatprep.subr.mxu0 0.0
  %42 = vmatpush1.xpose.msra.mxu0 0.0
  %43 = vmatprep.subr.mxu0 0.0
  %44 = vmatpush1.xpose.msra.mxu0 0.0
  %45 = vmatprep.subr.mxu0 0.0
  %46 = vmatpush1.xpose.msra.mxu0 0.0
  %47 = vmatprep.subr.mxu0 0.0
  %48 = vmatpush1.xpose.msra.mxu0 0.0
  %49 = vmatprep.subr.mxu0 0.0
  %50 = vmatpush1.xpose.msra.mxu0 0.0
  %51 = vmatprep.subr.mxu0 0.0
  %52 = vmatpush1.xpose.msra.mxu0 0.0
  %53 = vmatprep.subr.mxu0 0.0
  %54 = vmatpush1.xpose.msra.mxu0 0.0
  %55 = vmatprep.subr.mxu0 0.0
  %56 = vmatpush1.xpose.msra.mxu0 0.0
  %57 = vmatprep.subr.mxu0 0.0
  %58 = vmatpush1.xpose.msra.mxu0 0.0
  %59 = vmatprep.subr.mxu0 0.0
  %60 = vmatpush1.xpose.msra.mxu0 0.0
  %61 = vmatprep.subr.mxu0 0.0
  %62 = vmatpush1.xpose.msra.mxu0 0.0
  %63 = vmatprep.subr.mxu0 0.0
  %64 = vmatpush1.xpose.msra.mxu0 0.0
  %65 = vmatprep.subr.mxu0 0.0
  %66 = vmatpush1.xpose.msra.mxu0 0.0
  %67 = vmatprep.subr.mxu0 0.0
  %68 = vmatpush1.xpose.msra.mxu0 0.0
  %69 = vmatprep.subr.mxu0 0.0
  %70 = vmatpush1.xpose.msra.mxu0 0.0
  %71 = vmatprep.subr.mxu0 0.0
  %72 = vmatpush1.xpose.msra.mxu0 %v39
  %73 = vmatprep.subr.mxu0 0.0
  %74 = vmatpush2.xpose.msra.mxu0 0.0
  %75 = vmatprep.subr.mxu0 0.0
  %76 = vmatpush2.xpose.msra.mxu0 0.0
  %77 = vmatprep.subr.mxu0 0.0
  %78 = vmatpush2.xpose.msra.mxu0 0.0
  %79 = vmatprep.subr.mxu0 0.0
  %80 = vmatpush2.xpose.msra.mxu0 0.0
  %81 = vmatprep.subr.mxu0 0.0
  %82 = vmatpush2.xpose.msra.mxu0 0.0
  %83 = vmatprep.subr.mxu0 0.0
  %84 = vmatpush2.xpose.msra.mxu0 0.0
  %85 = vmatprep.subr.mxu0 0.0
  %86 = vmatpush2.xpose.msra.mxu0 0.0
  %87 = vmatprep.subr.mxu0 0.0
  %88 = vmatpush2.xpose.msra.mxu0 0.0
  %89 = vmatprep.subr.mxu0 0.0
  %90 = vmatpush2.xpose.msra.mxu0 0.0
  %91 = vmatprep.subr.mxu0 0.0
  %92 = vmatpush2.xpose.msra.mxu0 0.0
  %93 = vmatprep.subr.mxu0 0.0
  %94 = vmatpush2.xpose.msra.mxu0 0.0
  %95 = vmatprep.subr.mxu0 0.0
  %96 = vmatpush2.xpose.msra.mxu0 0.0
  %97 = vmatprep.subr.mxu0 0.0
  %98 = vmatpush2.xpose.msra.mxu0 0.0
  %99 = vmatprep.subr.mxu0 0.0
  %100 = vmatpush2.xpose.msra.mxu0 0.0
  %101 = vmatprep.subr.mxu0 0.0
  %102 = vmatpush2.xpose.msra.mxu0 0.0
  %103 = vmatprep.subr.mxu0 0.0
  %104 = vmatpush2.xpose.msra.mxu0 0.0
  %105 = vmatprep.mubr.f32.mxu0 0.0
  %106 = vmatmul.mubr.f32.gmra.mxu0 %v36
  %v107 = vpop.f32.mrf.mxu0
  %v108 = vadd.f32 0.0, %v107
  %v109 = vpop.f32.mrf.mxu0
  %110 = vdwg.mxu0
  %v111 = vlaneseq
  %v112 = vshrl.u32 %v111, 7
  %v113 = vsub.s32 0, %v112
  %v114 = vrot.slane %v108, %v113
  %v115 = vadd.f32 %v32, %v114
  %vm116 = vcmp.ge.f32.partialorder %v115, 0.0
  %v117 = vmul.f32 %v115, 0.2
  %v118 = vsel %vm116, %v115, %v117
  %v119 = vld [vmem:[%s1] sm:$0xf]
  %v120 = vadd.f32 %v118, %v119
  %v121 = vld [vmem:[%s4] sm:$0xf]
  %vm122 = vcmp.gt.f32.partialorder %v121, 0.0
  %v123 = vsel %vm122, %v120, -1e+30
  %vm124 = vcmask 27648
  %v125 = vsel %vm124, %v123, -inf
  %126 = vmax.xlane.f32.xlu0 %v125
  %v127 = vpop.xlane.xlu0 %126
  %v128 = vsub.f32 %v123, %v127
  %v129 = vmul.f32 %v128, 1.442695
  %v130 = vpow.pop %v129
  %v131 = vsel %vm124, %v130, 0.0
  %132 = vadd.xlane.f32.xlu0 %v131
  %v133 = vpop.xlane.xlu0 %132
  %v134 = vmax.f32 %v133, 1e-12
  %v135 = vrcp.pop %v134
  %v136 = vmul.f32 %v130, %v135
  %v137 = vmul.f32 %v136, %v121
  %138 = vst.msk [vmem:[%s5] sm:$0xf] %vm124, %v137
  // Predicated region
  $region22: #{hgp_forward.8} parent=0 // pred_check
    _
  $region23: #{hgp_forward.8} parent=0 // pred_check_branch
    %140 = sbr.rel (0) target = $region25
  $region24: #{hgp_forward.8} parent=0 // pred_region
    _
  $region25: #{hgp_forward.8} parent=0 // pred_fallthru
    _
  // Predicated region
  $region26: #{hgp_forward.8} parent=0 // pred_check
    _
  $region27: #{hgp_forward.8} parent=0 // pred_check_branch
    %142 = sbr.rel (0) target = $region29
  $region28: #{hgp_forward.8} parent=0 // pred_region
    _
  $region29: #{hgp_forward.8} parent=0 // pred_fallthru
    _

// kernel: hgp_forward.9
$region0: #{hgp_forward.9}
  #allocation0 [shape = 'u32[]', space=smem, size = 0x4, offset = 0x4, fixed_abs, tag = 'smem constant byte address 0x4 - core index']
  #allocation1 [shape = 'u32[144,128]{1,0:T(1,128)}', space=vmem, size = 0x12000, scoped, tag = 'internal scratch']
  %s0 = inlined_call_operand.vmem [shape: f32[2,32], index: 0, kind: input, shape index: {}]
  %s1 = inlined_call_operand.vmem [shape: f32[2,32], index: 1, kind: input, shape index: {}]
  %s2 = inlined_call_operand.vmem [shape: f32[4,32], index: 2, kind: input, shape index: {}]
  %s3 = inlined_call_operand.vmem [shape: f32[4,4], index: 3, kind: input, shape index: {}]
  %s4 = inlined_call_operand.vmem [shape: f32[2,4], index: 4, kind: input, shape index: {}]
  %s5 = inlined_call_operand.vmem [shape: f32[4,2], index: 5, kind: input, shape index: {}]
  %s6 = inlined_call_operand.vmem [shape: f32[32,32], index: 6, kind: input, shape index: {}]
  %s7 = inlined_call_operand.vmem [shape: f32[1,32], index: 7, kind: input, shape index: {}]
  %s8 = inlined_call_operand.vmem [shape: f32[32,32], index: 8, kind: input, shape index: {}]
  %s9 = inlined_call_operand.vmem [shape: f32[32,32], index: 9, kind: input, shape index: {}]
  %s10 = inlined_call_operand.vmem [shape: f32[1,32], index: 10, kind: input, shape index: {}]
  %s11 = inlined_call_operand.vmem [shape: f32[32,16], index: 11, kind: input, shape index: {}]
  %s12 = inlined_call_operand.vmem [shape: f32[1,16], index: 12, kind: input, shape index: {}]
  %s13 = inlined_call_operand.vmem [shape: f32[16,4], index: 13, kind: input, shape index: {}]
  %s14 = inlined_call_operand.vmem [shape: f32[1,4], index: 14, kind: input, shape index: {}]
  %s15 = inlined_call_operand.hbm [shape: f32[2,4], index: 15, kind: output, shape index: {}]
  %s16 = sld [smem:[#allocation0]]
  $region70: #{hgp_forward.9} parent=0
    _
  %s18 = ssub.s32 1, %s16
  %s19 = scalar_select 0, %s18, %s16
  $region1: #{hgp_forward.9} parent=0
    #allocation2 [shape = 'u8[1024]{0}', space=vmem, size = 0x400, scoped, tag = 'output window, operand 0, single buffered']
    #allocation3 [shape = 's32[1]{0}', space=sflag, size = 0x4, scoped, tag = 'scoped memory for hgp_forward.9']
    %20 = vsyncpa [#allocation3], 0
    // Predicated region
    $region2: #{hgp_forward.9} parent=1 // pred_check
      _
    $region3: #{hgp_forward.9} parent=1 // pred_check_branch
      %22 = sbr.rel (0) target = $region5
    $region4: #{hgp_forward.9} parent=1 // pred_region
      _
    $region5: #{hgp_forward.9} parent=1 // pred_fallthru
      _
    // Predicated region
    $region6: #{hgp_forward.9} parent=1 // pred_check
      _
    $region7: #{hgp_forward.9} parent=1 // pred_check_branch
      %24 = sbr.rel (0) target = $region9
    $region8: #{hgp_forward.9} parent=1 // pred_region
      _
    $region9: #{hgp_forward.9} parent=1 // pred_fallthru
      _
    // Predicated region
    $region10: #{hgp_forward.9} parent=1 // pred_check
      _
    $region11: #{hgp_forward.9} parent=1 // pred_check_branch
      %26 = sbr.rel (0) target = $region13
    $region12: #{hgp_forward.9} parent=1 // pred_region
      _
    $region13: #{hgp_forward.9} parent=1 // pred_fallthru
      _
    // Predicated region
    $region14: #{hgp_forward.9} parent=1 // pred_check
      _
    $region15: #{hgp_forward.9} parent=1 // pred_check_branch
      %28 = sbr.rel (0) target = $region17
    $region16: #{hgp_forward.9} parent=1 // pred_region
      _
    $region17: #{hgp_forward.9} parent=1 // pred_fallthru
      _
    // Predicated region
    $region18: #{hgp_forward.9} parent=1 // pred_check
      _
    $region19: #{hgp_forward.9} parent=1 // pred_check_branch
      %30 = sbr.rel (0) target = $region21
    $region20: #{hgp_forward.9} parent=1 // pred_region
      _
    $region21: #{hgp_forward.9} parent=1 // pred_fallthru
      _
    // Predicated region
    $region22: #{hgp_forward.9} parent=1 // pred_check
      _
    $region23: #{hgp_forward.9} parent=1 // pred_check_branch
      %32 = sbr.rel (0) target = $region25
    $region24: #{hgp_forward.9} parent=1 // pred_region
      _
    $region25: #{hgp_forward.9} parent=1 // pred_fallthru
      _
    // Predicated region
    $region26: #{hgp_forward.9} parent=1 // pred_check
      _
    $region27: #{hgp_forward.9} parent=1 // pred_check_branch
      %34 = sbr.rel (0) target = $region29
    $region28: #{hgp_forward.9} parent=1 // pred_region
      _
    $region29: #{hgp_forward.9} parent=1 // pred_fallthru
      _
    // Predicated region
    $region30: #{hgp_forward.9} parent=1 // pred_check
      _
    $region31: #{hgp_forward.9} parent=1 // pred_check_branch
      %36 = sbr.rel (0) target = $region33
    $region32: #{hgp_forward.9} parent=1 // pred_region
      _
    $region33: #{hgp_forward.9} parent=1 // pred_fallthru
      _
    // Predicated region
    $region34: #{hgp_forward.9} parent=1 // pred_check
      _
    $region35: #{hgp_forward.9} parent=1 // pred_check_branch
      %38 = sbr.rel (0) target = $region37
    $region36: #{hgp_forward.9} parent=1 // pred_region
      _
    $region37: #{hgp_forward.9} parent=1 // pred_fallthru
      _
    // Predicated region
    $region38: #{hgp_forward.9} parent=1 // pred_check
      _
    $region39: #{hgp_forward.9} parent=1 // pred_check_branch
      %40 = sbr.rel (0) target = $region41
    $region40: #{hgp_forward.9} parent=1 // pred_region
      _
    $region41: #{hgp_forward.9} parent=1 // pred_fallthru
      _
    // Predicated region
    $region42: #{hgp_forward.9} parent=1 // pred_check
      _
    $region43: #{hgp_forward.9} parent=1 // pred_check_branch
      %42 = sbr.rel (0) target = $region45
    $region44: #{hgp_forward.9} parent=1 // pred_region
      _
    $region45: #{hgp_forward.9} parent=1 // pred_fallthru
      _
    // Predicated region
    $region46: #{hgp_forward.9} parent=1 // pred_check
      _
    $region47: #{hgp_forward.9} parent=1 // pred_check_branch
      %44 = sbr.rel (0) target = $region49
    $region48: #{hgp_forward.9} parent=1 // pred_region
      _
    $region49: #{hgp_forward.9} parent=1 // pred_fallthru
      _
    // Predicated region
    $region50: #{hgp_forward.9} parent=1 // pred_check
      _
    $region51: #{hgp_forward.9} parent=1 // pred_check_branch
      %46 = sbr.rel (0) target = $region53
    $region52: #{hgp_forward.9} parent=1 // pred_region
      _
    $region53: #{hgp_forward.9} parent=1 // pred_fallthru
      _
    // Predicated region
    $region54: #{hgp_forward.9} parent=1 // pred_check
      _
    $region55: #{hgp_forward.9} parent=1 // pred_check_branch
      %48 = sbr.rel (0) target = $region57
    $region56: #{hgp_forward.9} parent=1 // pred_region
      _
    $region57: #{hgp_forward.9} parent=1 // pred_fallthru
      _
    // Predicated region
    $region58: #{hgp_forward.9} parent=1 // pred_check
      _
    $region59: #{hgp_forward.9} parent=1 // pred_check_branch
      %50 = sbr.rel (0) target = $region61
    $region60: #{hgp_forward.9} parent=1 // pred_region
      _
    $region61: #{hgp_forward.9} parent=1 // pred_fallthru
      _
    %v51 = vld [vmem:[%s2] sm:$0xf]
    %v52 = vld [vmem:[%s4] sm:$0x3]
    %v53 = vld [vmem:[%s5] sm:$0xf]
    %vm54 = vcmask 25600
    %v55 = vsel %vm54, %v52, 0.0
    %56 = vadd.xlane.f32.xlu0 %v55
    %v57 = vpop.xlane.xlu0 %56
    %v58 = vmax.f32 %v57, 1.0
    %vm59 = vcmask 31744
    %v61 = vsel %vm59, %v52, 0
    %vm63 = vcmask 1043456
    %v65 = vsel %vm63, %v51, 0
    %67 = vmatprep.subr.mxu0 0.0
    %68 = vmatpush1.msra.mxu0 0.0
    %69 = vmatprep.subr.mxu0 0.0
    %70 = vmatpush1.msra.mxu0 0.0
    %71 = vmatprep.subr.mxu0 0.0
    %72 = vmatpush1.msra.mxu0 0.0
    %73 = vmatprep.subr.mxu0 0.0
    %74 = vmatpush1.msra.mxu0 0.0
    %75 = vmatprep.subr.mxu0 0.0
    %76 = vmatpush1.msra.mxu0 0.0
    %77 = vmatprep.subr.mxu0 0.0
    %78 = vmatpush1.msra.mxu0 0.0
    %79 = vmatprep.subr.mxu0 0.0
    %80 = vmatpush1.msra.mxu0 0.0
    %81 = vmatprep.subr.mxu0 0.0
    %82 = vmatpush1.msra.mxu0 0.0
    %83 = vmatprep.subr.mxu0 0.0
    %84 = vmatpush1.msra.mxu0 0.0
    %85 = vmatprep.subr.mxu0 0.0
    %86 = vmatpush1.msra.mxu0 0.0
    %87 = vmatprep.subr.mxu0 0.0
    %88 = vmatpush1.msra.mxu0 0.0
    %89 = vmatprep.subr.mxu0 0.0
    %90 = vmatpush1.msra.mxu0 0.0
    %91 = vmatprep.subr.mxu0 0.0
    %92 = vmatpush1.msra.mxu0 0.0
    %93 = vmatprep.subr.mxu0 0.0
    %94 = vmatpush1.msra.mxu0 0.0
    %95 = vmatprep.subr.mxu0 0.0
    %96 = vmatpush1.msra.mxu0 0.0
    %97 = vmatprep.subr.mxu0 0.0
    %98 = vmatpush1.msra.mxu0 %v65
    %99 = vmatprep.subr.mxu0 0.0
    %100 = vmatpush2.msra.mxu0 0.0
    %101 = vmatprep.subr.mxu0 0.0
    %102 = vmatpush2.msra.mxu0 0.0
    %103 = vmatprep.subr.mxu0 0.0
    %104 = vmatpush2.msra.mxu0 0.0
    %105 = vmatprep.subr.mxu0 0.0
    %106 = vmatpush2.msra.mxu0 0.0
    %107 = vmatprep.subr.mxu0 0.0
    %108 = vmatpush2.msra.mxu0 0.0
    %109 = vmatprep.subr.mxu0 0.0
    %110 = vmatpush2.msra.mxu0 0.0
    %111 = vmatprep.subr.mxu0 0.0
    %112 = vmatpush2.msra.mxu0 0.0
    %113 = vmatprep.subr.mxu0 0.0
    %114 = vmatpush2.msra.mxu0 0.0
    %115 = vmatprep.subr.mxu0 0.0
    %116 = vmatpush2.msra.mxu0 0.0
    %117 = vmatprep.subr.mxu0 0.0
    %118 = vmatpush2.msra.mxu0 0.0
    %119 = vmatprep.subr.mxu0 0.0
    %120 = vmatpush2.msra.mxu0 0.0
    %121 = vmatprep.subr.mxu0 0.0
    %122 = vmatpush2.msra.mxu0 0.0
    %123 = vmatprep.subr.mxu0 0.0
    %124 = vmatpush2.msra.mxu0 0.0
    %125 = vmatprep.subr.mxu0 0.0
    %126 = vmatpush2.msra.mxu0 0.0
    %127 = vmatprep.subr.mxu0 0.0
    %128 = vmatpush2.msra.mxu0 0.0
    %129 = vmatprep.subr.mxu0 0.0
    %130 = vmatpush2.msra.mxu0 0.0
    %131 = vmatprep.mubr.f32.mxu0 0.0
    %132 = vmatmul.mubr.f32.gmra.mxu0 %v61
    %v133 = vpop.f32.mrf.mxu0
    %v134 = vadd.f32 0.0, %v133
    %v135 = vpop.f32.mrf.mxu0
    %136 = vdwg.mxu0
    %v137 = vrcp.pop %v58
    %v138 = vmul.f32 %v134, %v137
    %vm139 = vcmp.gt.f32.partialorder %v53, 0.0
    %v140 = vsel %vm139, 1, 0
    %141 = vset.pattern.permute.xlu0 0
    %142 = vperm.xlu0 %141, %v140
    %v143 = vpop.permute.xlu0 %142
    %vm144 = vcmp.eq.s32.totalorder %v143, 1
    %v145 = vsel %vm144, %v51, -1e+30
    %vm146 = vcmask 257024
    %v147 = vsel %vm146, %v145, -inf
    %v148 = vrot.slane %v147, 4
    %v149 = vmax.f32 %v147, %v148
    %v150 = vrot.slane %v149, 2
    %v151 = vmax.f32 %v149, %v150
    %v152 = vrot.slane %v151, 1
    %v153 = vmax.f32 %v151, %v152
    %154 = vset.pattern.permute.xlu0 1
    %155 = vperm.xlu0 %154, %v140
    %v156 = vpop.permute.xlu0 %155
    %vm157 = vcmp.eq.s32.totalorder %v156, 1
    %v158 = vsel %vm157, %v51, -1e+30
    %v159 = vsel %vm146, %v158, -inf
    %v160 = vrot.slane %v159, 4
    %v161 = vmax.f32 %v159, %v160
    %v162 = vrot.slane %v161, 2
    %v163 = vmax.f32 %v161, %v162
    %v164 = vrot.slane %v163, 1
    %v165 = vmax.f32 %v163, %v164
    %vm166 = vcmask 1040384
    %v167 = vsel %vm166, %v153, %v165
    %v168 = vld [vmem:[%s3] sm:$0xf]
    %v169 = vlaneseq
    %v170 = vshrl.u32 %v169, 7
    %v171 = vlaneseq
    %v172 = vand.u32 %v171, 127
    %vm173 = vcmp.eq.s32.totalorder %v170, %v172
    %v174 = vsel %vm173, 1, 0
    %v175 = vcvt.s32.f32 %v174
    %v176 = vadd.f32 %v168, %v175
    %vm177 = vcmask 27648
    %v178 = vsel %vm177, %v176, 0.0
    %179 = vadd.xlane.f32.xlu0 %v178
    %v180 = vpop.xlane.xlu0 %179
    %v181 = vrot.slane %v178, 4
    %v182 = vadd.f32 %v178, %v181
    %v183 = vrot.slane %v182, 2
    %v184 = vadd.f32 %v182, %v183
    %v185 = vrot.slane %v184, 1
    %v186 = vadd.f32 %v184, %v185
    %v187 = vmax.f32 %v180, 1e-12
    %v188 = vrsqrt.pop %v187
    %v189 = vmul.f32 %v176, %v188
    %v190 = vmax.f32 %v186, 1e-12
    %v191 = vrsqrt.pop %v190
    %v192 = vmul.f32 %v189, %v191
    %v193 = vld [vmem:[%s6] sm:$0xff]
    %v194 = vld [vmem:[%s6 + $0x8] sm:$0xff]
    %v195 = vld [vmem:[%s6 + $0x10] sm:$0xff]
    %v196 = vld [vmem:[%s6 + $0x18] sm:$0xff]
    %v197 = vld [vmem:[%s7] sm:$0x1]
    %vm198 = vcmask 261120
    %v199 = vsel %vm198, %v51, 0
    %201 = vmatprep.subr.mxu0 0.0
    %202 = vmatpush1.msra.mxu0 0.0
    %203 = vmatprep.subr.mxu0 0.0
    %204 = vmatpush1.msra.mxu0 0.0
    %205 = vmatprep.subr.mxu0 0.0
    %206 = vmatpush1.msra.mxu0 0.0
    %207 = vmatprep.subr.mxu0 0.0
    %208 = vmatpush1.msra.mxu0 0.0
    %209 = vmatprep.subr.mxu0 0.0
    %210 = vmatpush1.msra.mxu0 0.0
    %211 = vmatprep.subr.mxu0 0.0
    %212 = vmatpush1.msra.mxu0 0.0
    %213 = vmatprep.subr.mxu0 0.0
    %214 = vmatpush1.msra.mxu0 0.0
    %215 = vmatprep.subr.mxu0 0.0
    %216 = vmatpush1.msra.mxu0 0.0
    %217 = vmatprep.subr.mxu0 0.0
    %218 = vmatpush1.msra.mxu0 0.0
    %219 = vmatprep.subr.mxu0 0.0
    %220 = vmatpush1.msra.mxu0 0.0
    %221 = vmatprep.subr.mxu0 0.0
    %222 = vmatpush1.msra.mxu0 0.0
    %223 = vmatprep.subr.mxu0 0.0
    %224 = vmatpush1.msra.mxu0 0.0
    %225 = vmatprep.subr.mxu0 0.0
    %226 = vmatpush1.msra.mxu0 %v196
    %227 = vmatprep.subr.mxu0 0.0
    %228 = vmatpush1.msra.mxu0 %v195
    %229 = vmatprep.subr.mxu0 0.0
    %230 = vmatpush1.msra.mxu0 %v194
    %231 = vmatprep.subr.mxu0 0.0
    %232 = vmatpush1.msra.mxu0 %v193
    %233 = vmatprep.subr.mxu0 0.0
    %234 = vmatpush2.msra.mxu0 0.0
    %235 = vmatprep.subr.mxu0 0.0
    %236 = vmatpush2.msra.mxu0 0.0
    %237 = vmatprep.subr.mxu0 0.0
    %238 = vmatpush2.msra.mxu0 0.0
    %239 = vmatprep.subr.mxu0 0.0
    %240 = vmatpush2.msra.mxu0 0.0
    %241 = vmatprep.subr.mxu0 0.0
    %242 = vmatpush2.msra.mxu0 0.0
    %243 = vmatprep.subr.mxu0 0.0
    %244 = vmatpush2.msra.mxu0 0.0
    %245 = vmatprep.subr.mxu0 0.0
    %246 = vmatpush2.msra.mxu0 0.0
    %247 = vmatprep.subr.mxu0 0.0
    %248 = vmatpush2.msra.mxu0 0.0
    %249 = vmatprep.subr.mxu0 0.0
    %250 = vmatpush2.msra.mxu0 0.0
    %251 = vmatprep.subr.mxu0 0.0
    %252 = vmatpush2.msra.mxu0 0.0
    %253 = vmatprep.subr.mxu0 0.0
    %254 = vmatpush2.msra.mxu0 0.0
    %255 = vmatprep.subr.mxu0 0.0
    %256 = vmatpush2.msra.mxu0 0.0
    %257 = vmatprep.subr.mxu0 0.0
    %258 = vmatpush2.msra.mxu0 0.0
    %259 = vmatprep.subr.mxu0 0.0
    %260 = vmatpush2.msra.mxu0 0.0
    %261 = vmatprep.subr.mxu0 0.0
    %262 = vmatpush2.msra.mxu0 0.0
    %263 = vmatprep.subr.mxu0 0.0
    %264 = vmatpush2.msra.mxu0 0.0
    %265 = vmatprep.mubr.f32.mxu0 0.0
    %266 = vmatmul.mubr.f32.gmra.mxu0 %v199
    %v267 = vpop.f32.mrf.mxu0
    %v268 = vadd.f32 0.0, %v267
    %v269 = vpop.f32.mrf.mxu0
    %270 = vdwg.mxu0
    %v272 = vlaneseq
    %v273 = vshrl.u32 %v272, 7
    %v274 = vsub.s32 0, %v273
    %v275 = vrot.slane %v197, %v274
    %v278 = vsel %vm59, %v192, 0
    %v281 = vsel %vm63, %v268, 0
    %283 = vmatprep.subr.mxu0 0.0
    %284 = vmatpush1.msra.mxu0 0.0
    %285 = vmatprep.subr.mxu0 0.0
    %286 = vmatpush1.msra.mxu0 0.0
    %287 = vmatprep.subr.mxu0 0.0
    %288 = vmatpush1.msra.mxu0 0.0
    %289 = vmatprep.subr.mxu0 0.0
    %290 = vmatpush1.msra.mxu0 0.0
    %291 = vmatprep.subr.mxu0 0.0
    %292 = vmatpush1.msra.mxu0 0.0
    %293 = vmatprep.subr.mxu0 0.0
    %294 = vmatpush1.msra.mxu0 0.0
    %295 = vmatprep.subr.mxu0 0.0
    %296 = vmatpush1.msra.mxu0 0.0
    %297 = vmatprep.subr.mxu0 0.0
    %298 = vmatpush1.msra.mxu0 0.0
    %299 = vmatprep.subr.mxu0 0.0
    %300 = vmatpush1.msra.mxu0 0.0
    %301 = vmatprep.subr.mxu0 0.0
    %302 = vmatpush1.msra.mxu0 0.0
    %303 = vmatprep.subr.mxu0 0.0
    %304 = vmatpush1.msra.mxu0 0.0
    %305 = vmatprep.subr.mxu0 0.0
    %306 = vmatpush1.msra.mxu0 0.0
    %307 = vmatprep.subr.mxu0 0.0
    %308 = vmatpush1.msra.mxu0 0.0
    %309 = vmatprep.subr.mxu0 0.0
    %310 = vmatpush1.msra.mxu0 0.0
    %311 = vmatprep.subr.mxu0 0.0
    %312 = vmatpush1.msra.mxu0 0.0
    %313 = vmatprep.subr.mxu0 0.0
    %314 = vmatpush1.msra.mxu0 %v281
    %315 = vmatprep.subr.mxu0 0.0
    %316 = vmatpush2.msra.mxu0 0.0
    %317 = vmatprep.subr.mxu0 0.0
    %318 = vmatpush2.msra.mxu0 0.0
    %319 = vmatprep.subr.mxu0 0.0
    %320 = vmatpush2.msra.mxu0 0.0
    %321 = vmatprep.subr.mxu0 0.0
    %322 = vmatpush2.msra.mxu0 0.0
    %323 = vmatprep.subr.mxu0 0.0
    %324 = vmatpush2.msra.mxu0 0.0
    %325 = vmatprep.subr.mxu0 0.0
    %326 = vmatpush2.msra.mxu0 0.0
    %327 = vmatprep.subr.mxu0 0.0
    %328 = vmatpush2.msra.mxu0 0.0
    %329 = vmatprep.subr.mxu0 0.0
    %330 = vmatpush2.msra.mxu0 0.0
    %331 = vmatprep.subr.mxu0 0.0
    %332 = vmatpush2.msra.mxu0 0.0
    %333 = vmatprep.subr.mxu0 0.0
    %334 = vmatpush2.msra.mxu0 0.0
    %335 = vmatprep.subr.mxu0 0.0
    %336 = vmatpush2.msra.mxu0 0.0
    %337 = vmatprep.subr.mxu0 0.0
    %338 = vmatpush2.msra.mxu0 0.0
    %339 = vmatprep.subr.mxu0 0.0
    %340 = vmatpush2.msra.mxu0 0.0
    %341 = vmatprep.subr.mxu0 0.0
    %342 = vmatpush2.msra.mxu0 0.0
    %343 = vmatprep.subr.mxu0 0.0
    %344 = vmatpush2.msra.mxu0 0.0
    %345 = vmatprep.subr.mxu0 0.0
    %346 = vmatpush2.msra.mxu0 0.0
    %347 = vmatprep.mubr.f32.mxu0 0.0
    %348 = vmatmul.mubr.f32.gmra.mxu0 %v278
    %v349 = vpop.f32.mrf.mxu0
    %v350 = vadd.f32 %v275, %v349
    %v351 = vpop.f32.mrf.mxu0
    %352 = vdwg.mxu0
    %v353 = vmax.f32 %v350, 0.0
    %v355 = vsel %vm63, %v353, 0
    %357 = vmatprep.subr.mxu0 0.0
    %358 = vmatpush1.msra.mxu0 0.0
    %359 = vmatprep.subr.mxu0 0.0
    %360 = vmatpush1.msra.mxu0 0.0
    %361 = vmatprep.subr.mxu0 0.0
    %362 = vmatpush1.msra.mxu0 0.0
    %363 = vmatprep.subr.mxu0 0.0
    %364 = vmatpush1.msra.mxu0 0.0
    %365 = vmatprep.subr.mxu0 0.0
    %366 = vmatpush1.msra.mxu0 0.0
    %367 = vmatprep.subr.mxu0 0.0
    %368 = vmatpush1.msra.mxu0 0.0
    %369 = vmatprep.subr.mxu0 0.0
    %370 = vmatpush1.msra.mxu0 0.0
    %371 = vmatprep.subr.mxu0 0.0
    %372 = vmatpush1.msra.mxu0 0.0
    %373 = vmatprep.subr.mxu0 0.0
    %374 = vmatpush1.msra.mxu0 0.0
    %375 = vmatprep.subr.mxu0 0.0
    %376 = vmatpush1.msra.mxu0 0.0
    %377 = vmatprep.subr.mxu0 0.0
    %378 = vmatpush1.msra.mxu0 0.0
    %379 = vmatprep.subr.mxu0 0.0
    %380 = vmatpush1.msra.mxu0 0.0
    %381 = vmatprep.subr.mxu0 0.0
    %382 = vmatpush1.msra.mxu0 0.0
    %383 = vmatprep.subr.mxu0 0.0
    %384 = vmatpush1.msra.mxu0 0.0
    %385 = vmatprep.subr.mxu0 0.0
    %386 = vmatpush1.msra.mxu0 0.0
    %387 = vmatprep.subr.mxu0 0.0
    %388 = vmatpush1.msra.mxu0 %v355
    %389 = vmatprep.subr.mxu0 0.0
    %390 = vmatpush2.msra.mxu0 0.0
    %391 = vmatprep.subr.mxu0 0.0
    %392 = vmatpush2.msra.mxu0 0.0
    %393 = vmatprep.subr.mxu0 0.0
    %394 = vmatpush2.msra.mxu0 0.0
    %395 = vmatprep.subr.mxu0 0.0
    %396 = vmatpush2.msra.mxu0 0.0
    %397 = vmatprep.subr.mxu0 0.0
    %398 = vmatpush2.msra.mxu0 0.0
    %399 = vmatprep.subr.mxu0 0.0
    %400 = vmatpush2.msra.mxu0 0.0
    %401 = vmatprep.subr.mxu0 0.0
    %402 = vmatpush2.msra.mxu0 0.0
    %403 = vmatprep.subr.mxu0 0.0
    %404 = vmatpush2.msra.mxu0 0.0
    %405 = vmatprep.subr.mxu0 0.0
    %406 = vmatpush2.msra.mxu0 0.0
    %407 = vmatprep.subr.mxu0 0.0
    %408 = vmatpush2.msra.mxu0 0.0
    %409 = vmatprep.subr.mxu0 0.0
    %410 = vmatpush2.msra.mxu0 0.0
    %411 = vmatprep.subr.mxu0 0.0
    %412 = vmatpush2.msra.mxu0 0.0
    %413 = vmatprep.subr.mxu0 0.0
    %414 = vmatpush2.msra.mxu0 0.0
    %415 = vmatprep.subr.mxu0 0.0
    %416 = vmatpush2.msra.mxu0 0.0
    %417 = vmatprep.subr.mxu0 0.0
    %418 = vmatpush2.msra.mxu0 0.0
    %419 = vmatprep.subr.mxu0 0.0
    %420 = vmatpush2.msra.mxu0 0.0
    %421 = vmatprep.mubr.f32.mxu0 0.0
    %422 = vmatmul.mubr.f32.gmra.mxu0 %v61
    %v423 = vpop.f32.mrf.mxu0
    %v424 = vadd.f32 0.0, %v423
    %v425 = vpop.f32.mrf.mxu0
    %426 = vdwg.mxu0
    %v427 = vmul.f32 %v424, %v137
    %v428 = vsel %vm144, %v353, -1e+30
    %v429 = vsel %vm146, %v428, -inf
    %v430 = vrot.slane %v429, 4
    %v431 = vmax.f32 %v429, %v430
    %v432 = vrot.slane %v431, 2
    %v433 = vmax.f32 %v431, %v432
    %v434 = vrot.slane %v433, 1
    %v435 = vmax.f32 %v433, %v434
    %v436 = vsel %vm157, %v353, -1e+30
    %v437 = vsel %vm146, %v436, -inf
    %v438 = vrot.slane %v437, 4
    %v439 = vmax.f32 %v437, %v438
    %v440 = vrot.slane %v439, 2
    %v441 = vmax.f32 %v439, %v440
    %v442 = vrot.slane %v441, 1
    %v443 = vmax.f32 %v441, %v442
    %v444 = vsel %vm166, %v435, %v443
    %v445 = vld [vmem:[%s0] sm:$0x3]
    %v446 = vmax.f32 %v445, 0.0
    %v447 = vmax.f32 %v167, 0.0
    %v448 = vadd.f32 %v446, %v447
    %v449 = vmax.f32 %v444, 0.0
    %v450 = vadd.f32 %v448, %v449
    %v451 = vld [vmem:[%s1] sm:$0x3]
    %v452 = vmax.f32 %v451, 0.0
    %v453 = vmax.f32 %v138, 0.0
    %v454 = vadd.f32 %v452, %v453
    %v455 = vmax.f32 %v427, 0.0
    %v456 = vadd.f32 %v454, %v455
    %v457 = vld [vmem:[%s8] sm:$0xff]
    %v458 = vld [vmem:[%s8 + $0x8] sm:$0xff]
    %v459 = vld [vmem:[%s8 + $0x10] sm:$0xff]
    %v460 = vld [vmem:[%s8 + $0x18] sm:$0xff]
    %v461 = vld [vmem:[%s9] sm:$0xff]
    %v462 = vld [vmem:[%s9 + $0x8] sm:$0xff]
    %v463 = vld [vmem:[%s9 + $0x10] sm:$0xff]
    %v464 = vld [vmem:[%s9 + $0x18] sm:$0xff]
    %v466 = vsel %vm198, %v456, 0
    %468 = vmatprep.subr.mxu0 0.0
    %469 = vmatpush1.msra.mxu0 0.0
    %470 = vmatprep.subr.mxu0 0.0
    %471 = vmatpush1.msra.mxu0 0.0
    %472 = vmatprep.subr.mxu0 0.0
    %473 = vmatpush1.msra.mxu0 0.0
    %474 = vmatprep.subr.mxu0 0.0
    %475 = vmatpush1.msra.mxu0 0.0
    %476 = vmatprep.subr.mxu0 0.0
    %477 = vmatpush1.msra.mxu0 0.0
    %478 = vmatprep.subr.mxu0 0.0
    %479 = vmatpush1.msra.mxu0 0.0
    %480 = vmatprep.subr.mxu0 0.0
    %481 = vmatpush1.msra.mxu0 0.0
    %482 = vmatprep.subr.mxu0 0.0
    %483 = vmatpush1.msra.mxu0 0.0
    %484 = vmatprep.subr.mxu0 0.0
    %485 = vmatpush1.msra.mxu0 0.0
    %486 = vmatprep.subr.mxu0 0.0
    %487 = vmatpush1.msra.mxu0 0.0
    %488 = vmatprep.subr.mxu0 0.0
    %489 = vmatpush1.msra.mxu0 0.0
    %490 = vmatprep.subr.mxu0 0.0
    %491 = vmatpush1.msra.mxu0 0.0
    %492 = vmatprep.subr.mxu0 0.0
    %493 = vmatpush1.msra.mxu0 %v464
    %494 = vmatprep.subr.mxu0 0.0
    %495 = vmatpush1.msra.mxu0 %v463
    %496 = vmatprep.subr.mxu0 0.0
    %497 = vmatpush1.msra.mxu0 %v462
    %498 = vmatprep.subr.mxu0 0.0
    %499 = vmatpush1.msra.mxu0 %v461
    %500 = vmatprep.subr.mxu0 0.0
    %501 = vmatpush2.msra.mxu0 0.0
    %502 = vmatprep.subr.mxu0 0.0
    %503 = vmatpush2.msra.mxu0 0.0
    %504 = vmatprep.subr.mxu0 0.0
    %505 = vmatpush2.msra.mxu0 0.0
    %506 = vmatprep.subr.mxu0 0.0
    %507 = vmatpush2.msra.mxu0 0.0
    %508 = vmatprep.subr.mxu0 0.0
    %509 = vmatpush2.msra.mxu0 0.0
    %510 = vmatprep.subr.mxu0 0.0
    %511 = vmatpush2.msra.mxu0 0.0
    %512 = vmatprep.subr.mxu0 0.0
    %513 = vmatpush2.msra.mxu0 0.0
    %514 = vmatprep.subr.mxu0 0.0
    %515 = vmatpush2.msra.mxu0 0.0
    %516 = vmatprep.subr.mxu0 0.0
    %517 = vmatpush2.msra.mxu0 0.0
    %518 = vmatprep.subr.mxu0 0.0
    %519 = vmatpush2.msra.mxu0 0.0
    %520 = vmatprep.subr.mxu0 0.0
    %521 = vmatpush2.msra.mxu0 0.0
    %522 = vmatprep.subr.mxu0 0.0
    %523 = vmatpush2.msra.mxu0 0.0
    %524 = vmatprep.subr.mxu0 0.0
    %525 = vmatpush2.msra.mxu0 0.0
    %526 = vmatprep.subr.mxu0 0.0
    %527 = vmatpush2.msra.mxu0 0.0
    %528 = vmatprep.subr.mxu0 0.0
    %529 = vmatpush2.msra.mxu0 0.0
    %530 = vmatprep.subr.mxu0 0.0
    %531 = vmatpush2.msra.mxu0 0.0
    %532 = vmatprep.mubr.f32.mxu0 0.0
    %533 = vmatmul.mubr.f32.gmra.mxu0 %v466
    %v534 = vpop.f32.mrf.mxu0
    %v535 = vadd.f32 0.0, %v534
    %v536 = vpop.f32.mrf.mxu0
    %537 = vdwg.mxu0
    %v539 = vsel %vm198, %v450, 0
    %541 = vmatprep.subr.mxu0 0.0
    %542 = vmatpush1.msra.mxu0 0.0
    %543 = vmatprep.subr.mxu0 0.0
    %544 = vmatpush1.msra.mxu0 0.0
    %545 = vmatprep.subr.mxu0 0.0
    %546 = vmatpush1.msra.mxu0 0.0
    %547 = vmatprep.subr.mxu0 0.0
    %548 = vmatpush1.msra.mxu0 0.0
    %549 = vmatprep.subr.mxu0 0.0
    %550 = vmatpush1.msra.mxu0 0.0
    %551 = vmatprep.subr.mxu0 0.0
    %552 = vmatpush1.msra.mxu0 0.0
    %553 = vmatprep.subr.mxu0 0.0
    %554 = vmatpush1.msra.mxu0 0.0
    %555 = vmatprep.subr.mxu0 0.0
    %556 = vmatpush1.msra.mxu0 0.0
    %557 = vmatprep.subr.mxu0 0.0
    %558 = vmatpush1.msra.mxu0 0.0
    %559 = vmatprep.subr.mxu0 0.0
    %560 = vmatpush1.msra.mxu0 0.0
    %561 = vmatprep.subr.mxu0 0.0
    %562 = vmatpush1.msra.mxu0 0.0
    %563 = vmatprep.subr.mxu0 0.0
    %564 = vmatpush1.msra.mxu0 0.0
    %565 = vmatprep.subr.mxu0 0.0
    %566 = vmatpush1.msra.mxu0 %v460
    %567 = vmatprep.subr.mxu0 0.0
    %568 = vmatpush1.msra.mxu0 %v459
    %569 = vmatprep.subr.mxu0 0.0
    %570 = vmatpush1.msra.mxu0 %v458
    %571 = vmatprep.subr.mxu0 0.0
    %572 = vmatpush1.msra.mxu0 %v457
    %573 = vmatprep.subr.mxu0 0.0
    %574 = vmatpush2.msra.mxu0 0.0
    %575 = vmatprep.subr.mxu0 0.0
    %576 = vmatpush2.msra.mxu0 0.0
    %577 = vmatprep.subr.mxu0 0.0
    %578 = vmatpush2.msra.mxu0 0.0
    %579 = vmatprep.subr.mxu0 0.0
    %580 = vmatpush2.msra.mxu0 0.0
    %581 = vmatprep.subr.mxu0 0.0
    %582 = vmatpush2.msra.mxu0 0.0
    %583 = vmatprep.subr.mxu0 0.0
    %584 = vmatpush2.msra.mxu0 0.0
    %585 = vmatprep.subr.mxu0 0.0
    %586 = vmatpush2.msra.mxu0 0.0
    %587 = vmatprep.subr.mxu0 0.0
    %588 = vmatpush2.msra.mxu0 0.0
    %589 = vmatprep.subr.mxu0 0.0
    %590 = vmatpush2.msra.mxu0 0.0
    %591 = vmatprep.subr.mxu0 0.0
    %592 = vmatpush2.msra.mxu0 0.0
    %593 = vmatprep.subr.mxu0 0.0
    %594 = vmatpush2.msra.mxu0 0.0
    %595 = vmatprep.subr.mxu0 0.0
    %596 = vmatpush2.msra.mxu0 0.0
    %597 = vmatprep.subr.mxu0 0.0
    %598 = vmatpush2.msra.mxu0 0.0
    %599 = vmatprep.subr.mxu0 0.0
    %600 = vmatpush2.msra.mxu0 0.0
    %601 = vmatprep.subr.mxu0 0.0
    %602 = vmatpush2.msra.mxu0 0.0
    %603 = vmatprep.subr.mxu0 0.0
    %604 = vmatpush2.msra.mxu0 0.0
    %605 = vmatprep.mubr.f32.mxu0 0.0
    %606 = vmatmul.mubr.f32.gmra.mxu0 %v539
    %v607 = vpop.f32.mrf.mxu0
    %v608 = vadd.f32 %v535, %v607
    %v609 = vpop.f32.mrf.mxu0
    %610 = vdwg.mxu0
    %v611 = vld [vmem:[%s10] sm:$0x1]
    %v613 = vlaneseq
    %v614 = vshrl.u32 %v613, 7
    %v615 = vsub.s32 0, %v614
    %v616 = vrot.slane %v611, %v615
    %v618 = vadd.f32 %v608, %v616
    %v619 = vmax.f32 %v618, 0.0
    %v620 = vld [vmem:[%s11] sm:$0xff]
    %v621 = vld [vmem:[%s11 + $0x8] sm:$0xff]
    %v622 = vld [vmem:[%s11 + $0x10] sm:$0xff]
    %v623 = vld [vmem:[%s11 + $0x18] sm:$0xff]
    %v624 = vld [vmem:[%s12] sm:$0x1]
    %v626 = vlaneseq
    %v627 = vshrl.u32 %v626, 7
    %v628 = vsub.s32 0, %v627
    %v629 = vrot.slane %v624, %v628
    %v632 = vsel %vm198, %v619, 0
    %634 = vmatprep.subr.mxu0 0.0
    %635 = vmatpush1.msra.mxu0 0.0
    %636 = vmatprep.subr.mxu0 0.0
    %637 = vmatpush1.msra.mxu0 0.0
    %638 = vmatprep.subr.mxu0 0.0
    %639 = vmatpush1.msra.mxu0 0.0
    %640 = vmatprep.subr.mxu0 0.0
    %641 = vmatpush1.msra.mxu0 0.0
    %642 = vmatprep.subr.mxu0 0.0
    %643 = vmatpush1.msra.mxu0 0.0
    %644 = vmatprep.subr.mxu0 0.0
    %645 = vmatpush1.msra.mxu0 0.0
    %646 = vmatprep.subr.mxu0 0.0
    %647 = vmatpush1.msra.mxu0 0.0
    %648 = vmatprep.subr.mxu0 0.0
    %649 = vmatpush1.msra.mxu0 0.0
    %650 = vmatprep.subr.mxu0 0.0
    %651 = vmatpush1.msra.mxu0 0.0
    %652 = vmatprep.subr.mxu0 0.0
    %653 = vmatpush1.msra.mxu0 0.0
    %654 = vmatprep.subr.mxu0 0.0
    %655 = vmatpush1.msra.mxu0 0.0
    %656 = vmatprep.subr.mxu0 0.0
    %657 = vmatpush1.msra.mxu0 0.0
    %658 = vmatprep.subr.mxu0 0.0
    %659 = vmatpush1.msra.mxu0 %v623
    %660 = vmatprep.subr.mxu0 0.0
    %661 = vmatpush1.msra.mxu0 %v622
    %662 = vmatprep.subr.mxu0 0.0
    %663 = vmatpush1.msra.mxu0 %v621
    %664 = vmatprep.subr.mxu0 0.0
    %665 = vmatpush1.msra.mxu0 %v620
    %666 = vmatprep.subr.mxu0 0.0
    %667 = vmatpush2.msra.mxu0 0.0
    %668 = vmatprep.subr.mxu0 0.0
    %669 = vmatpush2.msra.mxu0 0.0
    %670 = vmatprep.subr.mxu0 0.0
    %671 = vmatpush2.msra.mxu0 0.0
    %672 = vmatprep.subr.mxu0 0.0
    %673 = vmatpush2.msra.mxu0 0.0
    %674 = vmatprep.subr.mxu0 0.0
    %675 = vmatpush2.msra.mxu0 0.0
    %676 = vmatprep.subr.mxu0 0.0
    %677 = vmatpush2.msra.mxu0 0.0
    %678 = vmatprep.subr.mxu0 0.0
    %679 = vmatpush2.msra.mxu0 0.0
    %680 = vmatprep.subr.mxu0 0.0
    %681 = vmatpush2.msra.mxu0 0.0
    %682 = vmatprep.subr.mxu0 0.0
    %683 = vmatpush2.msra.mxu0 0.0
    %684 = vmatprep.subr.mxu0 0.0
    %685 = vmatpush2.msra.mxu0 0.0
    %686 = vmatprep.subr.mxu0 0.0
    %687 = vmatpush2.msra.mxu0 0.0
    %688 = vmatprep.subr.mxu0 0.0
    %689 = vmatpush2.msra.mxu0 0.0
    %690 = vmatprep.subr.mxu0 0.0
    %691 = vmatpush2.msra.mxu0 0.0
    %692 = vmatprep.subr.mxu0 0.0
    %693 = vmatpush2.msra.mxu0 0.0
    %694 = vmatprep.subr.mxu0 0.0
    %695 = vmatpush2.msra.mxu0 0.0
    %696 = vmatprep.subr.mxu0 0.0
    %697 = vmatpush2.msra.mxu0 0.0
    %698 = vmatprep.mubr.f32.mxu0 0.0
    %699 = vmatmul.mubr.f32.gmra.mxu0 %v632
    %v700 = vpop.f32.mrf.mxu0
    %v701 = vadd.f32 %v629, %v700
    %v702 = vpop.f32.mrf.mxu0
    %703 = vdwg.mxu0
    %v704 = vmax.f32 %v701, 0.0
    %v705 = vld [vmem:[%s13] sm:$0xff]
    %v706 = vld [vmem:[%s13 + $0x8] sm:$0xff]
    %v707 = vld [vmem:[%s14] sm:$0x1]
    %v709 = vlaneseq
    %v710 = vshrl.u32 %v709, 7
    %v711 = vsub.s32 0, %v710
    %v712 = vrot.slane %v707, %v711
    %vm714 = vcmask 130048
    %v716 = vsel %vm714, %v704, 0
    %718 = vmatprep.subr.mxu0 0.0
    %719 = vmatpush1.msra.mxu0 0.0
    %720 = vmatprep.subr.mxu0 0.0
    %721 = vmatpush1.msra.mxu0 0.0
    %722 = vmatprep.subr.mxu0 0.0
    %723 = vmatpush1.msra.mxu0 0.0
    %724 = vmatprep.subr.mxu0 0.0
    %725 = vmatpush1.msra.mxu0 0.0
    %726 = vmatprep.subr.mxu0 0.0
    %727 = vmatpush1.msra.mxu0 0.0
    %728 = vmatprep.subr.mxu0 0.0
    %729 = vmatpush1.msra.mxu0 0.0
    %730 = vmatprep.subr.mxu0 0.0
    %731 = vmatpush1.msra.mxu0 0.0
    %732 = vmatprep.subr.mxu0 0.0
    %733 = vmatpush1.msra.mxu0 0.0
    %734 = vmatprep.subr.mxu0 0.0
    %735 = vmatpush1.msra.mxu0 0.0
    %736 = vmatprep.subr.mxu0 0.0
    %737 = vmatpush1.msra.mxu0 0.0
    %738 = vmatprep.subr.mxu0 0.0
    %739 = vmatpush1.msra.mxu0 0.0
    %740 = vmatprep.subr.mxu0 0.0
    %741 = vmatpush1.msra.mxu0 0.0
    %742 = vmatprep.subr.mxu0 0.0
    %743 = vmatpush1.msra.mxu0 0.0
    %744 = vmatprep.subr.mxu0 0.0
    %745 = vmatpush1.msra.mxu0 0.0
    %746 = vmatprep.subr.mxu0 0.0
    %747 = vmatpush1.msra.mxu0 %v706
    %748 = vmatprep.subr.mxu0 0.0
    %749 = vmatpush1.msra.mxu0 %v705
    %750 = vmatprep.subr.mxu0 0.0
    %751 = vmatpush2.msra.mxu0 0.0
    %752 = vmatprep.subr.mxu0 0.0
    %753 = vmatpush2.msra.mxu0 0.0
    %754 = vmatprep.subr.mxu0 0.0
    %755 = vmatpush2.msra.mxu0 0.0
    %756 = vmatprep.subr.mxu0 0.0
    %757 = vmatpush2.msra.mxu0 0.0
    %758 = vmatprep.subr.mxu0 0.0
    %759 = vmatpush2.msra.mxu0 0.0
    %760 = vmatprep.subr.mxu0 0.0
    %761 = vmatpush2.msra.mxu0 0.0
    %762 = vmatprep.subr.mxu0 0.0
    %763 = vmatpush2.msra.mxu0 0.0
    %764 = vmatprep.subr.mxu0 0.0
    %765 = vmatpush2.msra.mxu0 0.0
    %766 = vmatprep.subr.mxu0 0.0
    %767 = vmatpush2.msra.mxu0 0.0
    %768 = vmatprep.subr.mxu0 0.0
    %769 = vmatpush2.msra.mxu0 0.0
    %770 = vmatprep.subr.mxu0 0.0
    %771 = vmatpush2.msra.mxu0 0.0
    %772 = vmatprep.subr.mxu0 0.0
    %773 = vmatpush2.msra.mxu0 0.0
    %774 = vmatprep.subr.mxu0 0.0
    %775 = vmatpush2.msra.mxu0 0.0
    %776 = vmatprep.subr.mxu0 0.0
    %777 = vmatpush2.msra.mxu0 0.0
    %778 = vmatprep.subr.mxu0 0.0
    %779 = vmatpush2.msra.mxu0 0.0
    %780 = vmatprep.subr.mxu0 0.0
    %781 = vmatpush2.msra.mxu0 0.0
    %782 = vmatprep.mubr.f32.mxu0 0.0
    %783 = vmatmul.mubr.f32.gmra.mxu0 %v716
    %v784 = vpop.f32.mrf.mxu0
    %v785 = vadd.f32 %v712, %v784
    %v786 = vpop.f32.mrf.mxu0
    %787 = vdwg.mxu0
    %v788 = vsel %vm54, %v785, -inf
    %789 = vmax.xlane.f32.xlu0 %v788
    %v790 = vpop.xlane.xlu0 %789
    %v791 = vsub.f32 %v785, %v790
    %v792 = vmul.f32 %v791, 1.442695
    %v793 = vpow.pop %v792
    %v794 = vsel %vm54, %v793, 0.0
    %795 = vadd.xlane.f32.xlu0 %v794
    %v796 = vpop.xlane.xlu0 %795
    %v797 = vlog2.pop %v796
    %v798 = vmul.f32 %v797, 0.6931472
    %v799 = vsub.f32 %v791, %v798
    %800 = vst.msk [vmem:[#allocation2] sm:$0x3] %vm54, %v799
    // Predicated region
    $region62: #{hgp_forward.9} parent=1 // pred_check
      _
    $region63: #{hgp_forward.9} parent=1 // pred_check_branch
      %802 = sbr.rel (0) target = $region65
    $region64: #{hgp_forward.9} parent=1 // pred_region
      %s804 = ssub.s32 32, 32
      %805 = vsyncadd [#allocation3], %s804
      %s807 = sshll.u32 [#allocation2], 4
      %s808 = int_to_ptr.vmem [resolvable:$true] %s807
      %810 = dma.vmem_to_hbm [thread:$0]  %s808, 32, %s15, [#allocation3]
    $region65: #{hgp_forward.9} parent=1 // pred_fallthru
      _
    // Predicated region
    $region66: #{hgp_forward.9} parent=1 // pred_check
      _
    $region67: #{hgp_forward.9} parent=1 // pred_check_branch
      %812 = sbr.rel (0) target = $region69
    $region68: #{hgp_forward.9} parent=1 // pred_region
      %813 = dma.done [#allocation3], 32
    $region69: #{hgp_forward.9} parent=1 // pred_fallthru
      _
    %814 = vsyncpa [#allocation3], 1

</llo_original>
